<compile_context>
chip_gen: v7x
topology: tpu7x:2x2x1
jax: 0.10.0
libtpu: 0.0.40
codegen_flags: <defaults>
</compile_context>

<pallas_src>
import functools

import jax
import jax.numpy as jnp
import numpy as np
from jax.experimental import pallas as pl
from jax.experimental.pallas import tpu as pltpu


# ---------------------------------------------------------------------------
# helpers
# ---------------------------------------------------------------------------
def _round_up(x, m):
    return (x + m - 1) // m * m


_TAPS3 = tuple((di, dj) for di in range(3) for dj in range(3))
_CENTRE = _TAPS3.index((1, 1))
_BN_EPS = 1e-5


def _parallel_params():
    # Single, fully independent grid axis -> megacore-shardable on v7x.
    return pltpu.CompilerParams(dimension_semantics=("parallel",))


def _col_stats(acc):
    # per-channel (sum, sum of squares) of an (M, C) f32 tile -> (2, C)
    return jnp.concatenate(
        [jnp.sum(acc, axis=0, keepdims=True),
         jnp.sum(acc * acc, axis=0, keepdims=True)], axis=0)


# ---------------------------------------------------------------------------
# Pass 1: conv1 (3x3, stride) [+ fused 1x1 downsample] + per-image BN partial stats
# ---------------------------------------------------------------------------
def _conv1_kernel(*refs, taps, hout, wout, with_ds):
    if with_ds:
        x_ref, w_ref, wd_ref, c1_ref, s1_ref, c3_ref, s3_ref, acc_ref = refs
    else:
        x_ref, w_ref, c1_ref, s1_ref, acc_ref = refs
        wd_ref = c3_ref = s3_ref = None

    m = hout * wout
    # Load the whole (phases, Hh, Wh, Cin_p) bf16 block once; do the shifted-window
    # im2col on the f32 value (avoids packed-dtype sub-sublane slicing).
    xall = x_ref[...].astype(jnp.float32)

    acc_ref[...] = jnp.zeros_like(acc_ref)
    for t, (ph, r0, c0) in enumerate(taps):
        win = xall[ph, r0:r0 + hout, c0:c0 + wout, :]          # (hout, wout, cin_p)
        lhs = win.reshape(m, win.shape[-1]).astype(w_ref.dtype)
        acc_ref[...] += jnp.dot(lhs, w_ref[t],
                                preferred_element_type=jnp.float32)
        if with_ds and t == _CENTRE:
            # 1x1 downsample conv: its input is exactly the centre-tap window.
            a3 = jnp.dot(lhs, wd_ref[...], preferred_element_type=jnp.float32)
            c3_ref[0] = a3.reshape(hout, wout, -1).astype(c3_ref.dtype)
            s3_ref[0] = _col_stats(a3)

    acc = acc_ref[...]
    c1_ref[0] = acc.reshape(hout, wout, -1).astype(c1_ref.dtype)
    s1_ref[0] = _col_stats(acc)


def _conv1_pass(xin, w1, wd, *, taps, phases, hout, wout, out_dtype):
    ntot, hh, wh, cin_p = xin.shape
    n = ntot // phases
    cout = w1.shape[-1]
    with_ds = wd is not None
    m = hout * wout

    in_specs = [pl.BlockSpec((phases, hh, wh, cin_p), lambda i: (i, 0, 0, 0)),
                pl.BlockSpec((9, cin_p, cout), lambda i: (0, 0, 0))]
    args = [xin, w1]
    out_shape = [jax.ShapeDtypeStruct((n, hout, wout, cout), out_dtype),
                 jax.ShapeDtypeStruct((n, 2, cout), jnp.float32)]
    out_specs = [pl.BlockSpec((1, hout, wout, cout), lambda i: (i, 0, 0, 0)),
                 pl.BlockSpec((1, 2, cout), lambda i: (i, 0, 0))]
    if with_ds:
        in_specs.append(pl.BlockSpec((cin_p, cout), lambda i: (0, 0)))
        args.append(wd)
        out_shape += [jax.ShapeDtypeStruct((n, hout, wout, cout), out_dtype),
                      jax.ShapeDtypeStruct((n, 2, cout), jnp.float32)]
        out_specs += [pl.BlockSpec((1, hout, wout, cout), lambda i: (i, 0, 0, 0)),
                      pl.BlockSpec((1, 2, cout), lambda i: (i, 0, 0))]

    kernel = functools.partial(_conv1_kernel, taps=taps, hout=hout, wout=wout,
                               with_ds=with_ds)
    return pl.pallas_call(
        kernel,
        grid=(n,),
        in_specs=in_specs,
        out_specs=out_specs,
        out_shape=out_shape,
        scratch_shapes=[pltpu.VMEM((m, cout), jnp.float32)],
        compiler_params=_parallel_params(),
    )(*args)


# ---------------------------------------------------------------------------
# Pass 2: fused BN1-apply + ReLU prologue, then conv2 (3x3, stride 1) + partial stats
# ---------------------------------------------------------------------------
def _conv2_kernel(c1_ref, sc_ref, w_ref, out_ref, st_ref, pad_ref, acc_ref,
                  *, hout, wout):
    cp = c1_ref.shape[-1]
    m = hout * wout

    scale = sc_ref[pl.ds(0, 1), :].reshape(1, 1, cp)
    shift = sc_ref[pl.ds(1, 1), :].reshape(1, 1, cp)
    act = jnp.maximum(c1_ref[0].astype(jnp.float32) * scale + shift, 0.0)

    # Zero-padded activation held in a VMEM scratch: in-kernel im2col buffer.
    pad_ref[...] = jnp.zeros_like(pad_ref)
    pad_ref[pl.ds(1, hout), pl.ds(1, wout), :] = act

    acc_ref[...] = jnp.zeros_like(acc_ref)
    for t, (di, dj) in enumerate(_TAPS3):
        win = pad_ref[pl.ds(di, hout), pl.ds(dj, wout), :]
        lhs = win.reshape(m, cp).astype(w_ref.dtype)
        acc_ref[...] += jnp.dot(lhs, w_ref[t],
                                preferred_element_type=jnp.float32)

    acc = acc_ref[...]
    out_ref[0] = acc.reshape(hout, wout, cp).astype(out_ref.dtype)
    st_ref[0] = _col_stats(acc)


def _conv2_pass(c1, sc1, w2, *, hout, wout, out_dtype):
    n, _, _, cp = c1.shape
    m = hout * wout
    kernel = functools.partial(_conv2_kernel, hout=hout, wout=wout)
    return pl.pallas_call(
        kernel,
        grid=(n,),
        in_specs=[pl.BlockSpec((1, hout, wout, cp), lambda i: (i, 0, 0, 0)),
                  pl.BlockSpec((2, cp), lambda i: (0, 0)),
                  pl.BlockSpec((9, cp, cp), lambda i: (0, 0, 0))],
        out_specs=[pl.BlockSpec((1, hout, wout, cp), lambda i: (i, 0, 0, 0)),
                   pl.BlockSpec((1, 2, cp), lambda i: (i, 0, 0))],
        out_shape=[jax.ShapeDtypeStruct((n, hout, wout, cp), out_dtype),
                   jax.ShapeDtypeStruct((n, 2, cp), jnp.float32)],
        scratch_shapes=[pltpu.VMEM((hout + 2, wout + 2, cp), jnp.float32),
                        pltpu.VMEM((m, cp), jnp.float32)],
        compiler_params=_parallel_params(),
    )(c1, sc1, w2)


# ---------------------------------------------------------------------------
# Pass 3: BN2 apply + residual (identity bf16 or BN3(downsample)) + ReLU
# ---------------------------------------------------------------------------
def _bn_res_kernel(*refs, planes, with_ds):
    if with_ds:
        c2_ref, sc2_ref, c3_ref, sc3_ref, out_ref = refs
        res_ref = None
    else:
        c2_ref, sc2_ref, res_ref, out_ref = refs
        c3_ref = sc3_ref = None

    cp = c2_ref.shape[-1]

    def bn(v_ref, sc_ref):
        scale = sc_ref[pl.ds(0, 1), :].reshape(1, 1, cp)
        shift = sc_ref[pl.ds(1, 1), :].reshape(1, 1, cp)
        return v_ref[0].astype(jnp.float32) * scale + shift

    y = bn(c2_ref, sc2_ref)
    if with_ds:
        r = bn(c3_ref, sc3_ref)
        z = y[..., :planes] + r[..., :planes]
    else:
        z = y[..., :planes] + res_ref[0].astype(jnp.float32)
    out_ref[0] = jnp.maximum(z, 0.0).astype(out_ref.dtype)


def _bn_residual_pass(c2, sc2, res, sc3, *, planes, hout, wout, with_ds):
    n, _, _, cp = c2.shape
    kernel = functools.partial(_bn_res_kernel, planes=planes, with_ds=with_ds)
    in_specs = [pl.BlockSpec((1, hout, wout, cp), lambda i: (i, 0, 0, 0)),
                pl.BlockSpec((2, cp), lambda i: (0, 0))]
    args = [c2, sc2]
    if with_ds:
        in_specs += [pl.BlockSpec((1, hout, wout, cp), lambda i: (i, 0, 0, 0)),
                     pl.BlockSpec((2, cp), lambda i: (0, 0))]
        args += [res, sc3]
    else:
        cres = res.shape[-1]
        in_specs.append(pl.BlockSpec((1, hout, wout, cres), lambda i: (i, 0, 0, 0)))
        args.append(res)
    return pl.pallas_call(
        kernel,
        grid=(n,),
        in_specs=in_specs,
        out_specs=pl.BlockSpec((1, hout, wout, planes), lambda i: (i, 0, 0, 0)),
        out_shape=jax.ShapeDtypeStruct((n, hout, wout, planes), jnp.float32),
        compiler_params=_parallel_params(),
    )(*args)


# ---------------------------------------------------------------------------
# Host-side glue: BN scale/shift from stats, parameter init / packing
# ---------------------------------------------------------------------------
def _bn_scale_shift(stats, count, gamma, beta, eps=_BN_EPS):
    mean = stats[0] / count
    var = jnp.maximum(stats[1] / count - mean * mean, 0.0)
    scale = gamma * jax.lax.rsqrt(var + eps)
    shift = beta - mean * scale
    return jnp.stack([scale, shift], axis=0).astype(jnp.float32)   # (2, Cp)


def init_basic_block_params(key, in_planes, planes, stride):
    k1, k2, k3 = jax.random.split(key, 3)
    params = {
        "conv1_w": 0.1 * jax.random.normal(k1, (planes, in_planes, 3, 3), jnp.float32),
        "bn1_gamma": jnp.ones((planes,), jnp.float32),
        "bn1_beta": jnp.zeros((planes,), jnp.float32),
        "conv2_w": 0.1 * jax.random.normal(k2, (planes, planes, 3, 3), jnp.float32),
        "bn2_gamma": jnp.ones((planes,), jnp.float32),
        "bn2_beta": jnp.zeros((planes,), jnp.float32),
    }
    if stride != 1 or in_planes != planes:
        params["conv3_w"] = 0.1 * jax.random.normal(
            k3, (planes, in_planes, 1, 1), jnp.float32)
        params["bn3_gamma"] = jnp.ones((planes,), jnp.float32)
        params["bn3_beta"] = jnp.zeros((planes,), jnp.float32)
    return params


def _pack_3x3(w_oihw, cin_pad, cout_pad, dtype):
    cout, cin = w_oihw.shape[:2]
    mats = [jnp.pad(w_oihw[:, :, di, dj].T,
                    ((0, cin_pad - cin), (0, cout_pad - cout)))
            for (di, dj) in _TAPS3]
    return jnp.stack(mats, axis=0).astype(dtype)        # (9, cin_pad, cout_pad)


def pack_basic_block_params(params, *, compute_dtype=jnp.bfloat16):
    """Precompute lane-padded weight matrices / gamma-beta once (hoisted out of fwd)."""
    planes, in_planes = params["conv1_w"].shape[:2]
    cin_p = max(8, _round_up(in_planes, 8))
    cp = _round_up(planes, 128)

    def pad_c(v):
        return jnp.pad(v.astype(jnp.float32), (0, cp - planes))

    packed = {
        "w1": _pack_3x3(params["conv1_w"], cin_p, cp, compute_dtype),
        "w2": _pack_3x3(params["conv2_w"], cp, cp, compute_dtype),
        "bn1_g": pad_c(params["bn1_gamma"]), "bn1_b": pad_c(params["bn1_beta"]),
        "bn2_g": pad_c(params["bn2_gamma"]), "bn2_b": pad_c(params["bn2_beta"]),
    }
    if "conv3_w" in params:
        wd = params["conv3_w"][:, :, 0, 0].T             # (in_planes, planes)
        packed["wd"] = jnp.pad(
            wd, ((0, cin_p - in_planes), (0, cp - planes))).astype(compute_dtype)
        packed["bn3_g"] = pad_c(params["bn3_gamma"])
        packed["bn3_b"] = pad_c(params["bn3_beta"])
    return packed


# ---------------------------------------------------------------------------
# BasicBlock forward
# ---------------------------------------------------------------------------
def basic_block_forward(packed, x_nchw, *, stride, in_planes, planes,
                        compute_dtype=jnp.bfloat16):
    assert stride in (1, 2), "ResNet BasicBlock uses stride 1 or 2"
    has_ds = (stride != 1) or (in_planes != planes)

    x = jnp.transpose(x_nchw, (0, 2, 3, 1)).astype(jnp.float32)   # NCHW -> NHWC
    n, h, w, cin = x.shape
    cin_p = max(8, _round_up(cin, 8))
    hout = (h - 1) // stride + 1
    wout = (w - 1) // stride + 1

    # Padded bf16 input slab (read from HBM exactly once, by pass 1).
    xpad = jnp.pad(x, ((0, 0), (1, 1), (1, 1), (0, cin_p - cin))).astype(compute_dtype)
    if stride == 1:
        xin = xpad                                       # (N, H+2, W+2, Cin_p)
        phases = 1
        taps = tuple((0, di, dj) for (di, dj) in _TAPS3)
    else:
        # 2x2 phase decomposition so every strided tap window is a contiguous slice.
        hp, wp = h + 2, w + 2
        hp2, wp2 = _round_up(hp, 2), _round_up(wp, 2)
        xpad = jnp.pad(xpad, ((0, 0), (0, hp2 - hp), (0, wp2 - wp), (0, 0)))
        xin = xpad.reshape(n, hp2 // 2, 2, wp2 // 2, 2, cin_p)
        xin = jnp.transpose(xin, (0, 2, 4, 1, 3, 5))
        xin = xin.reshape(n * 4, hp2 // 2, wp2 // 2, cin_p)
        phases = 4
        taps = tuple(((di % 2) * 2 + (dj % 2), di // 2, dj // 2)
                     for (di, dj) in _TAPS3)

    # --- pass 1: conv1 (+ fused 1x1 downsample) + per-image BN partial stats ---
    outs = _conv1_pass(xin, packed["w1"],
                       packed["wd"] if has_ds else None,
                       taps=taps, phases=phases, hout=hout, wout=wout,
                       out_dtype=compute_dtype)
    if has_ds:
        c1, s1, c3, s3 = outs
    else:
        c1, s1 = outs

    count = n * hout * wout
    sc1 = _bn_scale_shift(s1.sum(axis=0), count, packed["bn1_g"], packed["bn1_b"])

    # --- pass 2: fused BN1+ReLU prologue, conv2 + partial stats ----------------
    c2, s2 = _conv2_pass(c1, sc1, packed["w2"], hout=hout, wout=wout,
                         out_dtype=compute_dtype)
    sc2 = _bn_scale_shift(s2.sum(axis=0), count, packed["bn2_g"], packed["bn2_b"])

    # --- pass 3: BN2 + residual (+BN3) + ReLU ---------------------------------
    if has_ds:
        sc3 = _bn_scale_shift(s3.sum(axis=0), count, packed["bn3_g"], packed["bn3_b"])
        out = _bn_residual_pass(c2, sc2, c3, sc3, planes=planes,
                                hout=hout, wout=wout, with_ds=True)
    else:
        res = x.astype(compute_dtype)          # natural-width bf16 identity residual
        out = _bn_residual_pass(c2, sc2, res, None, planes=planes,
                                hout=hout, wout=wout, with_ds=False)
    return jnp.transpose(out, (0, 3, 1, 2))    # NHWC -> NCHW


# ---------------------------------------------------------------------------
# Pure-JAX reference (correctness check)
# ---------------------------------------------------------------------------
def _ref_conv(x, w, stride, padding):
    return jax.lax.conv_general_dilated(
        x, w, (stride, stride), [(padding, padding), (padding, padding)],
        dimension_numbers=("NCHW", "OIHW", "NCHW"))


def _ref_bn(x, gamma, beta, eps=_BN_EPS):
    mean = jnp.mean(x, axis=(0, 2, 3), keepdims=True)
    var = jnp.mean((x - mean) ** 2, axis=(0, 2, 3), keepdims=True)
    return ((x - mean) * jax.lax.rsqrt(var + eps)
            * gamma.reshape(1, -1, 1, 1) + beta.reshape(1, -1, 1, 1))


def basic_block_ref(params, x, stride):
    out = jax.nn.relu(_ref_bn(_ref_conv(x, params["conv1_w"], stride, 1),
                              params["bn1_gamma"], params["bn1_beta"]))
    out = _ref_bn(_ref_conv(out, params["conv2_w"], 1, 1),
                  params["bn2_gamma"], params["bn2_beta"])
    if "conv3_w" in params:
        residual = _ref_bn(_ref_conv(x, params["conv3_w"], stride, 0),
                           params["bn3_gamma"], params["bn3_beta"])
    else:
        residual = x
    return jax.nn.relu(out + residual)


if __name__ == "__main__":
    fwd = jax.jit(basic_block_forward,
                  static_argnames=("stride", "in_planes", "planes"))

    # Case 1: downsample path (stride=2, in_planes != planes)
    in_planes, planes, stride = 4, 8, 2
    key = jax.random.PRNGKey(0)
    kx, kp, kx2, kp2 = jax.random.split(key, 4)
    x = jax.random.normal(kx, (2, in_planes, 16, 16), jnp.float32)     # NCHW
    params = init_basic_block_params(kp, in_planes, planes, stride)
    packed = pack_basic_block_params(params)

    out = jax.block_until_ready(
        fwd(packed, x, stride=stride, in_planes=in_planes, planes=planes))
    ref = jax.block_until_ready(basic_block_ref(params, x, stride))
    np.testing.assert_allclose(np.asarray(out), np.asarray(ref), rtol=3e-2, atol=3e-2)
    assert out.shape == (2, planes, 8, 8)

    # Case 2: identity residual path (stride=1, in_planes == planes)
    x2 = jax.random.normal(kx2, (2, 8, 8, 8), jnp.float32)
    params2 = init_basic_block_params(kp2, 8, 8, 1)
    packed2 = pack_basic_block_params(params2)
    out2 = jax.block_until_ready(
        fwd(packed2, x2, stride=1, in_planes=8, planes=8))
    ref2 = jax.block_until_ready(basic_block_ref(params2, x2, 1))
    np.testing.assert_allclose(np.asarray(out2), np.asarray(ref2), rtol=3e-2, atol=3e-2)
    assert out2.shape == (2, 8, 8, 8)

    print("KERNEL_OK")
</pallas_src>

<mosaic_0001>
module attributes {stable_mosaic.version = 11 : i64} {
  func.func @_conv1_kernel(%arg0: i32, %arg1: memref<4x9x9x8xbf16, #tpu.memory_space<vmem>>, %arg2: memref<9x8x128xbf16, #tpu.memory_space<vmem>>, %arg3: memref<8x128xbf16, #tpu.memory_space<vmem>>, %arg4: memref<1x8x8x128xbf16, #tpu.memory_space<vmem>>, %arg5: memref<1x2x128xf32, #tpu.memory_space<vmem>>, %arg6: memref<1x8x8x128xbf16, #tpu.memory_space<vmem>>, %arg7: memref<1x2x128xf32, #tpu.memory_space<vmem>>, %arg8: memref<64x128xf32, #tpu.memory_space<vmem>>) attributes {dimension_semantics = [#tpu.dimension_semantics<parallel>], iteration_bounds = array<i64: 2>, scalar_prefetch = 0 : i64, scratch_operands = 1 : i64, tpu.core_type = #tpu.core_type<tc>, window_params = [{transform_indices = @transform_0, window_bounds = array<i64: 4, 9, 9, 8>}, {pipeline_mode = #tpu.pipeline_mode<synchronous>, transform_indices = @transform_1, window_bounds = array<i64: 9, 8, 128>}, {pipeline_mode = #tpu.pipeline_mode<synchronous>, transform_indices = @transform_2, window_bounds = array<i64: 8, 128>}, {transform_indices = @transform_3, window_bounds = array<i64: 1, 8, 8, 128>}, {transform_indices = @transform_4, window_bounds = array<i64: 1, 2, 128>}, {transform_indices = @transform_5, window_bounds = array<i64: 1, 8, 8, 128>}, {transform_indices = @transform_6, window_bounds = array<i64: 1, 2, 128>}]} {
    %c0 = arith.constant 0 : index
    %c0_0 = arith.constant 0 : index
    %c0_1 = arith.constant 0 : index
    %c0_2 = arith.constant 0 : index
    %0 = vector.load %arg1[%c0, %c0_0, %c0_1, %c0_2] : memref<4x9x9x8xbf16, #tpu.memory_space<vmem>>, vector<4x9x9x8xbf16>
    %1 = arith.extf %0 : vector<4x9x9x8xbf16> to vector<4x9x9x8xf32>
    %cst = arith.constant 0.000000e+00 : f32
    %2 = vector.broadcast %cst : f32 to vector<64x128xf32>
    %c0_3 = arith.constant 0 : index
    %c0_4 = arith.constant 0 : index
    %3 = vector.load %arg8[%c0_3, %c0_4] : memref<64x128xf32, #tpu.memory_space<vmem>>, vector<64x128xf32>
    tpu.vector_store %arg8[%c0_3, %c0_4], %2 {strides = array<i32>} : memref<64x128xf32, #tpu.memory_space<vmem>>, vector<64x128xf32>,
    %4 = vector.extract_strided_slice %1 {offsets = [0, 0, 0, 0], sizes = [1, 8, 8, 8], strides = [1, 1, 1, 1]} : vector<4x9x9x8xf32> to vector<1x8x8x8xf32>
    %5 = vector.shape_cast %4 : vector<1x8x8x8xf32> to vector<8x8x8xf32>
    %6 = vector.shape_cast %5 : vector<8x8x8xf32> to vector<64x8xf32>
    %7 = arith.truncf %6 : vector<64x8xf32> to vector<64x8xbf16>
    %c0_5 = arith.constant 0 : index
    %c0_6 = arith.constant 0 : index
    %8 = vector.load %arg8[%c0_5, %c0_6] : memref<64x128xf32, #tpu.memory_space<vmem>>, vector<64x128xf32>
    %c0_7 = arith.constant 0 : index
    %c0_8 = arith.constant 0 : index
    %c0_9 = arith.constant 0 : index
    %9 = vector.load %arg2[%c0_7, %c0_8, %c0_9] : memref<9x8x128xbf16, #tpu.memory_space<vmem>>, vector<1x8x128xbf16>
    %10 = vector.shape_cast %9 : vector<1x8x128xbf16> to vector<8x128xbf16>
    %cst_10 = arith.constant dense<0.000000e+00> : vector<64x128xf32>
    %11 = tpu.matmul %7, %10, %cst_10 {dimension_numbers = #tpu.dot_dimension_numbers<[1], [0], [0], [1], [0, 0, 1, 1], [], []>} : vector<64x8xbf16>, vector<8x128xbf16>, vector<64x128xf32> -> vector<64x128xf32>
    %12 = arith.addf %8, %11 : vector<64x128xf32>
    %c0_11 = arith.constant 0 : index
    %c0_12 = arith.constant 0 : index
    %13 = vector.load %arg8[%c0_11, %c0_12] : memref<64x128xf32, #tpu.memory_space<vmem>>, vector<64x128xf32>
    tpu.vector_store %arg8[%c0_11, %c0_12], %12 {strides = array<i32>} : memref<64x128xf32, #tpu.memory_space<vmem>>, vector<64x128xf32>,
    %14 = vector.extract_strided_slice %1 {offsets = [1, 0, 0, 0], sizes = [1, 8, 8, 8], strides = [1, 1, 1, 1]} : vector<4x9x9x8xf32> to vector<1x8x8x8xf32>
    %15 = vector.shape_cast %14 : vector<1x8x8x8xf32> to vector<8x8x8xf32>
    %16 = vector.shape_cast %15 : vector<8x8x8xf32> to vector<64x8xf32>
    %17 = arith.truncf %16 : vector<64x8xf32> to vector<64x8xbf16>
    %c0_13 = arith.constant 0 : index
    %c0_14 = arith.constant 0 : index
    %18 = vector.load %arg8[%c0_13, %c0_14] : memref<64x128xf32, #tpu.memory_space<vmem>>, vector<64x128xf32>
    %c1 = arith.constant 1 : index
    %c0_15 = arith.constant 0 : index
    %c0_16 = arith.constant 0 : index
    %19 = vector.load %arg2[%c1, %c0_15, %c0_16] : memref<9x8x128xbf16, #tpu.memory_space<vmem>>, vector<1x8x128xbf16>
    %20 = vector.shape_cast %19 : vector<1x8x128xbf16> to vector<8x128xbf16>
    %cst_17 = arith.constant dense<0.000000e+00> : vector<64x128xf32>
    %21 = tpu.matmul %17, %20, %cst_17 {dimension_numbers = #tpu.dot_dimension_numbers<[1], [0], [0], [1], [0, 0, 1, 1], [], []>} : vector<64x8xbf16>, vector<8x128xbf16>, vector<64x128xf32> -> vector<64x128xf32>
    %22 = arith.addf %18, %21 : vector<64x128xf32>
    %c0_18 = arith.constant 0 : index
    %c0_19 = arith.constant 0 : index
    %23 = vector.load %arg8[%c0_18, %c0_19] : memref<64x128xf32, #tpu.memory_space<vmem>>, vector<64x128xf32>
    tpu.vector_store %arg8[%c0_18, %c0_19], %22 {strides = array<i32>} : memref<64x128xf32, #tpu.memory_space<vmem>>, vector<64x128xf32>,
    %24 = vector.extract_strided_slice %1 {offsets = [0, 0, 1, 0], sizes = [1, 8, 8, 8], strides = [1, 1, 1, 1]} : vector<4x9x9x8xf32> to vector<1x8x8x8xf32>
    %25 = vector.shape_cast %24 : vector<1x8x8x8xf32> to vector<8x8x8xf32>
    %26 = vector.shape_cast %25 : vector<8x8x8xf32> to vector<64x8xf32>
    %27 = arith.truncf %26 : vector<64x8xf32> to vector<64x8xbf16>
    %c0_20 = arith.constant 0 : index
    %c0_21 = arith.constant 0 : index
    %28 = vector.load %arg8[%c0_20, %c0_21] : memref<64x128xf32, #tpu.memory_space<vmem>>, vector<64x128xf32>
    %c2 = arith.constant 2 : index
    %c0_22 = arith.constant 0 : index
    %c0_23 = arith.constant 0 : index
    %29 = vector.load %arg2[%c2, %c0_22, %c0_23] : memref<9x8x128xbf16, #tpu.memory_space<vmem>>, vector<1x8x128xbf16>
    %30 = vector.shape_cast %29 : vector<1x8x128xbf16> to vector<8x128xbf16>
    %cst_24 = arith.constant dense<0.000000e+00> : vector<64x128xf32>
    %31 = tpu.matmul %27, %30, %cst_24 {dimension_numbers = #tpu.dot_dimension_numbers<[1], [0], [0], [1], [0, 0, 1, 1], [], []>} : vector<64x8xbf16>, vector<8x128xbf16>, vector<64x128xf32> -> vector<64x128xf32>
    %32 = arith.addf %28, %31 : vector<64x128xf32>
    %c0_25 = arith.constant 0 : index
    %c0_26 = arith.constant 0 : index
    %33 = vector.load %arg8[%c0_25, %c0_26] : memref<64x128xf32, #tpu.memory_space<vmem>>, vector<64x128xf32>
    tpu.vector_store %arg8[%c0_25, %c0_26], %32 {strides = array<i32>} : memref<64x128xf32, #tpu.memory_space<vmem>>, vector<64x128xf32>,
    %34 = vector.extract_strided_slice %1 {offsets = [2, 0, 0, 0], sizes = [1, 8, 8, 8], strides = [1, 1, 1, 1]} : vector<4x9x9x8xf32> to vector<1x8x8x8xf32>
    %35 = vector.shape_cast %34 : vector<1x8x8x8xf32> to vector<8x8x8xf32>
    %36 = vector.shape_cast %35 : vector<8x8x8xf32> to vector<64x8xf32>
    %37 = arith.truncf %36 : vector<64x8xf32> to vector<64x8xbf16>
    %c0_27 = arith.constant 0 : index
    %c0_28 = arith.constant 0 : index
    %38 = vector.load %arg8[%c0_27, %c0_28] : memref<64x128xf32, #tpu.memory_space<vmem>>, vector<64x128xf32>
    %c3 = arith.constant 3 : index
    %c0_29 = arith.constant 0 : index
    %c0_30 = arith.constant 0 : index
    %39 = vector.load %arg2[%c3, %c0_29, %c0_30] : memref<9x8x128xbf16, #tpu.memory_space<vmem>>, vector<1x8x128xbf16>
    %40 = vector.shape_cast %39 : vector<1x8x128xbf16> to vector<8x128xbf16>
    %cst_31 = arith.constant dense<0.000000e+00> : vector<64x128xf32>
    %41 = tpu.matmul %37, %40, %cst_31 {dimension_numbers = #tpu.dot_dimension_numbers<[1], [0], [0], [1], [0, 0, 1, 1], [], []>} : vector<64x8xbf16>, vector<8x128xbf16>, vector<64x128xf32> -> vector<64x128xf32>
    %42 = arith.addf %38, %41 : vector<64x128xf32>
    %c0_32 = arith.constant 0 : index
    %c0_33 = arith.constant 0 : index
    %43 = vector.load %arg8[%c0_32, %c0_33] : memref<64x128xf32, #tpu.memory_space<vmem>>, vector<64x128xf32>
    tpu.vector_store %arg8[%c0_32, %c0_33], %42 {strides = array<i32>} : memref<64x128xf32, #tpu.memory_space<vmem>>, vector<64x128xf32>,
    %44 = vector.extract_strided_slice %1 {offsets = [3, 0, 0, 0], sizes = [1, 8, 8, 8], strides = [1, 1, 1, 1]} : vector<4x9x9x8xf32> to vector<1x8x8x8xf32>
    %45 = vector.shape_cast %44 : vector<1x8x8x8xf32> to vector<8x8x8xf32>
    %46 = vector.shape_cast %45 : vector<8x8x8xf32> to vector<64x8xf32>
    %47 = arith.truncf %46 : vector<64x8xf32> to vector<64x8xbf16>
    %c0_34 = arith.constant 0 : index
    %c0_35 = arith.constant 0 : index
    %48 = vector.load %arg8[%c0_34, %c0_35] : memref<64x128xf32, #tpu.memory_space<vmem>>, vector<64x128xf32>
    %c4 = arith.constant 4 : index
    %c0_36 = arith.constant 0 : index
    %c0_37 = arith.constant 0 : index
    %49 = vector.load %arg2[%c4, %c0_36, %c0_37] : memref<9x8x128xbf16, #tpu.memory_space<vmem>>, vector<1x8x128xbf16>
    %50 = vector.shape_cast %49 : vector<1x8x128xbf16> to vector<8x128xbf16>
    %cst_38 = arith.constant dense<0.000000e+00> : vector<64x128xf32>
    %51 = tpu.matmul %47, %50, %cst_38 {dimension_numbers = #tpu.dot_dimension_numbers<[1], [0], [0], [1], [0, 0, 1, 1], [], []>} : vector<64x8xbf16>, vector<8x128xbf16>, vector<64x128xf32> -> vector<64x128xf32>
    %52 = arith.addf %48, %51 : vector<64x128xf32>
    %c0_39 = arith.constant 0 : index
    %c0_40 = arith.constant 0 : index
    %53 = vector.load %arg8[%c0_39, %c0_40] : memref<64x128xf32, #tpu.memory_space<vmem>>, vector<64x128xf32>
    tpu.vector_store %arg8[%c0_39, %c0_40], %52 {strides = array<i32>} : memref<64x128xf32, #tpu.memory_space<vmem>>, vector<64x128xf32>,
    %c0_41 = arith.constant 0 : index
    %c0_42 = arith.constant 0 : index
    %54 = vector.load %arg3[%c0_41, %c0_42] : memref<8x128xbf16, #tpu.memory_space<vmem>>, vector<8x128xbf16>
    %cst_43 = arith.constant dense<0.000000e+00> : vector<64x128xf32>
    %55 = tpu.matmul %47, %54, %cst_43 {dimension_numbers = #tpu.dot_dimension_numbers<[1], [0], [0], [1], [0, 0, 1, 1], [], []>} : vector<64x8xbf16>, vector<8x128xbf16>, vector<64x128xf32> -> vector<64x128xf32>
    %56 = vector.shape_cast %55 : vector<64x128xf32> to vector<8x8x128xf32>
    %57 = arith.truncf %56 : vector<8x8x128xf32> to vector<8x8x128xbf16>
    %c0_44 = arith.constant 0 : index
    %c0_45 = arith.constant 0 : index
    %c0_46 = arith.constant 0 : index
    %c0_47 = arith.constant 0 : index
    %58 = vector.load %arg6[%c0_44, %c0_45, %c0_46, %c0_47] : memref<1x8x8x128xbf16, #tpu.memory_space<vmem>>, vector<1x8x8x128xbf16>
    %59 = vector.shape_cast %58 : vector<1x8x8x128xbf16> to vector<8x8x128xbf16>
    %60 = vector.shape_cast %57 : vector<8x8x128xbf16> to vector<1x8x8x128xbf16>
    tpu.vector_store %arg6[%c0_44, %c0_45, %c0_46, %c0_47], %60 {strides = array<i32>} : memref<1x8x8x128xbf16, #tpu.memory_space<vmem>>, vector<1x8x8x128xbf16>,
    %cst_48 = arith.constant dense<0.000000e+00> : vector<128xf32>
    %61 = vector.multi_reduction <add>, %55, %cst_48 [0] : vector<64x128xf32> to vector<128xf32>
    %62 = vector.shape_cast %61 : vector<128xf32> to vector<1x128xf32>
    %63 = arith.mulf %55, %55 : vector<64x128xf32>
    %cst_49 = arith.constant dense<0.000000e+00> : vector<128xf32>
    %64 = vector.multi_reduction <add>, %63, %cst_49 [0] : vector<64x128xf32> to vector<128xf32>
    %65 = vector.shape_cast %64 : vector<128xf32> to vector<1x128xf32>
    %66 = tpu.concatenate %62, %65 in 0 : vector<1x128xf32>, vector<1x128xf32> -> vector<2x128xf32>
    %c0_50 = arith.constant 0 : index
    %c0_51 = arith.constant 0 : index
    %c0_52 = arith.constant 0 : index
    %67 = vector.load %arg7[%c0_50, %c0_51, %c0_52] : memref<1x2x128xf32, #tpu.memory_space<vmem>>, vector<1x2x128xf32>
    %68 = vector.shape_cast %67 : vector<1x2x128xf32> to vector<2x128xf32>
    %69 = vector.shape_cast %66 : vector<2x128xf32> to vector<1x2x128xf32>
    tpu.vector_store %arg7[%c0_50, %c0_51, %c0_52], %69 {strides = array<i32>} : memref<1x2x128xf32, #tpu.memory_space<vmem>>, vector<1x2x128xf32>,
    %70 = vector.extract_strided_slice %1 {offsets = [2, 0, 1, 0], sizes = [1, 8, 8, 8], strides = [1, 1, 1, 1]} : vector<4x9x9x8xf32> to vector<1x8x8x8xf32>
    %71 = vector.shape_cast %70 : vector<1x8x8x8xf32> to vector<8x8x8xf32>
    %72 = vector.shape_cast %71 : vector<8x8x8xf32> to vector<64x8xf32>
    %73 = arith.truncf %72 : vector<64x8xf32> to vector<64x8xbf16>
    %c0_53 = arith.constant 0 : index
    %c0_54 = arith.constant 0 : index
    %74 = vector.load %arg8[%c0_53, %c0_54] : memref<64x128xf32, #tpu.memory_space<vmem>>, vector<64x128xf32>
    %c5 = arith.constant 5 : index
    %c0_55 = arith.constant 0 : index
    %c0_56 = arith.constant 0 : index
    %75 = vector.load %arg2[%c5, %c0_55, %c0_56] : memref<9x8x128xbf16, #tpu.memory_space<vmem>>, vector<1x8x128xbf16>
    %76 = vector.shape_cast %75 : vector<1x8x128xbf16> to vector<8x128xbf16>
    %cst_57 = arith.constant dense<0.000000e+00> : vector<64x128xf32>
    %77 = tpu.matmul %73, %76, %cst_57 {dimension_numbers = #tpu.dot_dimension_numbers<[1], [0], [0], [1], [0, 0, 1, 1], [], []>} : vector<64x8xbf16>, vector<8x128xbf16>, vector<64x128xf32> -> vector<64x128xf32>
    %78 = arith.addf %74, %77 : vector<64x128xf32>
    %c0_58 = arith.constant 0 : index
    %c0_59 = arith.constant 0 : index
    %79 = vector.load %arg8[%c0_58, %c0_59] : memref<64x128xf32, #tpu.memory_space<vmem>>, vector<64x128xf32>
    tpu.vector_store %arg8[%c0_58, %c0_59], %78 {strides = array<i32>} : memref<64x128xf32, #tpu.memory_space<vmem>>, vector<64x128xf32>,
    %80 = vector.extract_strided_slice %1 {offsets = [0, 1, 0, 0], sizes = [1, 8, 8, 8], strides = [1, 1, 1, 1]} : vector<4x9x9x8xf32> to vector<1x8x8x8xf32>
    %81 = vector.shape_cast %80 : vector<1x8x8x8xf32> to vector<8x8x8xf32>
    %82 = vector.shape_cast %81 : vector<8x8x8xf32> to vector<64x8xf32>
    %83 = arith.truncf %82 : vector<64x8xf32> to vector<64x8xbf16>
    %c0_60 = arith.constant 0 : index
    %c0_61 = arith.constant 0 : index
    %84 = vector.load %arg8[%c0_60, %c0_61] : memref<64x128xf32, #tpu.memory_space<vmem>>, vector<64x128xf32>
    %c6 = arith.constant 6 : index
    %c0_62 = arith.constant 0 : index
    %c0_63 = arith.constant 0 : index
    %85 = vector.load %arg2[%c6, %c0_62, %c0_63] : memref<9x8x128xbf16, #tpu.memory_space<vmem>>, vector<1x8x128xbf16>
    %86 = vector.shape_cast %85 : vector<1x8x128xbf16> to vector<8x128xbf16>
    %cst_64 = arith.constant dense<0.000000e+00> : vector<64x128xf32>
    %87 = tpu.matmul %83, %86, %cst_64 {dimension_numbers = #tpu.dot_dimension_numbers<[1], [0], [0], [1], [0, 0, 1, 1], [], []>} : vector<64x8xbf16>, vector<8x128xbf16>, vector<64x128xf32> -> vector<64x128xf32>
    %88 = arith.addf %84, %87 : vector<64x128xf32>
    %c0_65 = arith.constant 0 : index
    %c0_66 = arith.constant 0 : index
    %89 = vector.load %arg8[%c0_65, %c0_66] : memref<64x128xf32, #tpu.memory_space<vmem>>, vector<64x128xf32>
    tpu.vector_store %arg8[%c0_65, %c0_66], %88 {strides = array<i32>} : memref<64x128xf32, #tpu.memory_space<vmem>>, vector<64x128xf32>,
    %90 = vector.extract_strided_slice %1 {offsets = [1, 1, 0, 0], sizes = [1, 8, 8, 8], strides = [1, 1, 1, 1]} : vector<4x9x9x8xf32> to vector<1x8x8x8xf32>
    %91 = vector.shape_cast %90 : vector<1x8x8x8xf32> to vector<8x8x8xf32>
    %92 = vector.shape_cast %91 : vector<8x8x8xf32> to vector<64x8xf32>
    %93 = arith.truncf %92 : vector<64x8xf32> to vector<64x8xbf16>
    %c0_67 = arith.constant 0 : index
    %c0_68 = arith.constant 0 : index
    %94 = vector.load %arg8[%c0_67, %c0_68] : memref<64x128xf32, #tpu.memory_space<vmem>>, vector<64x128xf32>
    %c7 = arith.constant 7 : index
    %c0_69 = arith.constant 0 : index
    %c0_70 = arith.constant 0 : index
    %95 = vector.load %arg2[%c7, %c0_69, %c0_70] : memref<9x8x128xbf16, #tpu.memory_space<vmem>>, vector<1x8x128xbf16>
    %96 = vector.shape_cast %95 : vector<1x8x128xbf16> to vector<8x128xbf16>
    %cst_71 = arith.constant dense<0.000000e+00> : vector<64x128xf32>
    %97 = tpu.matmul %93, %96, %cst_71 {dimension_numbers = #tpu.dot_dimension_numbers<[1], [0], [0], [1], [0, 0, 1, 1], [], []>} : vector<64x8xbf16>, vector<8x128xbf16>, vector<64x128xf32> -> vector<64x128xf32>
    %98 = arith.addf %94, %97 : vector<64x128xf32>
    %c0_72 = arith.constant 0 : index
    %c0_73 = arith.constant 0 : index
    %99 = vector.load %arg8[%c0_72, %c0_73] : memref<64x128xf32, #tpu.memory_space<vmem>>, vector<64x128xf32>
    tpu.vector_store %arg8[%c0_72, %c0_73], %98 {strides = array<i32>} : memref<64x128xf32, #tpu.memory_space<vmem>>, vector<64x128xf32>,
    %100 = vector.extract_strided_slice %1 {offsets = [0, 1, 1, 0], sizes = [1, 8, 8, 8], strides = [1, 1, 1, 1]} : vector<4x9x9x8xf32> to vector<1x8x8x8xf32>
    %101 = vector.shape_cast %100 : vector<1x8x8x8xf32> to vector<8x8x8xf32>
    %102 = vector.shape_cast %101 : vector<8x8x8xf32> to vector<64x8xf32>
    %103 = arith.truncf %102 : vector<64x8xf32> to vector<64x8xbf16>
    %c0_74 = arith.constant 0 : index
    %c0_75 = arith.constant 0 : index
    %104 = vector.load %arg8[%c0_74, %c0_75] : memref<64x128xf32, #tpu.memory_space<vmem>>, vector<64x128xf32>
    %c8 = arith.constant 8 : index
    %c0_76 = arith.constant 0 : index
    %c0_77 = arith.constant 0 : index
    %105 = vector.load %arg2[%c8, %c0_76, %c0_77] : memref<9x8x128xbf16, #tpu.memory_space<vmem>>, vector<1x8x128xbf16>
    %106 = vector.shape_cast %105 : vector<1x8x128xbf16> to vector<8x128xbf16>
    %cst_78 = arith.constant dense<0.000000e+00> : vector<64x128xf32>
    %107 = tpu.matmul %103, %106, %cst_78 {dimension_numbers = #tpu.dot_dimension_numbers<[1], [0], [0], [1], [0, 0, 1, 1], [], []>} : vector<64x8xbf16>, vector<8x128xbf16>, vector<64x128xf32> -> vector<64x128xf32>
    %108 = arith.addf %104, %107 : vector<64x128xf32>
    %c0_79 = arith.constant 0 : index
    %c0_80 = arith.constant 0 : index
    %109 = vector.load %arg8[%c0_79, %c0_80] : memref<64x128xf32, #tpu.memory_space<vmem>>, vector<64x128xf32>
    tpu.vector_store %arg8[%c0_79, %c0_80], %108 {strides = array<i32>} : memref<64x128xf32, #tpu.memory_space<vmem>>, vector<64x128xf32>,
    %c0_81 = arith.constant 0 : index
    %c0_82 = arith.constant 0 : index
    %110 = vector.load %arg8[%c0_81, %c0_82] : memref<64x128xf32, #tpu.memory_space<vmem>>, vector<64x128xf32>
    %111 = vector.shape_cast %110 : vector<64x128xf32> to vector<8x8x128xf32>
    %112 = arith.truncf %111 : vector<8x8x128xf32> to vector<8x8x128xbf16>
    %c0_83 = arith.constant 0 : index
    %c0_84 = arith.constant 0 : index
    %c0_85 = arith.constant 0 : index
    %c0_86 = arith.constant 0 : index
    %113 = vector.load %arg4[%c0_83, %c0_84, %c0_85, %c0_86] : memref<1x8x8x128xbf16, #tpu.memory_space<vmem>>, vector<1x8x8x128xbf16>
    %114 = vector.shape_cast %113 : vector<1x8x8x128xbf16> to vector<8x8x128xbf16>
    %115 = vector.shape_cast %112 : vector<8x8x128xbf16> to vector<1x8x8x128xbf16>
    tpu.vector_store %arg4[%c0_83, %c0_84, %c0_85, %c0_86], %115 {strides = array<i32>} : memref<1x8x8x128xbf16, #tpu.memory_space<vmem>>, vector<1x8x8x128xbf16>,
    %cst_87 = arith.constant dense<0.000000e+00> : vector<128xf32>
    %116 = vector.multi_reduction <add>, %110, %cst_87 [0] : vector<64x128xf32> to vector<128xf32>
    %117 = vector.shape_cast %116 : vector<128xf32> to vector<1x128xf32>
    %118 = arith.mulf %110, %110 : vector<64x128xf32>
    %cst_88 = arith.constant dense<0.000000e+00> : vector<128xf32>
    %119 = vector.multi_reduction <add>, %118, %cst_88 [0] : vector<64x128xf32> to vector<128xf32>
    %120 = vector.shape_cast %119 : vector<128xf32> to vector<1x128xf32>
    %121 = tpu.concatenate %117, %120 in 0 : vector<1x128xf32>, vector<1x128xf32> -> vector<2x128xf32>
    %c0_89 = arith.constant 0 : index
    %c0_90 = arith.constant 0 : index
    %c0_91 = arith.constant 0 : index
    %122 = vector.load %arg5[%c0_89, %c0_90, %c0_91] : memref<1x2x128xf32, #tpu.memory_space<vmem>>, vector<1x2x128xf32>
    %123 = vector.shape_cast %122 : vector<1x2x128xf32> to vector<2x128xf32>
    %124 = vector.shape_cast %121 : vector<2x128xf32> to vector<1x2x128xf32>
    tpu.vector_store %arg5[%c0_89, %c0_90, %c0_91], %124 {strides = array<i32>} : memref<1x2x128xf32, #tpu.memory_space<vmem>>, vector<1x2x128xf32>,
    return
  }
  func.func @transform_0(%arg0: i32) -> (i32, i32, i32, i32) {
    %c0_i32 = arith.constant 0 : i32
    %c0_i32_0 = arith.constant 0 : i32
    %c0_i32_1 = arith.constant 0 : i32
    %c0_i32_2 = arith.constant 0 : i32
    return %arg0, %c0_i32, %c0_i32_0, %c0_i32_1 : i32, i32, i32, i32
  }
  func.func @transform_1(%arg0: i32) -> (i32, i32, i32) {
    %c0_i32 = arith.constant 0 : i32
    %c0_i32_0 = arith.constant 0 : i32
    %c0_i32_1 = arith.constant 0 : i32
    %c0_i32_2 = arith.constant 0 : i32
    return %c0_i32, %c0_i32_0, %c0_i32_1 : i32, i32, i32
  }
  func.func @transform_2(%arg0: i32) -> (i32, i32) {
    %c0_i32 = arith.constant 0 : i32
    %c0_i32_0 = arith.constant 0 : i32
    %c0_i32_1 = arith.constant 0 : i32
    return %c0_i32, %c0_i32_0 : i32, i32
  }
  func.func @transform_3(%arg0: i32) -> (i32, i32, i32, i32) {
    %c0_i32 = arith.constant 0 : i32
    %c0_i32_0 = arith.constant 0 : i32
    %c0_i32_1 = arith.constant 0 : i32
    %c0_i32_2 = arith.constant 0 : i32
    return %arg0, %c0_i32, %c0_i32_0, %c0_i32_1 : i32, i32, i32, i32
  }
  func.func @transform_4(%arg0: i32) -> (i32, i32, i32) {
    %c0_i32 = arith.constant 0 : i32
    %c0_i32_0 = arith.constant 0 : i32
    %c0_i32_1 = arith.constant 0 : i32
    return %arg0, %c0_i32, %c0_i32_0 : i32, i32, i32
  }
  func.func @transform_5(%arg0: i32) -> (i32, i32, i32, i32) {
    %c0_i32 = arith.constant 0 : i32
    %c0_i32_0 = arith.constant 0 : i32
    %c0_i32_1 = arith.constant 0 : i32
    %c0_i32_2 = arith.constant 0 : i32
    return %arg0, %c0_i32, %c0_i32_0, %c0_i32_1 : i32, i32, i32, i32
  }
  func.func @transform_6(%arg0: i32) -> (i32, i32, i32) {
    %c0_i32 = arith.constant 0 : i32
    %c0_i32_0 = arith.constant 0 : i32
    %c0_i32_1 = arith.constant 0 : i32
    return %arg0, %c0_i32, %c0_i32_0 : i32, i32, i32
  }
}

module attributes {stable_mosaic.version = 11 : i64} {
  func.func @_conv2_kernel(%arg0: i32, %arg1: memref<1x8x8x128xbf16, #tpu.memory_space<vmem>>, %arg2: memref<2x128xf32, #tpu.memory_space<vmem>>, %arg3: memref<9x128x128xbf16, #tpu.memory_space<vmem>>, %arg4: memref<1x8x8x128xbf16, #tpu.memory_space<vmem>>, %arg5: memref<1x2x128xf32, #tpu.memory_space<vmem>>, %arg6: memref<10x10x128xf32, #tpu.memory_space<vmem>>, %arg7: memref<64x128xf32, #tpu.memory_space<vmem>>) attributes {dimension_semantics = [#tpu.dimension_semantics<parallel>], iteration_bounds = array<i64: 2>, scalar_prefetch = 0 : i64, scratch_operands = 2 : i64, tpu.core_type = #tpu.core_type<tc>, window_params = [{transform_indices = @transform_0, window_bounds = array<i64: 1, 8, 8, 128>}, {pipeline_mode = #tpu.pipeline_mode<synchronous>, transform_indices = @transform_1, window_bounds = array<i64: 2, 128>}, {pipeline_mode = #tpu.pipeline_mode<synchronous>, transform_indices = @transform_2, window_bounds = array<i64: 9, 128, 128>}, {transform_indices = @transform_3, window_bounds = array<i64: 1, 8, 8, 128>}, {transform_indices = @transform_4, window_bounds = array<i64: 1, 2, 128>}]} {
    %c0 = arith.constant 0 : index
    %c0_0 = arith.constant 0 : index
    %0 = vector.load %arg2[%c0, %c0_0] : memref<2x128xf32, #tpu.memory_space<vmem>>, vector<1x128xf32>
    %1 = vector.shape_cast %0 : vector<1x128xf32> to vector<1x1x128xf32>
    %c1 = arith.constant 1 : index
    %c0_1 = arith.constant 0 : index
    %2 = vector.load %arg2[%c1, %c0_1] : memref<2x128xf32, #tpu.memory_space<vmem>>, vector<1x128xf32>
    %3 = vector.shape_cast %2 : vector<1x128xf32> to vector<1x1x128xf32>
    %c0_2 = arith.constant 0 : index
    %c0_3 = arith.constant 0 : index
    %c0_4 = arith.constant 0 : index
    %c0_5 = arith.constant 0 : index
    %4 = vector.load %arg1[%c0_2, %c0_3, %c0_4, %c0_5] : memref<1x8x8x128xbf16, #tpu.memory_space<vmem>>, vector<1x8x8x128xbf16>
    %5 = vector.shape_cast %4 : vector<1x8x8x128xbf16> to vector<8x8x128xbf16>
    %6 = arith.extf %5 : vector<8x8x128xbf16> to vector<8x8x128xf32>
    %7 = vector.broadcast %1 : vector<1x1x128xf32> to vector<8x8x128xf32>
    %8 = arith.mulf %6, %7 : vector<8x8x128xf32>
    %9 = vector.broadcast %3 : vector<1x1x128xf32> to vector<8x8x128xf32>
    %10 = arith.addf %8, %9 : vector<8x8x128xf32>
    %cst = arith.constant 0.000000e+00 : f32
    %11 = vector.broadcast %cst : f32 to vector<8x8x128xf32>
    %12 = arith.maximumf %10, %11 : vector<8x8x128xf32>
    %cst_6 = arith.constant 0.000000e+00 : f32
    %13 = vector.broadcast %cst_6 : f32 to vector<10x10x128xf32>
    %c0_7 = arith.constant 0 : index
    %c0_8 = arith.constant 0 : index
    %c0_9 = arith.constant 0 : index
    %14 = vector.load %arg6[%c0_7, %c0_8, %c0_9] : memref<10x10x128xf32, #tpu.memory_space<vmem>>, vector<10x10x128xf32>
    tpu.vector_store %arg6[%c0_7, %c0_8, %c0_9], %13 {strides = array<i32>} : memref<10x10x128xf32, #tpu.memory_space<vmem>>, vector<10x10x128xf32>,
    %c1_10 = arith.constant 1 : index
    %c1_11 = arith.constant 1 : index
    %c0_12 = arith.constant 0 : index
    %15 = vector.load %arg6[%c1_10, %c1_11, %c0_12] : memref<10x10x128xf32, #tpu.memory_space<vmem>>, vector<8x8x128xf32>
    tpu.vector_store %arg6[%c1_10, %c1_11, %c0_12], %12 {strides = array<i32>} : memref<10x10x128xf32, #tpu.memory_space<vmem>>, vector<8x8x128xf32>,
    %cst_13 = arith.constant 0.000000e+00 : f32
    %16 = vector.broadcast %cst_13 : f32 to vector<64x128xf32>
    %c0_14 = arith.constant 0 : index
    %c0_15 = arith.constant 0 : index
    %17 = vector.load %arg7[%c0_14, %c0_15] : memref<64x128xf32, #tpu.memory_space<vmem>>, vector<64x128xf32>
    tpu.vector_store %arg7[%c0_14, %c0_15], %16 {strides = array<i32>} : memref<64x128xf32, #tpu.memory_space<vmem>>, vector<64x128xf32>,
    %c0_16 = arith.constant 0 : index
    %c0_17 = arith.constant 0 : index
    %c0_18 = arith.constant 0 : index
    %18 = vector.load %arg6[%c0_16, %c0_17, %c0_18] : memref<10x10x128xf32, #tpu.memory_space<vmem>>, vector<8x8x128xf32>
    %19 = vector.shape_cast %18 : vector<8x8x128xf32> to vector<64x128xf32>
    %20 = arith.truncf %19 : vector<64x128xf32> to vector<64x128xbf16>
    %c0_19 = arith.constant 0 : index
    %c0_20 = arith.constant 0 : index
    %21 = vector.load %arg7[%c0_19, %c0_20] : memref<64x128xf32, #tpu.memory_space<vmem>>, vector<64x128xf32>
    %c0_21 = arith.constant 0 : index
    %c0_22 = arith.constant 0 : index
    %c0_23 = arith.constant 0 : index
    %22 = vector.load %arg3[%c0_21, %c0_22, %c0_23] : memref<9x128x128xbf16, #tpu.memory_space<vmem>>, vector<1x128x128xbf16>
    %23 = vector.shape_cast %22 : vector<1x128x128xbf16> to vector<128x128xbf16>
    %cst_24 = arith.constant dense<0.000000e+00> : vector<64x128xf32>
    %24 = tpu.matmul %20, %23, %cst_24 {dimension_numbers = #tpu.dot_dimension_numbers<[1], [0], [0], [1], [0, 0, 1, 1], [], []>} : vector<64x128xbf16>, vector<128x128xbf16>, vector<64x128xf32> -> vector<64x128xf32>
    %25 = arith.addf %21, %24 : vector<64x128xf32>
    %c0_25 = arith.constant 0 : index
    %c0_26 = arith.constant 0 : index
    %26 = vector.load %arg7[%c0_25, %c0_26] : memref<64x128xf32, #tpu.memory_space<vmem>>, vector<64x128xf32>
    tpu.vector_store %arg7[%c0_25, %c0_26], %25 {strides = array<i32>} : memref<64x128xf32, #tpu.memory_space<vmem>>, vector<64x128xf32>,
    %c0_27 = arith.constant 0 : index
    %c1_28 = arith.constant 1 : index
    %c0_29 = arith.constant 0 : index
    %27 = vector.load %arg6[%c0_27, %c1_28, %c0_29] : memref<10x10x128xf32, #tpu.memory_space<vmem>>, vector<8x8x128xf32>
    %28 = vector.shape_cast %27 : vector<8x8x128xf32> to vector<64x128xf32>
    %29 = arith.truncf %28 : vector<64x128xf32> to vector<64x128xbf16>
    %c0_30 = arith.constant 0 : index
    %c0_31 = arith.constant 0 : index
    %30 = vector.load %arg7[%c0_30, %c0_31] : memref<64x128xf32, #tpu.memory_space<vmem>>, vector<64x128xf32>
    %c1_32 = arith.constant 1 : index
    %c0_33 = arith.constant 0 : index
    %c0_34 = arith.constant 0 : index
    %31 = vector.load %arg3[%c1_32, %c0_33, %c0_34] : memref<9x128x128xbf16, #tpu.memory_space<vmem>>, vector<1x128x128xbf16>
    %32 = vector.shape_cast %31 : vector<1x128x128xbf16> to vector<128x128xbf16>
    %cst_35 = arith.constant dense<0.000000e+00> : vector<64x128xf32>
    %33 = tpu.matmul %29, %32, %cst_35 {dimension_numbers = #tpu.dot_dimension_numbers<[1], [0], [0], [1], [0, 0, 1, 1], [], []>} : vector<64x128xbf16>, vector<128x128xbf16>, vector<64x128xf32> -> vector<64x128xf32>
    %34 = arith.addf %30, %33 : vector<64x128xf32>
    %c0_36 = arith.constant 0 : index
    %c0_37 = arith.constant 0 : index
    %35 = vector.load %arg7[%c0_36, %c0_37] : memref<64x128xf32, #tpu.memory_space<vmem>>, vector<64x128xf32>
    tpu.vector_store %arg7[%c0_36, %c0_37], %34 {strides = array<i32>} : memref<64x128xf32, #tpu.memory_space<vmem>>, vector<64x128xf32>,
    %c0_38 = arith.constant 0 : index
    %c2 = arith.constant 2 : index
    %c0_39 = arith.constant 0 : index
    %36 = vector.load %arg6[%c0_38, %c2, %c0_39] : memref<10x10x128xf32, #tpu.memory_space<vmem>>, vector<8x8x128xf32>
    %37 = vector.shape_cast %36 : vector<8x8x128xf32> to vector<64x128xf32>
    %38 = arith.truncf %37 : vector<64x128xf32> to vector<64x128xbf16>
    %c0_40 = arith.constant 0 : index
    %c0_41 = arith.constant 0 : index
    %39 = vector.load %arg7[%c0_40, %c0_41] : memref<64x128xf32, #tpu.memory_space<vmem>>, vector<64x128xf32>
    %c2_42 = arith.constant 2 : index
    %c0_43 = arith.constant 0 : index
    %c0_44 = arith.constant 0 : index
    %40 = vector.load %arg3[%c2_42, %c0_43, %c0_44] : memref<9x128x128xbf16, #tpu.memory_space<vmem>>, vector<1x128x128xbf16>
    %41 = vector.shape_cast %40 : vector<1x128x128xbf16> to vector<128x128xbf16>
    %cst_45 = arith.constant dense<0.000000e+00> : vector<64x128xf32>
    %42 = tpu.matmul %38, %41, %cst_45 {dimension_numbers = #tpu.dot_dimension_numbers<[1], [0], [0], [1], [0, 0, 1, 1], [], []>} : vector<64x128xbf16>, vector<128x128xbf16>, vector<64x128xf32> -> vector<64x128xf32>
    %43 = arith.addf %39, %42 : vector<64x128xf32>
    %c0_46 = arith.constant 0 : index
    %c0_47 = arith.constant 0 : index
    %44 = vector.load %arg7[%c0_46, %c0_47] : memref<64x128xf32, #tpu.memory_space<vmem>>, vector<64x128xf32>
    tpu.vector_store %arg7[%c0_46, %c0_47], %43 {strides = array<i32>} : memref<64x128xf32, #tpu.memory_space<vmem>>, vector<64x128xf32>,
    %c1_48 = arith.constant 1 : index
    %c0_49 = arith.constant 0 : index
    %c0_50 = arith.constant 0 : index
    %45 = vector.load %arg6[%c1_48, %c0_49, %c0_50] : memref<10x10x128xf32, #tpu.memory_space<vmem>>, vector<8x8x128xf32>
    %46 = vector.shape_cast %45 : vector<8x8x128xf32> to vector<64x128xf32>
    %47 = arith.truncf %46 : vector<64x128xf32> to vector<64x128xbf16>
    %c0_51 = arith.constant 0 : index
    %c0_52 = arith.constant 0 : index
    %48 = vector.load %arg7[%c0_51, %c0_52] : memref<64x128xf32, #tpu.memory_space<vmem>>, vector<64x128xf32>
    %c3 = arith.constant 3 : index
    %c0_53 = arith.constant 0 : index
    %c0_54 = arith.constant 0 : index
    %49 = vector.load %arg3[%c3, %c0_53, %c0_54] : memref<9x128x128xbf16, #tpu.memory_space<vmem>>, vector<1x128x128xbf16>
    %50 = vector.shape_cast %49 : vector<1x128x128xbf16> to vector<128x128xbf16>
    %cst_55 = arith.constant dense<0.000000e+00> : vector<64x128xf32>
    %51 = tpu.matmul %47, %50, %cst_55 {dimension_numbers = #tpu.dot_dimension_numbers<[1], [0], [0], [1], [0, 0, 1, 1], [], []>} : vector<64x128xbf16>, vector<128x128xbf16>, vector<64x128xf32> -> vector<64x128xf32>
    %52 = arith.addf %48, %51 : vector<64x128xf32>
    %c0_56 = arith.constant 0 : index
    %c0_57 = arith.constant 0 : index
    %53 = vector.load %arg7[%c0_56, %c0_57] : memref<64x128xf32, #tpu.memory_space<vmem>>, vector<64x128xf32>
    tpu.vector_store %arg7[%c0_56, %c0_57], %52 {strides = array<i32>} : memref<64x128xf32, #tpu.memory_space<vmem>>, vector<64x128xf32>,
    %c1_58 = arith.constant 1 : index
    %c1_59 = arith.constant 1 : index
    %c0_60 = arith.constant 0 : index
    %54 = vector.load %arg6[%c1_58, %c1_59, %c0_60] : memref<10x10x128xf32, #tpu.memory_space<vmem>>, vector<8x8x128xf32>
    %55 = vector.shape_cast %54 : vector<8x8x128xf32> to vector<64x128xf32>
    %56 = arith.truncf %55 : vector<64x128xf32> to vector<64x128xbf16>
    %c0_61 = arith.constant 0 : index
    %c0_62 = arith.constant 0 : index
    %57 = vector.load %arg7[%c0_61, %c0_62] : memref<64x128xf32, #tpu.memory_space<vmem>>, vector<64x128xf32>
    %c4 = arith.constant 4 : index
    %c0_63 = arith.constant 0 : index
    %c0_64 = arith.constant 0 : index
    %58 = vector.load %arg3[%c4, %c0_63, %c0_64] : memref<9x128x128xbf16, #tpu.memory_space<vmem>>, vector<1x128x128xbf16>
    %59 = vector.shape_cast %58 : vector<1x128x128xbf16> to vector<128x128xbf16>
    %cst_65 = arith.constant dense<0.000000e+00> : vector<64x128xf32>
    %60 = tpu.matmul %56, %59, %cst_65 {dimension_numbers = #tpu.dot_dimension_numbers<[1], [0], [0], [1], [0, 0, 1, 1], [], []>} : vector<64x128xbf16>, vector<128x128xbf16>, vector<64x128xf32> -> vector<64x128xf32>
    %61 = arith.addf %57, %60 : vector<64x128xf32>
    %c0_66 = arith.constant 0 : index
    %c0_67 = arith.constant 0 : index
    %62 = vector.load %arg7[%c0_66, %c0_67] : memref<64x128xf32, #tpu.memory_space<vmem>>, vector<64x128xf32>
    tpu.vector_store %arg7[%c0_66, %c0_67], %61 {strides = array<i32>} : memref<64x128xf32, #tpu.memory_space<vmem>>, vector<64x128xf32>,
    %c1_68 = arith.constant 1 : index
    %c2_69 = arith.constant 2 : index
    %c0_70 = arith.constant 0 : index
    %63 = vector.load %arg6[%c1_68, %c2_69, %c0_70] : memref<10x10x128xf32, #tpu.memory_space<vmem>>, vector<8x8x128xf32>
    %64 = vector.shape_cast %63 : vector<8x8x128xf32> to vector<64x128xf32>
    %65 = arith.truncf %64 : vector<64x128xf32> to vector<64x128xbf16>
    %c0_71 = arith.constant 0 : index
    %c0_72 = arith.constant 0 : index
    %66 = vector.load %arg7[%c0_71, %c0_72] : memref<64x128xf32, #tpu.memory_space<vmem>>, vector<64x128xf32>
    %c5 = arith.constant 5 : index
    %c0_73 = arith.constant 0 : index
    %c0_74 = arith.constant 0 : index
    %67 = vector.load %arg3[%c5, %c0_73, %c0_74] : memref<9x128x128xbf16, #tpu.memory_space<vmem>>, vector<1x128x128xbf16>
    %68 = vector.shape_cast %67 : vector<1x128x128xbf16> to vector<128x128xbf16>
    %cst_75 = arith.constant dense<0.000000e+00> : vector<64x128xf32>
    %69 = tpu.matmul %65, %68, %cst_75 {dimension_numbers = #tpu.dot_dimension_numbers<[1], [0], [0], [1], [0, 0, 1, 1], [], []>} : vector<64x128xbf16>, vector<128x128xbf16>, vector<64x128xf32> -> vector<64x128xf32>
    %70 = arith.addf %66, %69 : vector<64x128xf32>
    %c0_76 = arith.constant 0 : index
    %c0_77 = arith.constant 0 : index
    %71 = vector.load %arg7[%c0_76, %c0_77] : memref<64x128xf32, #tpu.memory_space<vmem>>, vector<64x128xf32>
    tpu.vector_store %arg7[%c0_76, %c0_77], %70 {strides = array<i32>} : memref<64x128xf32, #tpu.memory_space<vmem>>, vector<64x128xf32>,
    %c2_78 = arith.constant 2 : index
    %c0_79 = arith.constant 0 : index
    %c0_80 = arith.constant 0 : index
    %72 = vector.load %arg6[%c2_78, %c0_79, %c0_80] : memref<10x10x128xf32, #tpu.memory_space<vmem>>, vector<8x8x128xf32>
    %73 = vector.shape_cast %72 : vector<8x8x128xf32> to vector<64x128xf32>
    %74 = arith.truncf %73 : vector<64x128xf32> to vector<64x128xbf16>
    %c0_81 = arith.constant 0 : index
    %c0_82 = arith.constant 0 : index
    %75 = vector.load %arg7[%c0_81, %c0_82] : memref<64x128xf32, #tpu.memory_space<vmem>>, vector<64x128xf32>
    %c6 = arith.constant 6 : index
    %c0_83 = arith.constant 0 : index
    %c0_84 = arith.constant 0 : index
    %76 = vector.load %arg3[%c6, %c0_83, %c0_84] : memref<9x128x128xbf16, #tpu.memory_space<vmem>>, vector<1x128x128xbf16>
    %77 = vector.shape_cast %76 : vector<1x128x128xbf16> to vector<128x128xbf16>
    %cst_85 = arith.constant dense<0.000000e+00> : vector<64x128xf32>
    %78 = tpu.matmul %74, %77, %cst_85 {dimension_numbers = #tpu.dot_dimension_numbers<[1], [0], [0], [1], [0, 0, 1, 1], [], []>} : vector<64x128xbf16>, vector<128x128xbf16>, vector<64x128xf32> -> vector<64x128xf32>
    %79 = arith.addf %75, %78 : vector<64x128xf32>
    %c0_86 = arith.constant 0 : index
    %c0_87 = arith.constant 0 : index
    %80 = vector.load %arg7[%c0_86, %c0_87] : memref<64x128xf32, #tpu.memory_space<vmem>>, vector<64x128xf32>
    tpu.vector_store %arg7[%c0_86, %c0_87], %79 {strides = array<i32>} : memref<64x128xf32, #tpu.memory_space<vmem>>, vector<64x128xf32>,
    %c2_88 = arith.constant 2 : index
    %c1_89 = arith.constant 1 : index
    %c0_90 = arith.constant 0 : index
    %81 = vector.load %arg6[%c2_88, %c1_89, %c0_90] : memref<10x10x128xf32, #tpu.memory_space<vmem>>, vector<8x8x128xf32>
    %82 = vector.shape_cast %81 : vector<8x8x128xf32> to vector<64x128xf32>
    %83 = arith.truncf %82 : vector<64x128xf32> to vector<64x128xbf16>
    %c0_91 = arith.constant 0 : index
    %c0_92 = arith.constant 0 : index
    %84 = vector.load %arg7[%c0_91, %c0_92] : memref<64x128xf32, #tpu.memory_space<vmem>>, vector<64x128xf32>
    %c7 = arith.constant 7 : index
    %c0_93 = arith.constant 0 : index
    %c0_94 = arith.constant 0 : index
    %85 = vector.load %arg3[%c7, %c0_93, %c0_94] : memref<9x128x128xbf16, #tpu.memory_space<vmem>>, vector<1x128x128xbf16>
    %86 = vector.shape_cast %85 : vector<1x128x128xbf16> to vector<128x128xbf16>
    %cst_95 = arith.constant dense<0.000000e+00> : vector<64x128xf32>
    %87 = tpu.matmul %83, %86, %cst_95 {dimension_numbers = #tpu.dot_dimension_numbers<[1], [0], [0], [1], [0, 0, 1, 1], [], []>} : vector<64x128xbf16>, vector<128x128xbf16>, vector<64x128xf32> -> vector<64x128xf32>
    %88 = arith.addf %84, %87 : vector<64x128xf32>
    %c0_96 = arith.constant 0 : index
    %c0_97 = arith.constant 0 : index
    %89 = vector.load %arg7[%c0_96, %c0_97] : memref<64x128xf32, #tpu.memory_space<vmem>>, vector<64x128xf32>
    tpu.vector_store %arg7[%c0_96, %c0_97], %88 {strides = array<i32>} : memref<64x128xf32, #tpu.memory_space<vmem>>, vector<64x128xf32>,
    %c2_98 = arith.constant 2 : index
    %c2_99 = arith.constant 2 : index
    %c0_100 = arith.constant 0 : index
    %90 = vector.load %arg6[%c2_98, %c2_99, %c0_100] : memref<10x10x128xf32, #tpu.memory_space<vmem>>, vector<8x8x128xf32>
    %91 = vector.shape_cast %90 : vector<8x8x128xf32> to vector<64x128xf32>
    %92 = arith.truncf %91 : vector<64x128xf32> to vector<64x128xbf16>
    %c0_101 = arith.constant 0 : index
    %c0_102 = arith.constant 0 : index
    %93 = vector.load %arg7[%c0_101, %c0_102] : memref<64x128xf32, #tpu.memory_space<vmem>>, vector<64x128xf32>
    %c8 = arith.constant 8 : index
    %c0_103 = arith.constant 0 : index
    %c0_104 = arith.constant 0 : index
    %94 = vector.load %arg3[%c8, %c0_103, %c0_104] : memref<9x128x128xbf16, #tpu.memory_space<vmem>>, vector<1x128x128xbf16>
    %95 = vector.shape_cast %94 : vector<1x128x128xbf16> to vector<128x128xbf16>
    %cst_105 = arith.constant dense<0.000000e+00> : vector<64x128xf32>
    %96 = tpu.matmul %92, %95, %cst_105 {dimension_numbers = #tpu.dot_dimension_numbers<[1], [0], [0], [1], [0, 0, 1, 1], [], []>} : vector<64x128xbf16>, vector<128x128xbf16>, vector<64x128xf32> -> vector<64x128xf32>
    %97 = arith.addf %93, %96 : vector<64x128xf32>
    %c0_106 = arith.constant 0 : index
    %c0_107 = arith.constant 0 : index
    %98 = vector.load %arg7[%c0_106, %c0_107] : memref<64x128xf32, #tpu.memory_space<vmem>>, vector<64x128xf32>
    tpu.vector_store %arg7[%c0_106, %c0_107], %97 {strides = array<i32>} : memref<64x128xf32, #tpu.memory_space<vmem>>, vector<64x128xf32>,
    %c0_108 = arith.constant 0 : index
    %c0_109 = arith.constant 0 : index
    %99 = vector.load %arg7[%c0_108, %c0_109] : memref<64x128xf32, #tpu.memory_space<vmem>>, vector<64x128xf32>
    %100 = vector.shape_cast %99 : vector<64x128xf32> to vector<8x8x128xf32>
    %101 = arith.truncf %100 : vector<8x8x128xf32> to vector<8x8x128xbf16>
    %c0_110 = arith.constant 0 : index
    %c0_111 = arith.constant 0 : index
    %c0_112 = arith.constant 0 : index
    %c0_113 = arith.constant 0 : index
    %102 = vector.load %arg4[%c0_110, %c0_111, %c0_112, %c0_113] : memref<1x8x8x128xbf16, #tpu.memory_space<vmem>>, vector<1x8x8x128xbf16>
    %103 = vector.shape_cast %102 : vector<1x8x8x128xbf16> to vector<8x8x128xbf16>
    %104 = vector.shape_cast %101 : vector<8x8x128xbf16> to vector<1x8x8x128xbf16>
    tpu.vector_store %arg4[%c0_110, %c0_111, %c0_112, %c0_113], %104 {strides = array<i32>} : memref<1x8x8x128xbf16, #tpu.memory_space<vmem>>, vector<1x8x8x128xbf16>,
    %cst_114 = arith.constant dense<0.000000e+00> : vector<128xf32>
    %105 = vector.multi_reduction <add>, %99, %cst_114 [0] : vector<64x128xf32> to vector<128xf32>
    %106 = vector.shape_cast %105 : vector<128xf32> to vector<1x128xf32>
    %107 = arith.mulf %99, %99 : vector<64x128xf32>
    %cst_115 = arith.constant dense<0.000000e+00> : vector<128xf32>
    %108 = vector.multi_reduction <add>, %107, %cst_115 [0] : vector<64x128xf32> to vector<128xf32>
    %109 = vector.shape_cast %108 : vector<128xf32> to vector<1x128xf32>
    %110 = tpu.concatenate %106, %109 in 0 : vector<1x128xf32>, vector<1x128xf32> -> vector<2x128xf32>
    %c0_116 = arith.constant 0 : index
    %c0_117 = arith.constant 0 : index
    %c0_118 = arith.constant 0 : index
    %111 = vector.load %arg5[%c0_116, %c0_117, %c0_118] : memref<1x2x128xf32, #tpu.memory_space<vmem>>, vector<1x2x128xf32>
    %112 = vector.shape_cast %111 : vector<1x2x128xf32> to vector<2x128xf32>
    %113 = vector.shape_cast %110 : vector<2x128xf32> to vector<1x2x128xf32>
    tpu.vector_store %arg5[%c0_116, %c0_117, %c0_118], %113 {strides = array<i32>} : memref<1x2x128xf32, #tpu.memory_space<vmem>>, vector<1x2x128xf32>,
    return
  }
  func.func @transform_0(%arg0: i32) -> (i32, i32, i32, i32) {
    %c0_i32 = arith.constant 0 : i32
    %c0_i32_0 = arith.constant 0 : i32
    %c0_i32_1 = arith.constant 0 : i32
    %c0_i32_2 = arith.constant 0 : i32
    return %arg0, %c0_i32, %c0_i32_0, %c0_i32_1 : i32, i32, i32, i32
  }
  func.func @transform_1(%arg0: i32) -> (i32, i32) {
    %c0_i32 = arith.constant 0 : i32
    %c0_i32_0 = arith.constant 0 : i32
    %c0_i32_1 = arith.constant 0 : i32
    return %c0_i32, %c0_i32_0 : i32, i32
  }
  func.func @transform_2(%arg0: i32) -> (i32, i32, i32) {
    %c0_i32 = arith.constant 0 : i32
    %c0_i32_0 = arith.constant 0 : i32
    %c0_i32_1 = arith.constant 0 : i32
    %c0_i32_2 = arith.constant 0 : i32
    return %c0_i32, %c0_i32_0, %c0_i32_1 : i32, i32, i32
  }
  func.func @transform_3(%arg0: i32) -> (i32, i32, i32, i32) {
    %c0_i32 = arith.constant 0 : i32
    %c0_i32_0 = arith.constant 0 : i32
    %c0_i32_1 = arith.constant 0 : i32
    %c0_i32_2 = arith.constant 0 : i32
    return %arg0, %c0_i32, %c0_i32_0, %c0_i32_1 : i32, i32, i32, i32
  }
  func.func @transform_4(%arg0: i32) -> (i32, i32, i32) {
    %c0_i32 = arith.constant 0 : i32
    %c0_i32_0 = arith.constant 0 : i32
    %c0_i32_1 = arith.constant 0 : i32
    return %arg0, %c0_i32, %c0_i32_0 : i32, i32, i32
  }
}

module attributes {stable_mosaic.version = 11 : i64} {
  func.func @_bn_res_kernel(%arg0: i32, %arg1: memref<1x8x8x128xbf16, #tpu.memory_space<vmem>>, %arg2: memref<2x128xf32, #tpu.memory_space<vmem>>, %arg3: memref<1x8x8x128xbf16, #tpu.memory_space<vmem>>, %arg4: memref<2x128xf32, #tpu.memory_space<vmem>>, %arg5: memref<1x8x8x8xf32, #tpu.memory_space<vmem>>) attributes {dimension_semantics = [#tpu.dimension_semantics<parallel>], iteration_bounds = array<i64: 2>, scalar_prefetch = 0 : i64, scratch_operands = 0 : i64, tpu.core_type = #tpu.core_type<tc>, window_params = [{transform_indices = @transform_0, window_bounds = array<i64: 1, 8, 8, 128>}, {pipeline_mode = #tpu.pipeline_mode<synchronous>, transform_indices = @transform_1, window_bounds = array<i64: 2, 128>}, {transform_indices = @transform_2, window_bounds = array<i64: 1, 8, 8, 128>}, {pipeline_mode = #tpu.pipeline_mode<synchronous>, transform_indices = @transform_3, window_bounds = array<i64: 2, 128>}, {transform_indices = @transform_4, window_bounds = array<i64: 1, 8, 8, 8>}]} {
    %c0 = arith.constant 0 : index
    %c0_0 = arith.constant 0 : index
    %0 = vector.load %arg2[%c0, %c0_0] : memref<2x128xf32, #tpu.memory_space<vmem>>, vector<1x128xf32>
    %1 = vector.shape_cast %0 : vector<1x128xf32> to vector<1x1x128xf32>
    %c1 = arith.constant 1 : index
    %c0_1 = arith.constant 0 : index
    %2 = vector.load %arg2[%c1, %c0_1] : memref<2x128xf32, #tpu.memory_space<vmem>>, vector<1x128xf32>
    %3 = vector.shape_cast %2 : vector<1x128xf32> to vector<1x1x128xf32>
    %c0_2 = arith.constant 0 : index
    %c0_3 = arith.constant 0 : index
    %c0_4 = arith.constant 0 : index
    %c0_5 = arith.constant 0 : index
    %4 = vector.load %arg1[%c0_2, %c0_3, %c0_4, %c0_5] : memref<1x8x8x128xbf16, #tpu.memory_space<vmem>>, vector<1x8x8x128xbf16>
    %5 = vector.shape_cast %4 : vector<1x8x8x128xbf16> to vector<8x8x128xbf16>
    %6 = arith.extf %5 : vector<8x8x128xbf16> to vector<8x8x128xf32>
    %7 = vector.broadcast %1 : vector<1x1x128xf32> to vector<8x8x128xf32>
    %8 = arith.mulf %6, %7 : vector<8x8x128xf32>
    %9 = vector.broadcast %3 : vector<1x1x128xf32> to vector<8x8x128xf32>
    %10 = arith.addf %8, %9 : vector<8x8x128xf32>
    %c0_6 = arith.constant 0 : index
    %c0_7 = arith.constant 0 : index
    %11 = vector.load %arg4[%c0_6, %c0_7] : memref<2x128xf32, #tpu.memory_space<vmem>>, vector<1x128xf32>
    %12 = vector.shape_cast %11 : vector<1x128xf32> to vector<1x1x128xf32>
    %c1_8 = arith.constant 1 : index
    %c0_9 = arith.constant 0 : index
    %13 = vector.load %arg4[%c1_8, %c0_9] : memref<2x128xf32, #tpu.memory_space<vmem>>, vector<1x128xf32>
    %14 = vector.shape_cast %13 : vector<1x128xf32> to vector<1x1x128xf32>
    %c0_10 = arith.constant 0 : index
    %c0_11 = arith.constant 0 : index
    %c0_12 = arith.constant 0 : index
    %c0_13 = arith.constant 0 : index
    %15 = vector.load %arg3[%c0_10, %c0_11, %c0_12, %c0_13] : memref<1x8x8x128xbf16, #tpu.memory_space<vmem>>, vector<1x8x8x128xbf16>
    %16 = vector.shape_cast %15 : vector<1x8x8x128xbf16> to vector<8x8x128xbf16>
    %17 = arith.extf %16 : vector<8x8x128xbf16> to vector<8x8x128xf32>
    %18 = vector.broadcast %12 : vector<1x1x128xf32> to vector<8x8x128xf32>
    %19 = arith.mulf %17, %18 : vector<8x8x128xf32>
    %20 = vector.broadcast %14 : vector<1x1x128xf32> to vector<8x8x128xf32>
    %21 = arith.addf %19, %20 : vector<8x8x128xf32>
    %22 = vector.extract_strided_slice %10 {offsets = [0, 0, 0], sizes = [8, 8, 8], strides = [1, 1, 1]} : vector<8x8x128xf32> to vector<8x8x8xf32>
    %23 = vector.extract_strided_slice %21 {offsets = [0, 0, 0], sizes = [8, 8, 8], strides = [1, 1, 1]} : vector<8x8x128xf32> to vector<8x8x8xf32>
    %24 = arith.addf %22, %23 : vector<8x8x8xf32>
    %cst = arith.constant 0.000000e+00 : f32
    %25 = vector.broadcast %cst : f32 to vector<8x8x8xf32>
    %26 = arith.maximumf %24, %25 : vector<8x8x8xf32>
    %c0_14 = arith.constant 0 : index
    %c0_15 = arith.constant 0 : index
    %c0_16 = arith.constant 0 : index
    %c0_17 = arith.constant 0 : index
    %27 = vector.load %arg5[%c0_14, %c0_15, %c0_16, %c0_17] : memref<1x8x8x8xf32, #tpu.memory_space<vmem>>, vector<1x8x8x8xf32>
    %28 = vector.shape_cast %27 : vector<1x8x8x8xf32> to vector<8x8x8xf32>
    %29 = vector.shape_cast %26 : vector<8x8x8xf32> to vector<1x8x8x8xf32>
    tpu.vector_store %arg5[%c0_14, %c0_15, %c0_16, %c0_17], %29 {strides = array<i32>} : memref<1x8x8x8xf32, #tpu.memory_space<vmem>>, vector<1x8x8x8xf32>,
    return
  }
  func.func @transform_0(%arg0: i32) -> (i32, i32, i32, i32) {
    %c0_i32 = arith.constant 0 : i32
    %c0_i32_0 = arith.constant 0 : i32
    %c0_i32_1 = arith.constant 0 : i32
    %c0_i32_2 = arith.constant 0 : i32
    return %arg0, %c0_i32, %c0_i32_0, %c0_i32_1 : i32, i32, i32, i32
  }
  func.func @transform_1(%arg0: i32) -> (i32, i32) {
    %c0_i32 = arith.constant 0 : i32
    %c0_i32_0 = arith.constant 0 : i32
    %c0_i32_1 = arith.constant 0 : i32
    return %c0_i32, %c0_i32_0 : i32, i32
  }
  func.func @transform_2(%arg0: i32) -> (i32, i32, i32, i32) {
    %c0_i32 = arith.constant 0 : i32
    %c0_i32_0 = arith.constant 0 : i32
    %c0_i32_1 = arith.constant 0 : i32
    %c0_i32_2 = arith.constant 0 : i32
    return %arg0, %c0_i32, %c0_i32_0, %c0_i32_1 : i32, i32, i32, i32
  }
  func.func @transform_3(%arg0: i32) -> (i32, i32) {
    %c0_i32 = arith.constant 0 : i32
    %c0_i32_0 = arith.constant 0 : i32
    %c0_i32_1 = arith.constant 0 : i32
    return %c0_i32, %c0_i32_0 : i32, i32
  }
  func.func @transform_4(%arg0: i32) -> (i32, i32, i32, i32) {
    %c0_i32 = arith.constant 0 : i32
    %c0_i32_0 = arith.constant 0 : i32
    %c0_i32_1 = arith.constant 0 : i32
    %c0_i32_2 = arith.constant 0 : i32
    return %arg0, %c0_i32, %c0_i32_0, %c0_i32_1 : i32, i32, i32, i32
  }
}

</mosaic_0001>

<llo_original>
// kernel: basic_block_forward.5
$region0: #{basic_block_forward.5}
  #allocation0 [shape = 'u32[]', space=smem, size = 0x4, offset = 0x4, fixed_abs, tag = 'smem constant byte address 0x4 - core index']
  #allocation1 [shape = 'u32[144,128]{1,0:T(1,128)}', space=vmem, size = 0x12000, scoped, tag = 'internal scratch']
  %s0 = inlined_call_operand.vmem [shape: bf16[2,8,8,128], index: 0, kind: input, shape index: {}]
  %s1 = inlined_call_operand.vmem [shape: f32[2,128], index: 1, kind: input, shape index: {}]
  %s2 = inlined_call_operand.vmem [shape: bf16[2,8,8,128], index: 2, kind: input, shape index: {}]
  %s3 = inlined_call_operand.vmem [shape: f32[2,128], index: 3, kind: input, shape index: {}]
  %s4 = inlined_call_operand.vmem [shape: f32[2,8,8,8], index: 4, kind: output, shape index: {}]
  %s5 = sld [smem:[#allocation0]]
  $region49: #{basic_block_forward.5} parent=0
    _
  %s7 = ssub.s32 1, %s5
  %s8 = scalar_select 0, %s7, %s5
  loop: start=0, step=1, limit=4
  $region2: #{basic_block_forward.5} parent=0 // loop_pre_header
    _
  $region3: #{basic_block_forward.5} parent=0 // loop_header
    %s10 = sphi 0, %s14
    %p11 = scmp.ge.s32.totalorder %s10, 4
    %s20 = sphi 0, %s22
    %s23 = sphi 0, %s20
    %s24 = sphi 0, %s23
    %s40 = sphi 0, %s24
    %s44 = sphi 0, %s44
    %s46 = sphi 0, %s44
    %s47 = sphi 0, %s46
    %s61 = sphi 0, %s47
    %s67 = sphi 0, %s69
    %s70 = sphi 0, %s67
    %s71 = sphi 0, %s70
    %s87 = sphi 0, %s71
    %s91 = sphi 0, %s91
    %s93 = sphi 0, %s91
    %s94 = sphi 0, %s93
    %s108 = sphi 0, %s94
    %s114 = sphi 0, %s116
    %s117 = sphi 0, %s114
    %s118 = sphi 0, %s117
    %s134 = sphi 0, %s118
  $region4: #{basic_block_forward.5} parent=0 // loop_header_branch
    %13 = sbr.rel (%p11) target = $region8
  $region5: #{basic_block_forward.5} parent=0 // loop_body
    %s15 = ssub.s32 %s10, 1
    %s16 = ssub.s32 %s10, 2
    %s17 = sadd.s32 %s10, 1
    %s18 = ssub.s32 %s10, %s17
    %p19 = scmp.eq.s32.totalorder %s18, 0
    %s21 = sadd.s32 %s20, 1
    %s22 = scalar_select %p19, %s20, %s21
    %p25 = pneg %p19
    %p26 = scmp.eq.s32.totalorder %s10, 1
    %p27 = por %p25, %p26
    %p28 = scmp.ne.s32.totalorder %s20, %s23
    %p29 = scmp.eq.s32.totalorder %s10, 0
    %p30 = por %p28, %p29
    %p31 = scmp.ne.s32.totalorder %s20, %s23
    %p32 = scmp.eq.s32.totalorder %s15, 1
    %p33 = por %p31, %p32
    %p34 = scmp.ne.s32.totalorder %s23, %s24
    %p35 = scmp.eq.s32.totalorder %s15, 0
    %p36 = por %p34, %p35
    %p37 = scmp.ne.s32.totalorder %s23, %s24
    %p38 = scmp.eq.s32.totalorder %s16, 1
    %p39 = por %p37, %p38
    %p41 = scmp.ne.s32.totalorder %s24, %s40
    %p42 = scmp.eq.s32.totalorder %s16, 0
    %p43 = por %p41, %p42
    %s45 = sadd.s32 %s44, 1
    %p48 = scmp.eq.s32.totalorder %s10, 1
    %p49 = scmp.ne.s32.totalorder %s44, %s46
    %p50 = scmp.eq.s32.totalorder %s10, 0
    %p51 = por %p49, %p50
    %p52 = scmp.ne.s32.totalorder %s44, %s46
    %p53 = scmp.eq.s32.totalorder %s15, 1
    %p54 = por %p52, %p53
    %p55 = scmp.ne.s32.totalorder %s46, %s47
    %p56 = scmp.eq.s32.totalorder %s15, 0
    %p57 = por %p55, %p56
    %p58 = scmp.ne.s32.totalorder %s46, %s47
    %p59 = scmp.eq.s32.totalorder %s16, 1
    %p60 = por %p58, %p59
    %p62 = scmp.ne.s32.totalorder %s47, %s61
    %p63 = scmp.eq.s32.totalorder %s16, 0
    %p64 = por %p62, %p63
    %s65 = ssub.s32 %s10, %s17
    %p66 = scmp.eq.s32.totalorder %s65, 0
    %s68 = sadd.s32 %s67, 1
    %s69 = scalar_select %p66, %s67, %s68
    %p72 = pneg %p66
    %p73 = scmp.eq.s32.totalorder %s10, 1
    %p74 = por %p72, %p73
    %p75 = scmp.ne.s32.totalorder %s67, %s70
    %p76 = scmp.eq.s32.totalorder %s10, 0
    %p77 = por %p75, %p76
    %p78 = scmp.ne.s32.totalorder %s67, %s70
    %p79 = scmp.eq.s32.totalorder %s15, 1
    %p80 = por %p78, %p79
    %p81 = scmp.ne.s32.totalorder %s70, %s71
    %p82 = scmp.eq.s32.totalorder %s15, 0
    %p83 = por %p81, %p82
    %p84 = scmp.ne.s32.totalorder %s70, %s71
    %p85 = scmp.eq.s32.totalorder %s16, 1
    %p86 = por %p84, %p85
    %p88 = scmp.ne.s32.totalorder %s71, %s87
    %p89 = scmp.eq.s32.totalorder %s16, 0
    %p90 = por %p88, %p89
    %s92 = sadd.s32 %s91, 1
    %p95 = scmp.eq.s32.totalorder %s10, 1
    %p96 = scmp.ne.s32.totalorder %s91, %s93
    %p97 = scmp.eq.s32.totalorder %s10, 0
    %p98 = por %p96, %p97
    %p99 = scmp.ne.s32.totalorder %s91, %s93
    %p100 = scmp.eq.s32.totalorder %s15, 1
    %p101 = por %p99, %p100
    %p102 = scmp.ne.s32.totalorder %s93, %s94
    %p103 = scmp.eq.s32.totalorder %s15, 0
    %p104 = por %p102, %p103
    %p105 = scmp.ne.s32.totalorder %s93, %s94
    %p106 = scmp.eq.s32.totalorder %s16, 1
    %p107 = por %p105, %p106
    %p109 = scmp.ne.s32.totalorder %s94, %s108
    %p110 = scmp.eq.s32.totalorder %s16, 0
    %p111 = por %p109, %p110
    %s112 = ssub.s32 %s10, %s17
    %p113 = scmp.eq.s32.totalorder %s112, 0
    %s115 = sadd.s32 %s114, 1
    %s116 = scalar_select %p113, %s114, %s115
    %p119 = pneg %p113
    %p120 = scmp.eq.s32.totalorder %s10, 1
    %p121 = por %p119, %p120
    %p122 = scmp.ne.s32.totalorder %s114, %s117
    %p123 = scmp.eq.s32.totalorder %s10, 0
    %p124 = por %p122, %p123
    %p125 = scmp.ne.s32.totalorder %s114, %s117
    %p126 = scmp.eq.s32.totalorder %s15, 1
    %p127 = por %p125, %p126
    %p128 = scmp.ne.s32.totalorder %s117, %s118
    %p129 = scmp.eq.s32.totalorder %s15, 0
    %p130 = por %p128, %p129
    %p131 = scmp.ne.s32.totalorder %s117, %s118
    %p132 = scmp.eq.s32.totalorder %s16, 1
    %p133 = por %p131, %p132
    %p135 = scmp.ne.s32.totalorder %s118, %s134
    %p136 = scmp.eq.s32.totalorder %s16, 0
    %p137 = por %p135, %p136
    %p138 = scmp.le.s32.totalorder 1, %s10
    %p139 = scmp.lt.s32.totalorder %s10, 3
    %p140 = pnand %p138, %p139
    %p141 = pneg %p140
    // Predicated region
    $region9: #{basic_block_forward.5} parent=5 // pred_check
      _
    $region10: #{basic_block_forward.5} parent=5 // pred_check_branch
      %143 = sbr.rel (%p140) target = $region12
    $region11: #{basic_block_forward.5} parent=5 // pred_region
      %s144 = ssub.s32 %s10, 1
      // Predicated region
      $region13: #{basic_block_forward.5} parent=11 // pred_check
        %p145 = pneg %p57
      $region14: #{basic_block_forward.5} parent=11 // pred_check_branch
        %147 = sbr.rel (%p145) target = $region16
      $region15: #{basic_block_forward.5} parent=11 // pred_region
        _
      $region16: #{basic_block_forward.5} parent=11 // pred_fallthru
        _
      // Predicated region
      $region17: #{basic_block_forward.5} parent=11 // pred_check
        %p148 = pneg %p104
      $region18: #{basic_block_forward.5} parent=11 // pred_check_branch
        %150 = sbr.rel (%p148) target = $region20
      $region19: #{basic_block_forward.5} parent=11 // pred_region
        _
      $region20: #{basic_block_forward.5} parent=11 // pred_fallthru
        _
    $region12: #{basic_block_forward.5} parent=5 // pred_fallthru
      _
    %p151 = scmp.lt.s32.totalorder %s10, 2
    // Predicated region
    $region21: #{basic_block_forward.5} parent=5 // pred_check
      %p152 = pneg %p151
    $region22: #{basic_block_forward.5} parent=5 // pred_check_branch
      %154 = sbr.rel (%p152) target = $region24
    $region23: #{basic_block_forward.5} parent=5 // pred_region
      // Predicated region
      $region25: #{basic_block_forward.5} parent=23 // pred_check
        %p155 = pneg %p30
      $region26: #{basic_block_forward.5} parent=23 // pred_check_branch
        %157 = sbr.rel (%p155) target = $region28
      $region27: #{basic_block_forward.5} parent=23 // pred_region
        %p158 = scmp.lt.s32.totalorder %s10, 1
        %s159 = scalar_select %p158, %s10, 1
        %s160 = smul.addr %s159, 8
        %s161 = smul.addr %s160, 4
        %s162 = scalar_lea.vmem %s0, %s161
      $region28: #{basic_block_forward.5} parent=23 // pred_fallthru
        _
      // Predicated region
      $region29: #{basic_block_forward.5} parent=23 // pred_check
        %p163 = pneg %p77
      $region30: #{basic_block_forward.5} parent=23 // pred_check_branch
        %165 = sbr.rel (%p163) target = $region32
      $region31: #{basic_block_forward.5} parent=23 // pred_region
        %p166 = scmp.lt.s32.totalorder %s10, 1
        %s167 = scalar_select %p166, %s10, 1
        %s168 = smul.addr %s167, 8
        %s169 = smul.addr %s168, 4
        %s170 = scalar_lea.vmem %s2, %s169
      $region32: #{basic_block_forward.5} parent=23 // pred_fallthru
        _
    $region24: #{basic_block_forward.5} parent=5 // pred_fallthru
      _
    %p171 = scmp.le.s32.totalorder 1, %s10
    %p172 = scmp.lt.s32.totalorder %s10, 3
    %p173 = pnand %p171, %p172
    %p174 = pneg %p173
    // Predicated region
    $region33: #{basic_block_forward.5} parent=5 // pred_check
      _
    $region34: #{basic_block_forward.5} parent=5 // pred_check_branch
      %176 = sbr.rel (%p173) target = $region36
    $region35: #{basic_block_forward.5} parent=5 // pred_region
      %s177 = ssub.s32 %s10, 1
      %p178 = scmp.lt.s32.totalorder %s15, 1
      %s179 = scalar_select %p178, %s15, 1
      %s180 = smul.addr %s179, 8
      %s181 = smul.addr %s180, 4
      %s182 = scalar_lea.vmem %s0, %s181
      %p183 = pneg %p36
      %p184 = pneg %p33
      %p185 = pneg %p57
      %p186 = pneg %p54
      %p187 = scmp.lt.s32.totalorder %s15, 1
      %s188 = scalar_select %p187, %s15, 1
      %s189 = smul.addr %s188, 8
      %s190 = smul.addr %s189, 4
      %s191 = scalar_lea.vmem %s2, %s190
      %p192 = pneg %p83
      %p193 = pneg %p80
      %p194 = pneg %p104
      %p195 = pneg %p101
      %p196 = pneg %p130
      %p197 = pneg %p127
      %p198 = scmp.lt.s32.totalorder %s15, 1
      %s199 = scalar_select %p198, %s15, 1
      %s200 = smul.addr %s199, 8
      %s201 = smul.addr %s200, 8
      %s202 = scalar_lea.vmem %s4, %s201
      %p203 = scmp.lt.s32.totalorder %s15, 1
      %s204 = scalar_select %p203, %s15, 1
      %s205 = smul.addr %s204, 8
      %s206 = smul.addr %s205, 4
      %s207 = scalar_lea.vmem %s0, %s206
      %p208 = scmp.lt.s32.totalorder %s15, 1
      %s209 = scalar_select %p208, %s15, 1
      %s210 = smul.addr %s209, 8
      %s211 = smul.addr %s210, 4
      %s212 = scalar_lea.vmem %s2, %s211
      %p213 = scmp.lt.s32.totalorder %s15, 1
      %s214 = scalar_select %p213, %s15, 1
      %s215 = smul.addr %s214, 8
      %s216 = smul.addr %s215, 8
      %s217 = scalar_lea.vmem %s4, %s216
      %v218 = vld [vmem:[%s1] sm:$0x1]
      %v219 = vld [vmem:[%s1 + $0x1] sm:$0x1]
      %v220 = vld [vmem:[%s207] sm:$0xf]
      %v221 = vld [vmem:[%s207 + $0x4] sm:$0xf]
      %v222 = vld [vmem:[%s207 + $0x8] sm:$0xf]
      %v223 = vld [vmem:[%s207 + $0xc] sm:$0xf]
      %v224 = vld [vmem:[%s207 + $0x10] sm:$0xf]
      %v225 = vld [vmem:[%s207 + $0x14] sm:$0xf]
      %v226 = vld [vmem:[%s207 + $0x18] sm:$0xf]
      %v227 = vld [vmem:[%s207 + $0x1c] sm:$0xf]
      %v228 = vunpack.c.l.bf16 %v220
      %v229 = vunpack.c.l.bf16 %v221
      %v230 = vunpack.c.l.bf16 %v222
      %v231 = vunpack.c.l.bf16 %v223
      %v232 = vunpack.c.l.bf16 %v224
      %v233 = vunpack.c.l.bf16 %v225
      %v234 = vunpack.c.l.bf16 %v226
      %v235 = vunpack.c.l.bf16 %v227
      %v236 = vlaneseq
      %v237 = vshrl.u32 %v236, 7
      %v238 = vsub.s32 0, %v237
      %v239 = vrot.slane %v218, %v238
      %v240 = vmul.f32 %v228, %v239
      %v241 = vmul.f32 %v229, %v239
      %v242 = vmul.f32 %v230, %v239
      %v243 = vmul.f32 %v231, %v239
      %v244 = vmul.f32 %v232, %v239
      %v245 = vmul.f32 %v233, %v239
      %v246 = vmul.f32 %v234, %v239
      %v247 = vmul.f32 %v235, %v239
      %v248 = vlaneseq
      %v249 = vshrl.u32 %v248, 7
      %v250 = vsub.s32 0, %v249
      %v251 = vrot.slane %v219, %v250
      %v252 = vadd.f32 %v240, %v251
      %v253 = vadd.f32 %v241, %v251
      %v254 = vadd.f32 %v242, %v251
      %v255 = vadd.f32 %v243, %v251
      %v256 = vadd.f32 %v244, %v251
      %v257 = vadd.f32 %v245, %v251
      %v258 = vadd.f32 %v246, %v251
      %v259 = vadd.f32 %v247, %v251
      %v260 = vld [vmem:[%s3] sm:$0x1]
      %v261 = vld [vmem:[%s3 + $0x1] sm:$0x1]
      %v262 = vld [vmem:[%s212] sm:$0xf]
      %v263 = vld [vmem:[%s212 + $0x4] sm:$0xf]
      %v264 = vld [vmem:[%s212 + $0x8] sm:$0xf]
      %v265 = vld [vmem:[%s212 + $0xc] sm:$0xf]
      %v266 = vld [vmem:[%s212 + $0x10] sm:$0xf]
      %v267 = vld [vmem:[%s212 + $0x14] sm:$0xf]
      %v268 = vld [vmem:[%s212 + $0x18] sm:$0xf]
      %v269 = vld [vmem:[%s212 + $0x1c] sm:$0xf]
      %v270 = vunpack.c.l.bf16 %v262
      %v271 = vunpack.c.l.bf16 %v263
      %v272 = vunpack.c.l.bf16 %v264
      %v273 = vunpack.c.l.bf16 %v265
      %v274 = vunpack.c.l.bf16 %v266
      %v275 = vunpack.c.l.bf16 %v267
      %v276 = vunpack.c.l.bf16 %v268
      %v277 = vunpack.c.l.bf16 %v269
      %v278 = vlaneseq
      %v279 = vshrl.u32 %v278, 7
      %v280 = vsub.s32 0, %v279
      %v281 = vrot.slane %v260, %v280
      %v282 = vmul.f32 %v270, %v281
      %v283 = vmul.f32 %v271, %v281
      %v284 = vmul.f32 %v272, %v281
      %v285 = vmul.f32 %v273, %v281
      %v286 = vmul.f32 %v274, %v281
      %v287 = vmul.f32 %v275, %v281
      %v288 = vmul.f32 %v276, %v281
      %v289 = vmul.f32 %v277, %v281
      %v290 = vlaneseq
      %v291 = vshrl.u32 %v290, 7
      %v292 = vsub.s32 0, %v291
      %v293 = vrot.slane %v261, %v292
      %v294 = vadd.f32 %v282, %v293
      %v295 = vadd.f32 %v283, %v293
      %v296 = vadd.f32 %v284, %v293
      %v297 = vadd.f32 %v285, %v293
      %v298 = vadd.f32 %v286, %v293
      %v299 = vadd.f32 %v287, %v293
      %v300 = vadd.f32 %v288, %v293
      %v301 = vadd.f32 %v289, %v293
      %v302 = vadd.f32 %v252, %v294
      %v303 = vadd.f32 %v253, %v295
      %v304 = vadd.f32 %v254, %v296
      %v305 = vadd.f32 %v255, %v297
      %v306 = vadd.f32 %v256, %v298
      %v307 = vadd.f32 %v257, %v299
      %v308 = vadd.f32 %v258, %v300
      %v309 = vadd.f32 %v259, %v301
      %v310 = vmax.f32 %v302, 0.0
      %v311 = vmax.f32 %v303, 0.0
      %v312 = vmax.f32 %v304, 0.0
      %v313 = vmax.f32 %v305, 0.0
      %v314 = vmax.f32 %v306, 0.0
      %v315 = vmax.f32 %v307, 0.0
      %v316 = vmax.f32 %v308, 0.0
      %v317 = vmax.f32 %v309, 0.0
      %vm318 = vcmask 64512
      %319 = vst.msk [vmem:[%s217] sm:$0xff] %vm318, %v310
      %320 = vst.msk [vmem:[%s217 + $0x8] sm:$0xff] %vm318, %v311
      %321 = vst.msk [vmem:[%s217 + $0x10] sm:$0xff] %vm318, %v312
      %322 = vst.msk [vmem:[%s217 + $0x18] sm:$0xff] %vm318, %v313
      %323 = vst.msk [vmem:[%s217 + $0x20] sm:$0xff] %vm318, %v314
      %324 = vst.msk [vmem:[%s217 + $0x28] sm:$0xff] %vm318, %v315
      %325 = vst.msk [vmem:[%s217 + $0x30] sm:$0xff] %vm318, %v316
      %326 = vst.msk [vmem:[%s217 + $0x38] sm:$0xff] %vm318, %v317
      %p327 = scmp.lt.s32.totalorder %s15, 1
      %s328 = scalar_select %p327, %s15, 1
      %s329 = smul.addr %s328, 8
      %s330 = smul.addr %s329, 8
      %s331 = scalar_lea.vmem %s4, %s330
      // Predicated region
      $region37: #{basic_block_forward.5} parent=35 // pred_check
        %p332 = pneg %p127
      $region38: #{basic_block_forward.5} parent=35 // pred_check_branch
        %334 = sbr.rel (%p332) target = $region40
      $region39: #{basic_block_forward.5} parent=35 // pred_region
        _
      $region40: #{basic_block_forward.5} parent=35 // pred_fallthru
        _
    $region36: #{basic_block_forward.5} parent=5 // pred_fallthru
      _
    %p335 = scmp.le.s32.totalorder 2, %s10
    // Predicated region
    $region41: #{basic_block_forward.5} parent=5 // pred_check
      %p336 = pneg %p335
    $region42: #{basic_block_forward.5} parent=5 // pred_check_branch
      %338 = sbr.rel (%p336) target = $region44
    $region43: #{basic_block_forward.5} parent=5 // pred_region
      %s339 = ssub.s32 %s10, 2
      // Predicated region
      $region45: #{basic_block_forward.5} parent=43 // pred_check
        %p340 = pneg %p133
      $region46: #{basic_block_forward.5} parent=43 // pred_check_branch
        %342 = sbr.rel (%p340) target = $region48
      $region47: #{basic_block_forward.5} parent=43 // pred_region
        %p343 = scmp.lt.s32.totalorder %s16, 1
        %s344 = scalar_select %p343, %s16, 1
        %s345 = smul.addr %s344, 8
        %s346 = smul.addr %s345, 8
        %s347 = scalar_lea.vmem %s4, %s346
      $region48: #{basic_block_forward.5} parent=43 // pred_fallthru
        _
    $region44: #{basic_block_forward.5} parent=5 // pred_fallthru
      _
  $region6: #{basic_block_forward.5} parent=0 // loop_footer
    %s14 = sadd.s32 1, %s10
  $region7: #{basic_block_forward.5} parent=0 // loop_footer_branch
    %9 = sbr.rel target = $region3
  $region8: #{basic_block_forward.5} parent=0 // loop_exit
    _

// kernel: basic_block_forward.3
$region0: #{basic_block_forward.3}
  #allocation0 [shape = 'u32[]', space=smem, size = 0x4, offset = 0x4, fixed_abs, tag = 'smem constant byte address 0x4 - core index']
  #allocation1 [shape = 'u32[144,128]{1,0:T(1,128)}', space=vmem, size = 0x12000, scoped, tag = 'internal scratch']
  #allocation2 [shape = 'f32[64,128]{1,0:T(8,128)}', space=vmem, size = 0x8000, scoped, tag = 'scratch operand']
  %s0 = inlined_call_operand.vmem [shape: bf16[8,9,9,8], index: 0, kind: input, shape index: {}]
  %s1 = inlined_call_operand.vmem [shape: bf16[9,8,128], index: 1, kind: input, shape index: {}]
  %s2 = inlined_call_operand.vmem [shape: bf16[8,128], index: 2, kind: input, shape index: {}]
  %s3 = inlined_call_operand.vmem [shape: bf16[2,8,8,128], index: 3, kind: output, shape index: {0}]
  %s4 = inlined_call_operand.vmem [shape: f32[2,2,128], index: 4, kind: output, shape index: {1}]
  %s5 = inlined_call_operand.vmem [shape: bf16[2,8,8,128], index: 5, kind: output, shape index: {2}]
  %s6 = inlined_call_operand.vmem [shape: f32[2,2,128], index: 6, kind: output, shape index: {3}]
  %7 = xla_tuple %s3, %s4, %s5, %s6
  %s8 = sld [smem:[#allocation0]]
  $region69: #{basic_block_forward.3} parent=0
    _
  %s10 = ssub.s32 1, %s8
  %s11 = scalar_select 0, %s10, %s8
  loop: start=0, step=1, limit=4
  $region2: #{basic_block_forward.3} parent=0 // loop_pre_header
    _
  $region3: #{basic_block_forward.3} parent=0 // loop_header
    %s13 = sphi 0, %s17
    %p14 = scmp.ge.s32.totalorder %s13, 4
    %s23 = sphi 0, %s25
    %s26 = sphi 0, %s23
    %s27 = sphi 0, %s26
    %s43 = sphi 0, %s27
    %s47 = sphi 0, %s47
    %s49 = sphi 0, %s47
    %s50 = sphi 0, %s49
    %s64 = sphi 0, %s50
    %s68 = sphi 0, %s68
    %s70 = sphi 0, %s68
    %s71 = sphi 0, %s70
    %s85 = sphi 0, %s71
    %s91 = sphi 0, %s93
    %s94 = sphi 0, %s91
    %s95 = sphi 0, %s94
    %s111 = sphi 0, %s95
    %s117 = sphi 0, %s119
    %s120 = sphi 0, %s117
    %s121 = sphi 0, %s120
    %s137 = sphi 0, %s121
    %s143 = sphi 0, %s145
    %s146 = sphi 0, %s143
    %s147 = sphi 0, %s146
    %s163 = sphi 0, %s147
    %s169 = sphi 0, %s171
    %s172 = sphi 0, %s169
    %s173 = sphi 0, %s172
    %s189 = sphi 0, %s173
  $region4: #{basic_block_forward.3} parent=0 // loop_header_branch
    %16 = sbr.rel (%p14) target = $region8
  $region5: #{basic_block_forward.3} parent=0 // loop_body
    %s18 = ssub.s32 %s13, 1
    %s19 = ssub.s32 %s13, 2
    %s20 = sadd.s32 %s13, 1
    %s21 = ssub.s32 %s13, %s20
    %p22 = scmp.eq.s32.totalorder %s21, 0
    %s24 = sadd.s32 %s23, 1
    %s25 = scalar_select %p22, %s23, %s24
    %p28 = pneg %p22
    %p29 = scmp.eq.s32.totalorder %s13, 1
    %p30 = por %p28, %p29
    %p31 = scmp.ne.s32.totalorder %s23, %s26
    %p32 = scmp.eq.s32.totalorder %s13, 0
    %p33 = por %p31, %p32
    %p34 = scmp.ne.s32.totalorder %s23, %s26
    %p35 = scmp.eq.s32.totalorder %s18, 1
    %p36 = por %p34, %p35
    %p37 = scmp.ne.s32.totalorder %s26, %s27
    %p38 = scmp.eq.s32.totalorder %s18, 0
    %p39 = por %p37, %p38
    %p40 = scmp.ne.s32.totalorder %s26, %s27
    %p41 = scmp.eq.s32.totalorder %s19, 1
    %p42 = por %p40, %p41
    %p44 = scmp.ne.s32.totalorder %s27, %s43
    %p45 = scmp.eq.s32.totalorder %s19, 0
    %p46 = por %p44, %p45
    %s48 = sadd.s32 %s47, 1
    %p51 = scmp.eq.s32.totalorder %s13, 1
    %p52 = scmp.ne.s32.totalorder %s47, %s49
    %p53 = scmp.eq.s32.totalorder %s13, 0
    %p54 = por %p52, %p53
    %p55 = scmp.ne.s32.totalorder %s47, %s49
    %p56 = scmp.eq.s32.totalorder %s18, 1
    %p57 = por %p55, %p56
    %p58 = scmp.ne.s32.totalorder %s49, %s50
    %p59 = scmp.eq.s32.totalorder %s18, 0
    %p60 = por %p58, %p59
    %p61 = scmp.ne.s32.totalorder %s49, %s50
    %p62 = scmp.eq.s32.totalorder %s19, 1
    %p63 = por %p61, %p62
    %p65 = scmp.ne.s32.totalorder %s50, %s64
    %p66 = scmp.eq.s32.totalorder %s19, 0
    %p67 = por %p65, %p66
    %s69 = sadd.s32 %s68, 1
    %p72 = scmp.eq.s32.totalorder %s13, 1
    %p73 = scmp.ne.s32.totalorder %s68, %s70
    %p74 = scmp.eq.s32.totalorder %s13, 0
    %p75 = por %p73, %p74
    %p76 = scmp.ne.s32.totalorder %s68, %s70
    %p77 = scmp.eq.s32.totalorder %s18, 1
    %p78 = por %p76, %p77
    %p79 = scmp.ne.s32.totalorder %s70, %s71
    %p80 = scmp.eq.s32.totalorder %s18, 0
    %p81 = por %p79, %p80
    %p82 = scmp.ne.s32.totalorder %s70, %s71
    %p83 = scmp.eq.s32.totalorder %s19, 1
    %p84 = por %p82, %p83
    %p86 = scmp.ne.s32.totalorder %s71, %s85
    %p87 = scmp.eq.s32.totalorder %s19, 0
    %p88 = por %p86, %p87
    %s89 = ssub.s32 %s13, %s20
    %p90 = scmp.eq.s32.totalorder %s89, 0
    %s92 = sadd.s32 %s91, 1
    %s93 = scalar_select %p90, %s91, %s92
    %p96 = pneg %p90
    %p97 = scmp.eq.s32.totalorder %s13, 1
    %p98 = por %p96, %p97
    %p99 = scmp.ne.s32.totalorder %s91, %s94
    %p100 = scmp.eq.s32.totalorder %s13, 0
    %p101 = por %p99, %p100
    %p102 = scmp.ne.s32.totalorder %s91, %s94
    %p103 = scmp.eq.s32.totalorder %s18, 1
    %p104 = por %p102, %p103
    %p105 = scmp.ne.s32.totalorder %s94, %s95
    %p106 = scmp.eq.s32.totalorder %s18, 0
    %p107 = por %p105, %p106
    %p108 = scmp.ne.s32.totalorder %s94, %s95
    %p109 = scmp.eq.s32.totalorder %s19, 1
    %p110 = por %p108, %p109
    %p112 = scmp.ne.s32.totalorder %s95, %s111
    %p113 = scmp.eq.s32.totalorder %s19, 0
    %p114 = por %p112, %p113
    %s115 = ssub.s32 %s13, %s20
    %p116 = scmp.eq.s32.totalorder %s115, 0
    %s118 = sadd.s32 %s117, 1
    %s119 = scalar_select %p116, %s117, %s118
    %p122 = pneg %p116
    %p123 = scmp.eq.s32.totalorder %s13, 1
    %p124 = por %p122, %p123
    %p125 = scmp.ne.s32.totalorder %s117, %s120
    %p126 = scmp.eq.s32.totalorder %s13, 0
    %p127 = por %p125, %p126
    %p128 = scmp.ne.s32.totalorder %s117, %s120
    %p129 = scmp.eq.s32.totalorder %s18, 1
    %p130 = por %p128, %p129
    %p131 = scmp.ne.s32.totalorder %s120, %s121
    %p132 = scmp.eq.s32.totalorder %s18, 0
    %p133 = por %p131, %p132
    %p134 = scmp.ne.s32.totalorder %s120, %s121
    %p135 = scmp.eq.s32.totalorder %s19, 1
    %p136 = por %p134, %p135
    %p138 = scmp.ne.s32.totalorder %s121, %s137
    %p139 = scmp.eq.s32.totalorder %s19, 0
    %p140 = por %p138, %p139
    %s141 = ssub.s32 %s13, %s20
    %p142 = scmp.eq.s32.totalorder %s141, 0
    %s144 = sadd.s32 %s143, 1
    %s145 = scalar_select %p142, %s143, %s144
    %p148 = pneg %p142
    %p149 = scmp.eq.s32.totalorder %s13, 1
    %p150 = por %p148, %p149
    %p151 = scmp.ne.s32.totalorder %s143, %s146
    %p152 = scmp.eq.s32.totalorder %s13, 0
    %p153 = por %p151, %p152
    %p154 = scmp.ne.s32.totalorder %s143, %s146
    %p155 = scmp.eq.s32.totalorder %s18, 1
    %p156 = por %p154, %p155
    %p157 = scmp.ne.s32.totalorder %s146, %s147
    %p158 = scmp.eq.s32.totalorder %s18, 0
    %p159 = por %p157, %p158
    %p160 = scmp.ne.s32.totalorder %s146, %s147
    %p161 = scmp.eq.s32.totalorder %s19, 1
    %p162 = por %p160, %p161
    %p164 = scmp.ne.s32.totalorder %s147, %s163
    %p165 = scmp.eq.s32.totalorder %s19, 0
    %p166 = por %p164, %p165
    %s167 = ssub.s32 %s13, %s20
    %p168 = scmp.eq.s32.totalorder %s167, 0
    %s170 = sadd.s32 %s169, 1
    %s171 = scalar_select %p168, %s169, %s170
    %p174 = pneg %p168
    %p175 = scmp.eq.s32.totalorder %s13, 1
    %p176 = por %p174, %p175
    %p177 = scmp.ne.s32.totalorder %s169, %s172
    %p178 = scmp.eq.s32.totalorder %s13, 0
    %p179 = por %p177, %p178
    %p180 = scmp.ne.s32.totalorder %s169, %s172
    %p181 = scmp.eq.s32.totalorder %s18, 1
    %p182 = por %p180, %p181
    %p183 = scmp.ne.s32.totalorder %s172, %s173
    %p184 = scmp.eq.s32.totalorder %s18, 0
    %p185 = por %p183, %p184
    %p186 = scmp.ne.s32.totalorder %s172, %s173
    %p187 = scmp.eq.s32.totalorder %s19, 1
    %p188 = por %p186, %p187
    %p190 = scmp.ne.s32.totalorder %s173, %s189
    %p191 = scmp.eq.s32.totalorder %s19, 0
    %p192 = por %p190, %p191
    %p193 = scmp.le.s32.totalorder 1, %s13
    %p194 = scmp.lt.s32.totalorder %s13, 3
    %p195 = pnand %p193, %p194
    %p196 = pneg %p195
    // Predicated region
    $region9: #{basic_block_forward.3} parent=5 // pred_check
      _
    $region10: #{basic_block_forward.3} parent=5 // pred_check_branch
      %198 = sbr.rel (%p195) target = $region12
    $region11: #{basic_block_forward.3} parent=5 // pred_region
      %s199 = ssub.s32 %s13, 1
      // Predicated region
      $region13: #{basic_block_forward.3} parent=11 // pred_check
        %p200 = pneg %p60
      $region14: #{basic_block_forward.3} parent=11 // pred_check_branch
        %202 = sbr.rel (%p200) target = $region16
      $region15: #{basic_block_forward.3} parent=11 // pred_region
        _
      $region16: #{basic_block_forward.3} parent=11 // pred_fallthru
        _
      // Predicated region
      $region17: #{basic_block_forward.3} parent=11 // pred_check
        %p203 = pneg %p81
      $region18: #{basic_block_forward.3} parent=11 // pred_check_branch
        %205 = sbr.rel (%p203) target = $region20
      $region19: #{basic_block_forward.3} parent=11 // pred_region
        _
      $region20: #{basic_block_forward.3} parent=11 // pred_fallthru
        _
    $region12: #{basic_block_forward.3} parent=5 // pred_fallthru
      _
    %p206 = scmp.lt.s32.totalorder %s13, 2
    // Predicated region
    $region21: #{basic_block_forward.3} parent=5 // pred_check
      %p207 = pneg %p206
    $region22: #{basic_block_forward.3} parent=5 // pred_check_branch
      %209 = sbr.rel (%p207) target = $region24
    $region23: #{basic_block_forward.3} parent=5 // pred_region
      // Predicated region
      $region25: #{basic_block_forward.3} parent=23 // pred_check
        %p210 = pneg %p33
      $region26: #{basic_block_forward.3} parent=23 // pred_check_branch
        %212 = sbr.rel (%p210) target = $region28
      $region27: #{basic_block_forward.3} parent=23 // pred_region
        %s213 = smul.u32 4, %s13
        %p214 = scmp.lt.s32.totalorder %s213, 7
        %s215 = scalar_select %p214, %s213, 7
        %s216 = smul.addr %s215, 18
        %s217 = smul.addr %s216, 4
        %s218 = scalar_lea.vmem %s0, %s217
        %s219 = smul.u32 4, %s13
      $region28: #{basic_block_forward.3} parent=23 // pred_fallthru
        _
    $region24: #{basic_block_forward.3} parent=5 // pred_fallthru
      _
    %p220 = scmp.le.s32.totalorder 1, %s13
    %p221 = scmp.lt.s32.totalorder %s13, 3
    %p222 = pnand %p220, %p221
    %p223 = pneg %p222
    // Predicated region
    $region29: #{basic_block_forward.3} parent=5 // pred_check
      _
    $region30: #{basic_block_forward.3} parent=5 // pred_check_branch
      %225 = sbr.rel (%p222) target = $region32
    $region31: #{basic_block_forward.3} parent=5 // pred_region
      %s226 = ssub.s32 %s13, 1
      %s227 = smul.u32 4, %s18
      %p228 = scmp.lt.s32.totalorder %s227, 7
      %s229 = scalar_select %p228, %s227, 7
      %s230 = smul.addr %s229, 18
      %s231 = smul.addr %s230, 4
      %s232 = scalar_lea.vmem %s0, %s231
      %p233 = pneg %p39
      %p234 = pneg %p36
      %p235 = pneg %p60
      %p236 = pneg %p57
      %p237 = pneg %p81
      %p238 = pneg %p78
      %p239 = pneg %p107
      %p240 = pneg %p104
      %p241 = scmp.lt.s32.totalorder %s18, 1
      %s242 = scalar_select %p241, %s18, 1
      %s243 = smul.addr %s242, 8
      %s244 = smul.addr %s243, 4
      %s245 = scalar_lea.vmem %s3, %s244
      %p246 = pneg %p133
      %p247 = pneg %p130
      %p248 = scmp.lt.s32.totalorder %s18, 1
      %s249 = scalar_select %p248, %s18, 1
      %s250 = smul.addr %s249, 2
      %s251 = scalar_lea.vmem %s4, %s250
      %p252 = pneg %p159
      %p253 = pneg %p156
      %p254 = scmp.lt.s32.totalorder %s18, 1
      %s255 = scalar_select %p254, %s18, 1
      %s256 = smul.addr %s255, 8
      %s257 = smul.addr %s256, 4
      %s258 = scalar_lea.vmem %s5, %s257
      %p259 = pneg %p185
      %p260 = pneg %p182
      %p261 = scmp.lt.s32.totalorder %s18, 1
      %s262 = scalar_select %p261, %s18, 1
      %s263 = smul.addr %s262, 2
      %s264 = scalar_lea.vmem %s6, %s263
      %s265 = smul.u32 4, %s18
      %p266 = scmp.lt.s32.totalorder %s265, 7
      %s267 = scalar_select %p266, %s265, 7
      %s268 = smul.addr %s267, 18
      %s269 = smul.addr %s268, 4
      %s270 = scalar_lea.vmem %s0, %s269
      %s271 = smul.u32 4, %s18
      %p272 = scmp.lt.s32.totalorder %s18, 1
      %s273 = scalar_select %p272, %s18, 1
      %s274 = smul.addr %s273, 8
      %s275 = smul.addr %s274, 4
      %s276 = scalar_lea.vmem %s3, %s275
      %p277 = scmp.lt.s32.totalorder %s18, 1
      %s278 = scalar_select %p277, %s18, 1
      %s279 = smul.addr %s278, 2
      %s280 = scalar_lea.vmem %s4, %s279
      %p281 = scmp.lt.s32.totalorder %s18, 1
      %s282 = scalar_select %p281, %s18, 1
      %s283 = smul.addr %s282, 8
      %s284 = smul.addr %s283, 4
      %s285 = scalar_lea.vmem %s5, %s284
      %p286 = scmp.lt.s32.totalorder %s18, 1
      %s287 = scalar_select %p286, %s18, 1
      %s288 = smul.addr %s287, 2
      %s289 = scalar_lea.vmem %s6, %s288
      %v291 = vld [vmem:[%s270] sm:$0xf]
      %v292 = vld [vmem:[%s270 + $0x4] sm:$0x1]
      %v293 = vld [vmem:[%s270 + $0x8] sm:$0xf]
      %v294 = vld [vmem:[%s270 + $0xc] sm:$0x1]
      %v295 = vld [vmem:[%s270 + $0x10] sm:$0xf]
      %v296 = vld [vmem:[%s270 + $0x14] sm:$0x1]
      %v297 = vld [vmem:[%s270 + $0x18] sm:$0xf]
      %v298 = vld [vmem:[%s270 + $0x1c] sm:$0x1]
      %v299 = vld [vmem:[%s270 + $0x20] sm:$0xf]
      %v300 = vld [vmem:[%s270 + $0x24] sm:$0x1]
      %v301 = vld [vmem:[%s270 + $0x28] sm:$0xf]
      %v302 = vld [vmem:[%s270 + $0x2c] sm:$0x1]
      %v303 = vld [vmem:[%s270 + $0x30] sm:$0xf]
      %v304 = vld [vmem:[%s270 + $0x34] sm:$0x1]
      %v305 = vld [vmem:[%s270 + $0x38] sm:$0xf]
      %v306 = vld [vmem:[%s270 + $0x3c] sm:$0x1]
      %v307 = vld [vmem:[%s270 + $0x40] sm:$0xf]
      %v308 = vld [vmem:[%s270 + $0x44] sm:$0x1]
      %v309 = vld [vmem:[%s270 + $0x48] sm:$0xf]
      %v310 = vld [vmem:[%s270 + $0x50] sm:$0xf]
      %v311 = vld [vmem:[%s270 + $0x58] sm:$0xf]
      %v312 = vld [vmem:[%s270 + $0x60] sm:$0xf]
      %v313 = vld [vmem:[%s270 + $0x68] sm:$0xf]
      %v314 = vld [vmem:[%s270 + $0x70] sm:$0xf]
      %v315 = vld [vmem:[%s270 + $0x78] sm:$0xf]
      %v316 = vld [vmem:[%s270 + $0x80] sm:$0xf]
      %v317 = vld [vmem:[%s270 + $0x88] sm:$0xf]
      %v318 = vld [vmem:[%s270 + $0x90] sm:$0xf]
      %v319 = vld [vmem:[%s270 + $0x94] sm:$0x1]
      %v320 = vld [vmem:[%s270 + $0x98] sm:$0xf]
      %v321 = vld [vmem:[%s270 + $0x9c] sm:$0x1]
      %v322 = vld [vmem:[%s270 + $0xa0] sm:$0xf]
      %v323 = vld [vmem:[%s270 + $0xa4] sm:$0x1]
      %v324 = vld [vmem:[%s270 + $0xa8] sm:$0xf]
      %v325 = vld [vmem:[%s270 + $0xac] sm:$0x1]
      %v326 = vld [vmem:[%s270 + $0xb0] sm:$0xf]
      %v327 = vld [vmem:[%s270 + $0xb4] sm:$0x1]
      %v328 = vld [vmem:[%s270 + $0xb8] sm:$0xf]
      %v329 = vld [vmem:[%s270 + $0xbc] sm:$0x1]
      %v330 = vld [vmem:[%s270 + $0xc0] sm:$0xf]
      %v331 = vld [vmem:[%s270 + $0xc4] sm:$0x1]
      %v332 = vld [vmem:[%s270 + $0xc8] sm:$0xf]
      %v333 = vld [vmem:[%s270 + $0xcc] sm:$0x1]
      %v334 = vld [vmem:[%s270 + $0xd8] sm:$0xf]
      %v335 = vld [vmem:[%s270 + $0xe0] sm:$0xf]
      %v336 = vld [vmem:[%s270 + $0xe8] sm:$0xf]
      %v337 = vld [vmem:[%s270 + $0xf0] sm:$0xf]
      %v338 = vld [vmem:[%s270 + $0xf8] sm:$0xf]
      %v339 = vld [vmem:[%s270 + $0x100] sm:$0xf]
      %v340 = vld [vmem:[%s270 + $0x108] sm:$0xf]
      %v341 = vld [vmem:[%s270 + $0x110] sm:$0xf]
      %v342 = vunpack.c.l.bf16 %v291
      %v343 = vunpack.c.l.bf16 %v292
      %v344 = vunpack.c.l.bf16 %v293
      %v345 = vunpack.c.l.bf16 %v294
      %v346 = vunpack.c.l.bf16 %v295
      %v347 = vunpack.c.l.bf16 %v296
      %v348 = vunpack.c.l.bf16 %v297
      %v349 = vunpack.c.l.bf16 %v298
      %v350 = vunpack.c.l.bf16 %v299
      %v351 = vunpack.c.l.bf16 %v300
      %v352 = vunpack.c.l.bf16 %v301
      %v353 = vunpack.c.l.bf16 %v302
      %v354 = vunpack.c.l.bf16 %v303
      %v355 = vunpack.c.l.bf16 %v304
      %v356 = vunpack.c.l.bf16 %v305
      %v357 = vunpack.c.l.bf16 %v306
      %v358 = vunpack.c.l.bf16 %v307
      %v359 = vunpack.c.l.bf16 %v308
      %v360 = vunpack.c.l.bf16 %v309
      %v361 = vunpack.c.l.bf16 %v310
      %v362 = vunpack.c.l.bf16 %v311
      %v363 = vunpack.c.l.bf16 %v312
      %v364 = vunpack.c.l.bf16 %v313
      %v365 = vunpack.c.l.bf16 %v314
      %v366 = vunpack.c.l.bf16 %v315
      %v367 = vunpack.c.l.bf16 %v316
      %v368 = vunpack.c.l.bf16 %v317
      %v369 = vunpack.c.l.bf16 %v318
      %v370 = vunpack.c.l.bf16 %v319
      %v371 = vunpack.c.l.bf16 %v320
      %v372 = vunpack.c.l.bf16 %v321
      %v373 = vunpack.c.l.bf16 %v322
      %v374 = vunpack.c.l.bf16 %v323
      %v375 = vunpack.c.l.bf16 %v324
      %v376 = vunpack.c.l.bf16 %v325
      %v377 = vunpack.c.l.bf16 %v326
      %v378 = vunpack.c.l.bf16 %v327
      %v379 = vunpack.c.l.bf16 %v328
      %v380 = vunpack.c.l.bf16 %v329
      %v381 = vunpack.c.l.bf16 %v330
      %v382 = vunpack.c.l.bf16 %v331
      %v383 = vunpack.c.l.bf16 %v332
      %v384 = vunpack.c.l.bf16 %v333
      %v385 = vunpack.c.l.bf16 %v334
      %v386 = vunpack.c.l.bf16 %v335
      %v387 = vunpack.c.l.bf16 %v336
      %v388 = vunpack.c.l.bf16 %v337
      %v389 = vunpack.c.l.bf16 %v338
      %v390 = vunpack.c.l.bf16 %v339
      %v391 = vunpack.c.l.bf16 %v340
      %v392 = vunpack.c.l.bf16 %v341
      %393 = vst [vmem:[#allocation2] sm:$0xff] 0.0
      %394 = vst [vmem:[#allocation2 + $0x8] sm:$0xff] 0.0
      %395 = vst [vmem:[#allocation2 + $0x10] sm:$0xff] 0.0
      %396 = vst [vmem:[#allocation2 + $0x18] sm:$0xff] 0.0
      %397 = vst [vmem:[#allocation2 + $0x20] sm:$0xff] 0.0
      %398 = vst [vmem:[#allocation2 + $0x28] sm:$0xff] 0.0
      %399 = vst [vmem:[#allocation2 + $0x30] sm:$0xff] 0.0
      %400 = vst [vmem:[#allocation2 + $0x38] sm:$0xff] 0.0
      %v401 = vpack.c.bf16 %v344, %v342
      %v402 = vpack.c.bf16 %v348, %v346
      %v403 = vpack.c.bf16 %v352, %v350
      %v404 = vpack.c.bf16 %v356, %v354
      %v405 = vld [vmem:[#allocation2] sm:$0xff]
      %v406 = vld [vmem:[#allocation2 + $0x8] sm:$0xff]
      %v407 = vld [vmem:[#allocation2 + $0x10] sm:$0xff]
      %v408 = vld [vmem:[#allocation2 + $0x18] sm:$0xff]
      %v409 = vld [vmem:[#allocation2 + $0x20] sm:$0xff]
      %v410 = vld [vmem:[#allocation2 + $0x28] sm:$0xff]
      %v411 = vld [vmem:[#allocation2 + $0x30] sm:$0xff]
      %v412 = vld [vmem:[#allocation2 + $0x38] sm:$0xff]
      %v413 = vld [vmem:[%s1] sm:$0xf]
      %vm414 = vcmask 64512
      %v416 = vsel %vm414, %v401, 0
      %v419 = vsel %vm414, %v402, 0
      %v422 = vsel %vm414, %v403, 0
      %v425 = vsel %vm414, %v404, 0
      %vm427 = vcmask 1043456
      %v429 = vsel %vm427, %v413, 0
      %431 = vmatprep.subr.bf16.mxu0 0
      %432 = vmatpush1.bf16.msra.mxu0 %v429
      %433 = vmatprep.subr.bf16.mxu0 0
      %434 = vmatpush1.bf16.msra.mxu0 0
      %435 = vmatprep.subr.bf16.mxu0 0
      %436 = vmatpush1.bf16.msra.mxu0 0
      %437 = vmatprep.subr.bf16.mxu0 0
      %438 = vmatpush1.bf16.msra.mxu0 0
      %439 = vmatprep.subr.bf16.mxu0 0
      %440 = vmatpush1.bf16.msra.mxu0 0
      %441 = vmatprep.subr.bf16.mxu0 0
      %442 = vmatpush1.bf16.msra.mxu0 0
      %443 = vmatprep.subr.bf16.mxu0 0
      %444 = vmatpush1.bf16.msra.mxu0 0
      %445 = vmatprep.subr.bf16.mxu0 0
      %446 = vmatpush1.bf16.msra.mxu0 0
      %447 = vmatprep.subr.bf16.mxu0 0
      %448 = vmatpush1.bf16.msra.mxu0 0
      %449 = vmatprep.subr.bf16.mxu0 0
      %450 = vmatpush1.bf16.msra.mxu0 0
      %451 = vmatprep.subr.bf16.mxu0 0
      %452 = vmatpush1.bf16.msra.mxu0 0
      %453 = vmatprep.subr.bf16.mxu0 0
      %454 = vmatpush1.bf16.msra.mxu0 0
      %455 = vmatprep.subr.bf16.mxu0 0
      %456 = vmatpush1.bf16.msra.mxu0 0
      %457 = vmatprep.subr.bf16.mxu0 0
      %458 = vmatpush1.bf16.msra.mxu0 0
      %459 = vmatprep.subr.bf16.mxu0 0
      %460 = vmatpush1.bf16.msra.mxu0 0
      %461 = vmatprep.subr.bf16.mxu0 0
      %462 = vmatpush1.bf16.msra.mxu0 0
      %463 = vmatprep.mubr.bf16.mxu0 0
      %464 = vmatmul.mubr.bf16.gmra.mrb[0].mxu0 %v416
      %v465 = vpop.f32.mrb[0].mxu0
      %v466 = vadd.f32 0.0, %v465
      %v467 = vpop.f32.mrb[0].mxu0
      %v468 = vpop.f32.mrb[0].mxu0
      %v469 = vadd.f32 0.0, %v468
      %v470 = vpop.f32.mrb[0].mxu0
      %471 = vmatprep.mubr.bf16.mxu0 0
      %472 = vmatmul.mubr.bf16.gmra.mrb[0].mxu0 %v419
      %v473 = vpop.f32.mrb[0].mxu0
      %v474 = vadd.f32 0.0, %v473
      %v475 = vpop.f32.mrb[0].mxu0
      %v476 = vpop.f32.mrb[0].mxu0
      %v477 = vadd.f32 0.0, %v476
      %v478 = vpop.f32.mrb[0].mxu0
      %479 = vmatprep.mubr.bf16.mxu0 0
      %480 = vmatmul.mubr.bf16.gmra.mrb[0].mxu0 %v422
      %v481 = vpop.f32.mrb[0].mxu0
      %v482 = vadd.f32 0.0, %v481
      %v483 = vpop.f32.mrb[0].mxu0
      %v484 = vpop.f32.mrb[0].mxu0
      %v485 = vadd.f32 0.0, %v484
      %v486 = vpop.f32.mrb[0].mxu0
      %487 = vmatprep.mubr.bf16.mxu0 0
      %488 = vmatmul.mubr.bf16.gmra.mrb[0].mxu0 %v425
      %v489 = vpop.f32.mrb[0].mxu0
      %v490 = vadd.f32 0.0, %v489
      %v491 = vpop.f32.mrb[0].mxu0
      %v492 = vpop.f32.mrb[0].mxu0
      %v493 = vadd.f32 0.0, %v492
      %v494 = vpop.f32.mrb[0].mxu0
      %495 = vdwg.mxu0
      %v496 = vadd.f32 %v405, %v466
      %v497 = vadd.f32 %v406, %v469
      %v498 = vadd.f32 %v407, %v474
      %v499 = vadd.f32 %v408, %v477
      %v500 = vadd.f32 %v409, %v482
      %v501 = vadd.f32 %v410, %v485
      %v502 = vadd.f32 %v411, %v490
      %v503 = vadd.f32 %v412, %v493
      %504 = vst [vmem:[#allocation2] sm:$0xff] %v496
      %505 = vst [vmem:[#allocation2 + $0x8] sm:$0xff] %v497
      %506 = vst [vmem:[#allocation2 + $0x10] sm:$0xff] %v498
      %507 = vst [vmem:[#allocation2 + $0x18] sm:$0xff] %v499
      %508 = vst [vmem:[#allocation2 + $0x20] sm:$0xff] %v500
      %509 = vst [vmem:[#allocation2 + $0x28] sm:$0xff] %v501
      %510 = vst [vmem:[#allocation2 + $0x30] sm:$0xff] %v502
      %511 = vst [vmem:[#allocation2 + $0x38] sm:$0xff] %v503
      %v512 = vpack.c.bf16 %v361, %v360
      %v513 = vpack.c.bf16 %v363, %v362
      %v514 = vpack.c.bf16 %v365, %v364
      %v515 = vpack.c.bf16 %v367, %v366
      %v516 = vld [vmem:[#allocation2] sm:$0xff]
      %v517 = vld [vmem:[#allocation2 + $0x8] sm:$0xff]
      %v518 = vld [vmem:[#allocation2 + $0x10] sm:$0xff]
      %v519 = vld [vmem:[#allocation2 + $0x18] sm:$0xff]
      %v520 = vld [vmem:[#allocation2 + $0x20] sm:$0xff]
      %v521 = vld [vmem:[#allocation2 + $0x28] sm:$0xff]
      %v522 = vld [vmem:[#allocation2 + $0x30] sm:$0xff]
      %v523 = vld [vmem:[#allocation2 + $0x38] sm:$0xff]
      %s524 = scalar_lea.vmem %s1, 4
      %v525 = vld [vmem:[%s524] sm:$0xf]
      %v527 = vsel %vm414, %v512, 0
      %v530 = vsel %vm414, %v513, 0
      %v533 = vsel %vm414, %v514, 0
      %v536 = vsel %vm414, %v515, 0
      %v539 = vsel %vm427, %v525, 0
      %541 = vmatprep.subr.bf16.mxu0 0
      %542 = vmatpush1.bf16.msra.mxu0 %v539
      %543 = vmatprep.subr.bf16.mxu0 0
      %544 = vmatpush1.bf16.msra.mxu0 0
      %545 = vmatprep.subr.bf16.mxu0 0
      %546 = vmatpush1.bf16.msra.mxu0 0
      %547 = vmatprep.subr.bf16.mxu0 0
      %548 = vmatpush1.bf16.msra.mxu0 0
      %549 = vmatprep.subr.bf16.mxu0 0
      %550 = vmatpush1.bf16.msra.mxu0 0
      %551 = vmatprep.subr.bf16.mxu0 0
      %552 = vmatpush1.bf16.msra.mxu0 0
      %553 = vmatprep.subr.bf16.mxu0 0
      %554 = vmatpush1.bf16.msra.mxu0 0
      %555 = vmatprep.subr.bf16.mxu0 0
      %556 = vmatpush1.bf16.msra.mxu0 0
      %557 = vmatprep.subr.bf16.mxu0 0
      %558 = vmatpush1.bf16.msra.mxu0 0
      %559 = vmatprep.subr.bf16.mxu0 0
      %560 = vmatpush1.bf16.msra.mxu0 0
      %561 = vmatprep.subr.bf16.mxu0 0
      %562 = vmatpush1.bf16.msra.mxu0 0
      %563 = vmatprep.subr.bf16.mxu0 0
      %564 = vmatpush1.bf16.msra.mxu0 0
      %565 = vmatprep.subr.bf16.mxu0 0
      %566 = vmatpush1.bf16.msra.mxu0 0
      %567 = vmatprep.subr.bf16.mxu0 0
      %568 = vmatpush1.bf16.msra.mxu0 0
      %569 = vmatprep.subr.bf16.mxu0 0
      %570 = vmatpush1.bf16.msra.mxu0 0
      %571 = vmatprep.subr.bf16.mxu0 0
      %572 = vmatpush1.bf16.msra.mxu0 0
      %573 = vmatprep.mubr.bf16.mxu0 0
      %574 = vmatmul.mubr.bf16.gmra.mrb[0].mxu0 %v527
      %v575 = vpop.f32.mrb[0].mxu0
      %v576 = vadd.f32 0.0, %v575
      %v577 = vpop.f32.mrb[0].mxu0
      %v578 = vpop.f32.mrb[0].mxu0
      %v579 = vadd.f32 0.0, %v578
      %v580 = vpop.f32.mrb[0].mxu0
      %581 = vmatprep.mubr.bf16.mxu0 0
      %582 = vmatmul.mubr.bf16.gmra.mrb[0].mxu0 %v530
      %v583 = vpop.f32.mrb[0].mxu0
      %v584 = vadd.f32 0.0, %v583
      %v585 = vpop.f32.mrb[0].mxu0
      %v586 = vpop.f32.mrb[0].mxu0
      %v587 = vadd.f32 0.0, %v586
      %v588 = vpop.f32.mrb[0].mxu0
      %589 = vmatprep.mubr.bf16.mxu0 0
      %590 = vmatmul.mubr.bf16.gmra.mrb[0].mxu0 %v533
      %v591 = vpop.f32.mrb[0].mxu0
      %v592 = vadd.f32 0.0, %v591
      %v593 = vpop.f32.mrb[0].mxu0
      %v594 = vpop.f32.mrb[0].mxu0
      %v595 = vadd.f32 0.0, %v594
      %v596 = vpop.f32.mrb[0].mxu0
      %597 = vmatprep.mubr.bf16.mxu0 0
      %598 = vmatmul.mubr.bf16.gmra.mrb[0].mxu0 %v536
      %v599 = vpop.f32.mrb[0].mxu0
      %v600 = vadd.f32 0.0, %v599
      %v601 = vpop.f32.mrb[0].mxu0
      %v602 = vpop.f32.mrb[0].mxu0
      %v603 = vadd.f32 0.0, %v602
      %v604 = vpop.f32.mrb[0].mxu0
      %605 = vdwg.mxu0
      %v606 = vadd.f32 %v516, %v576
      %v607 = vadd.f32 %v517, %v579
      %v608 = vadd.f32 %v518, %v584
      %v609 = vadd.f32 %v519, %v587
      %v610 = vadd.f32 %v520, %v592
      %v611 = vadd.f32 %v521, %v595
      %v612 = vadd.f32 %v522, %v600
      %v613 = vadd.f32 %v523, %v603
      %614 = vst [vmem:[#allocation2] sm:$0xff] %v606
      %615 = vst [vmem:[#allocation2 + $0x8] sm:$0xff] %v607
      %616 = vst [vmem:[#allocation2 + $0x10] sm:$0xff] %v608
      %617 = vst [vmem:[#allocation2 + $0x18] sm:$0xff] %v609
      %618 = vst [vmem:[#allocation2 + $0x20] sm:$0xff] %v610
      %619 = vst [vmem:[#allocation2 + $0x28] sm:$0xff] %v611
      %620 = vst [vmem:[#allocation2 + $0x30] sm:$0xff] %v612
      %621 = vst [vmem:[#allocation2 + $0x38] sm:$0xff] %v613
      %vm638 = vcmask 1046528
      %v639 = vrot.slane %v342, 1
      %v640 = vrot.slane %v343, 1
      %v641 = vsel %vm638, %v639, %v640
      %v642 = vrot.slane %v344, 1
      %v643 = vrot.slane %v345, 1
      %v644 = vsel %vm638, %v642, %v643
      %v645 = vrot.slane %v346, 1
      %v646 = vrot.slane %v347, 1
      %v647 = vsel %vm638, %v645, %v646
      %v648 = vrot.slane %v348, 1
      %v649 = vrot.slane %v349, 1
      %v650 = vsel %vm638, %v648, %v649
      %v651 = vrot.slane %v350, 1
      %v652 = vrot.slane %v351, 1
      %v653 = vsel %vm638, %v651, %v652
      %v654 = vrot.slane %v352, 1
      %v655 = vrot.slane %v353, 1
      %v656 = vsel %vm638, %v654, %v655
      %v657 = vrot.slane %v354, 1
      %v658 = vrot.slane %v355, 1
      %v659 = vsel %vm638, %v657, %v658
      %v660 = vrot.slane %v356, 1
      %v661 = vrot.slane %v357, 1
      %v662 = vsel %vm638, %v660, %v661
      %v671 = vpack.c.bf16 %v644, %v641
      %v672 = vpack.c.bf16 %v650, %v647
      %v673 = vpack.c.bf16 %v656, %v653
      %v674 = vpack.c.bf16 %v662, %v659
      %v675 = vld [vmem:[#allocation2] sm:$0xff]
      %v676 = vld [vmem:[#allocation2 + $0x8] sm:$0xff]
      %v677 = vld [vmem:[#allocation2 + $0x10] sm:$0xff]
      %v678 = vld [vmem:[#allocation2 + $0x18] sm:$0xff]
      %v679 = vld [vmem:[#allocation2 + $0x20] sm:$0xff]
      %v680 = vld [vmem:[#allocation2 + $0x28] sm:$0xff]
      %v681 = vld [vmem:[#allocation2 + $0x30] sm:$0xff]
      %v682 = vld [vmem:[#allocation2 + $0x38] sm:$0xff]
      %s683 = scalar_lea.vmem %s1, 8
      %v684 = vld [vmem:[%s683] sm:$0xf]
      %v686 = vsel %vm414, %v671, 0
      %v689 = vsel %vm414, %v672, 0
      %v692 = vsel %vm414, %v673, 0
      %v695 = vsel %vm414, %v674, 0
      %v698 = vsel %vm427, %v684, 0
      %700 = vmatprep.subr.bf16.mxu0 0
      %701 = vmatpush1.bf16.msra.mxu0 %v698
      %702 = vmatprep.subr.bf16.mxu0 0
      %703 = vmatpush1.bf16.msra.mxu0 0
      %704 = vmatprep.subr.bf16.mxu0 0
      %705 = vmatpush1.bf16.msra.mxu0 0
      %706 = vmatprep.subr.bf16.mxu0 0
      %707 = vmatpush1.bf16.msra.mxu0 0
      %708 = vmatprep.subr.bf16.mxu0 0
      %709 = vmatpush1.bf16.msra.mxu0 0
      %710 = vmatprep.subr.bf16.mxu0 0
      %711 = vmatpush1.bf16.msra.mxu0 0
      %712 = vmatprep.subr.bf16.mxu0 0
      %713 = vmatpush1.bf16.msra.mxu0 0
      %714 = vmatprep.subr.bf16.mxu0 0
      %715 = vmatpush1.bf16.msra.mxu0 0
      %716 = vmatprep.subr.bf16.mxu0 0
      %717 = vmatpush1.bf16.msra.mxu0 0
      %718 = vmatprep.subr.bf16.mxu0 0
      %719 = vmatpush1.bf16.msra.mxu0 0
      %720 = vmatprep.subr.bf16.mxu0 0
      %721 = vmatpush1.bf16.msra.mxu0 0
      %722 = vmatprep.subr.bf16.mxu0 0
      %723 = vmatpush1.bf16.msra.mxu0 0
      %724 = vmatprep.subr.bf16.mxu0 0
      %725 = vmatpush1.bf16.msra.mxu0 0
      %726 = vmatprep.subr.bf16.mxu0 0
      %727 = vmatpush1.bf16.msra.mxu0 0
      %728 = vmatprep.subr.bf16.mxu0 0
      %729 = vmatpush1.bf16.msra.mxu0 0
      %730 = vmatprep.subr.bf16.mxu0 0
      %731 = vmatpush1.bf16.msra.mxu0 0
      %732 = vmatprep.mubr.bf16.mxu0 0
      %733 = vmatmul.mubr.bf16.gmra.mrb[0].mxu0 %v686
      %v734 = vpop.f32.mrb[0].mxu0
      %v735 = vadd.f32 0.0, %v734
      %v736 = vpop.f32.mrb[0].mxu0
      %v737 = vpop.f32.mrb[0].mxu0
      %v738 = vadd.f32 0.0, %v737
      %v739 = vpop.f32.mrb[0].mxu0
      %740 = vmatprep.mubr.bf16.mxu0 0
      %741 = vmatmul.mubr.bf16.gmra.mrb[0].mxu0 %v689
      %v742 = vpop.f32.mrb[0].mxu0
      %v743 = vadd.f32 0.0, %v742
      %v744 = vpop.f32.mrb[0].mxu0
      %v745 = vpop.f32.mrb[0].mxu0
      %v746 = vadd.f32 0.0, %v745
      %v747 = vpop.f32.mrb[0].mxu0
      %748 = vmatprep.mubr.bf16.mxu0 0
      %749 = vmatmul.mubr.bf16.gmra.mrb[0].mxu0 %v692
      %v750 = vpop.f32.mrb[0].mxu0
      %v751 = vadd.f32 0.0, %v750
      %v752 = vpop.f32.mrb[0].mxu0
      %v753 = vpop.f32.mrb[0].mxu0
      %v754 = vadd.f32 0.0, %v753
      %v755 = vpop.f32.mrb[0].mxu0
      %756 = vmatprep.mubr.bf16.mxu0 0
      %757 = vmatmul.mubr.bf16.gmra.mrb[0].mxu0 %v695
      %v758 = vpop.f32.mrb[0].mxu0
      %v759 = vadd.f32 0.0, %v758
      %v760 = vpop.f32.mrb[0].mxu0
      %v761 = vpop.f32.mrb[0].mxu0
      %v762 = vadd.f32 0.0, %v761
      %v763 = vpop.f32.mrb[0].mxu0
      %764 = vdwg.mxu0
      %v765 = vadd.f32 %v675, %v735
      %v766 = vadd.f32 %v676, %v738
      %v767 = vadd.f32 %v677, %v743
      %v768 = vadd.f32 %v678, %v746
      %v769 = vadd.f32 %v679, %v751
      %v770 = vadd.f32 %v680, %v754
      %v771 = vadd.f32 %v681, %v759
      %v772 = vadd.f32 %v682, %v762
      %773 = vst [vmem:[#allocation2] sm:$0xff] %v765
      %774 = vst [vmem:[#allocation2 + $0x8] sm:$0xff] %v766
      %775 = vst [vmem:[#allocation2 + $0x10] sm:$0xff] %v767
      %776 = vst [vmem:[#allocation2 + $0x18] sm:$0xff] %v768
      %777 = vst [vmem:[#allocation2 + $0x20] sm:$0xff] %v769
      %778 = vst [vmem:[#allocation2 + $0x28] sm:$0xff] %v770
      %779 = vst [vmem:[#allocation2 + $0x30] sm:$0xff] %v771
      %780 = vst [vmem:[#allocation2 + $0x38] sm:$0xff] %v772
      %v781 = vpack.c.bf16 %v371, %v369
      %v782 = vpack.c.bf16 %v375, %v373
      %v783 = vpack.c.bf16 %v379, %v377
      %v784 = vpack.c.bf16 %v383, %v381
      %v785 = vld [vmem:[#allocation2] sm:$0xff]
      %v786 = vld [vmem:[#allocation2 + $0x8] sm:$0xff]
      %v787 = vld [vmem:[#allocation2 + $0x10] sm:$0xff]
      %v788 = vld [vmem:[#allocation2 + $0x18] sm:$0xff]
      %v789 = vld [vmem:[#allocation2 + $0x20] sm:$0xff]
      %v790 = vld [vmem:[#allocation2 + $0x28] sm:$0xff]
      %v791 = vld [vmem:[#allocation2 + $0x30] sm:$0xff]
      %v792 = vld [vmem:[#allocation2 + $0x38] sm:$0xff]
      %s793 = scalar_lea.vmem %s1, 12
      %v794 = vld [vmem:[%s793] sm:$0xf]
      %v796 = vsel %vm414, %v781, 0
      %v799 = vsel %vm414, %v782, 0
      %v802 = vsel %vm414, %v783, 0
      %v805 = vsel %vm414, %v784, 0
      %v808 = vsel %vm427, %v794, 0
      %810 = vmatprep.subr.bf16.mxu0 0
      %811 = vmatpush1.bf16.msra.mxu0 %v808
      %812 = vmatprep.subr.bf16.mxu0 0
      %813 = vmatpush1.bf16.msra.mxu0 0
      %814 = vmatprep.subr.bf16.mxu0 0
      %815 = vmatpush1.bf16.msra.mxu0 0
      %816 = vmatprep.subr.bf16.mxu0 0
      %817 = vmatpush1.bf16.msra.mxu0 0
      %818 = vmatprep.subr.bf16.mxu0 0
      %819 = vmatpush1.bf16.msra.mxu0 0
      %820 = vmatprep.subr.bf16.mxu0 0
      %821 = vmatpush1.bf16.msra.mxu0 0
      %822 = vmatprep.subr.bf16.mxu0 0
      %823 = vmatpush1.bf16.msra.mxu0 0
      %824 = vmatprep.subr.bf16.mxu0 0
      %825 = vmatpush1.bf16.msra.mxu0 0
      %826 = vmatprep.subr.bf16.mxu0 0
      %827 = vmatpush1.bf16.msra.mxu0 0
      %828 = vmatprep.subr.bf16.mxu0 0
      %829 = vmatpush1.bf16.msra.mxu0 0
      %830 = vmatprep.subr.bf16.mxu0 0
      %831 = vmatpush1.bf16.msra.mxu0 0
      %832 = vmatprep.subr.bf16.mxu0 0
      %833 = vmatpush1.bf16.msra.mxu0 0
      %834 = vmatprep.subr.bf16.mxu0 0
      %835 = vmatpush1.bf16.msra.mxu0 0
      %836 = vmatprep.subr.bf16.mxu0 0
      %837 = vmatpush1.bf16.msra.mxu0 0
      %838 = vmatprep.subr.bf16.mxu0 0
      %839 = vmatpush1.bf16.msra.mxu0 0
      %840 = vmatprep.subr.bf16.mxu0 0
      %841 = vmatpush1.bf16.msra.mxu0 0
      %842 = vmatprep.mubr.bf16.mxu0 0
      %843 = vmatmul.mubr.bf16.gmra.mrb[0].mxu0 %v796
      %v844 = vpop.f32.mrb[0].mxu0
      %v845 = vadd.f32 0.0, %v844
      %v846 = vpop.f32.mrb[0].mxu0
      %v847 = vpop.f32.mrb[0].mxu0
      %v848 = vadd.f32 0.0, %v847
      %v849 = vpop.f32.mrb[0].mxu0
      %850 = vmatprep.mubr.bf16.mxu0 0
      %851 = vmatmul.mubr.bf16.gmra.mrb[0].mxu0 %v799
      %v852 = vpop.f32.mrb[0].mxu0
      %v853 = vadd.f32 0.0, %v852
      %v854 = vpop.f32.mrb[0].mxu0
      %v855 = vpop.f32.mrb[0].mxu0
      %v856 = vadd.f32 0.0, %v855
      %v857 = vpop.f32.mrb[0].mxu0
      %858 = vmatprep.mubr.bf16.mxu0 0
      %859 = vmatmul.mubr.bf16.gmra.mrb[0].mxu0 %v802
      %v860 = vpop.f32.mrb[0].mxu0
      %v861 = vadd.f32 0.0, %v860
      %v862 = vpop.f32.mrb[0].mxu0
      %v863 = vpop.f32.mrb[0].mxu0
      %v864 = vadd.f32 0.0, %v863
      %v865 = vpop.f32.mrb[0].mxu0
      %866 = vmatprep.mubr.bf16.mxu0 0
      %867 = vmatmul.mubr.bf16.gmra.mrb[0].mxu0 %v805
      %v868 = vpop.f32.mrb[0].mxu0
      %v869 = vadd.f32 0.0, %v868
      %v870 = vpop.f32.mrb[0].mxu0
      %v871 = vpop.f32.mrb[0].mxu0
      %v872 = vadd.f32 0.0, %v871
      %v873 = vpop.f32.mrb[0].mxu0
      %874 = vdwg.mxu0
      %v875 = vadd.f32 %v785, %v845
      %v876 = vadd.f32 %v786, %v848
      %v877 = vadd.f32 %v787, %v853
      %v878 = vadd.f32 %v788, %v856
      %v879 = vadd.f32 %v789, %v861
      %v880 = vadd.f32 %v790, %v864
      %v881 = vadd.f32 %v791, %v869
      %v882 = vadd.f32 %v792, %v872
      %883 = vst [vmem:[#allocation2] sm:$0xff] %v875
      %884 = vst [vmem:[#allocation2 + $0x8] sm:$0xff] %v876
      %885 = vst [vmem:[#allocation2 + $0x10] sm:$0xff] %v877
      %886 = vst [vmem:[#allocation2 + $0x18] sm:$0xff] %v878
      %887 = vst [vmem:[#allocation2 + $0x20] sm:$0xff] %v879
      %888 = vst [vmem:[#allocation2 + $0x28] sm:$0xff] %v880
      %889 = vst [vmem:[#allocation2 + $0x30] sm:$0xff] %v881
      %890 = vst [vmem:[#allocation2 + $0x38] sm:$0xff] %v882
      %v891 = vpack.c.bf16 %v386, %v385
      %v892 = vpack.c.bf16 %v388, %v387
      %v893 = vpack.c.bf16 %v390, %v389
      %v894 = vpack.c.bf16 %v392, %v391
      %v895 = vld [vmem:[#allocation2] sm:$0xff]
      %v896 = vld [vmem:[#allocation2 + $0x8] sm:$0xff]
      %v897 = vld [vmem:[#allocation2 + $0x10] sm:$0xff]
      %v898 = vld [vmem:[#allocation2 + $0x18] sm:$0xff]
      %v899 = vld [vmem:[#allocation2 + $0x20] sm:$0xff]
      %v900 = vld [vmem:[#allocation2 + $0x28] sm:$0xff]
      %v901 = vld [vmem:[#allocation2 + $0x30] sm:$0xff]
      %v902 = vld [vmem:[#allocation2 + $0x38] sm:$0xff]
      %s903 = scalar_lea.vmem %s1, 16
      %v904 = vld [vmem:[%s903] sm:$0xf]
      %v906 = vsel %vm414, %v891, 0
      %v909 = vsel %vm414, %v892, 0
      %v912 = vsel %vm414, %v893, 0
      %v915 = vsel %vm414, %v894, 0
      %v918 = vsel %vm427, %v904, 0
      %920 = vmatprep.subr.bf16.mxu0 0
      %921 = vmatpush1.bf16.msra.mxu0 %v918
      %922 = vmatprep.subr.bf16.mxu0 0
      %923 = vmatpush1.bf16.msra.mxu0 0
      %924 = vmatprep.subr.bf16.mxu0 0
      %925 = vmatpush1.bf16.msra.mxu0 0
      %926 = vmatprep.subr.bf16.mxu0 0
      %927 = vmatpush1.bf16.msra.mxu0 0
      %928 = vmatprep.subr.bf16.mxu0 0
      %929 = vmatpush1.bf16.msra.mxu0 0
      %930 = vmatprep.subr.bf16.mxu0 0
      %931 = vmatpush1.bf16.msra.mxu0 0
      %932 = vmatprep.subr.bf16.mxu0 0
      %933 = vmatpush1.bf16.msra.mxu0 0
      %934 = vmatprep.subr.bf16.mxu0 0
      %935 = vmatpush1.bf16.msra.mxu0 0
      %936 = vmatprep.subr.bf16.mxu0 0
      %937 = vmatpush1.bf16.msra.mxu0 0
      %938 = vmatprep.subr.bf16.mxu0 0
      %939 = vmatpush1.bf16.msra.mxu0 0
      %940 = vmatprep.subr.bf16.mxu0 0
      %941 = vmatpush1.bf16.msra.mxu0 0
      %942 = vmatprep.subr.bf16.mxu0 0
      %943 = vmatpush1.bf16.msra.mxu0 0
      %944 = vmatprep.subr.bf16.mxu0 0
      %945 = vmatpush1.bf16.msra.mxu0 0
      %946 = vmatprep.subr.bf16.mxu0 0
      %947 = vmatpush1.bf16.msra.mxu0 0
      %948 = vmatprep.subr.bf16.mxu0 0
      %949 = vmatpush1.bf16.msra.mxu0 0
      %950 = vmatprep.subr.bf16.mxu0 0
      %951 = vmatpush1.bf16.msra.mxu0 0
      %952 = vmatprep.mubr.bf16.mxu0 0
      %953 = vmatmul.mubr.bf16.gmra.mrb[0].mxu0 %v906
      %v954 = vpop.f32.mrb[0].mxu0
      %v955 = vadd.f32 0.0, %v954
      %v956 = vpop.f32.mrb[0].mxu0
      %v957 = vpop.f32.mrb[0].mxu0
      %v958 = vadd.f32 0.0, %v957
      %v959 = vpop.f32.mrb[0].mxu0
      %960 = vmatprep.mubr.bf16.mxu0 0
      %961 = vmatmul.mubr.bf16.gmra.mrb[0].mxu0 %v909
      %v962 = vpop.f32.mrb[0].mxu0
      %v963 = vadd.f32 0.0, %v962
      %v964 = vpop.f32.mrb[0].mxu0
      %v965 = vpop.f32.mrb[0].mxu0
      %v966 = vadd.f32 0.0, %v965
      %v967 = vpop.f32.mrb[0].mxu0
      %968 = vmatprep.mubr.bf16.mxu0 0
      %969 = vmatmul.mubr.bf16.gmra.mrb[0].mxu0 %v912
      %v970 = vpop.f32.mrb[0].mxu0
      %v971 = vadd.f32 0.0, %v970
      %v972 = vpop.f32.mrb[0].mxu0
      %v973 = vpop.f32.mrb[0].mxu0
      %v974 = vadd.f32 0.0, %v973
      %v975 = vpop.f32.mrb[0].mxu0
      %976 = vmatprep.mubr.bf16.mxu0 0
      %977 = vmatmul.mubr.bf16.gmra.mrb[0].mxu0 %v915
      %v978 = vpop.f32.mrb[0].mxu0
      %v979 = vadd.f32 0.0, %v978
      %v980 = vpop.f32.mrb[0].mxu0
      %v981 = vpop.f32.mrb[0].mxu0
      %v982 = vadd.f32 0.0, %v981
      %v983 = vpop.f32.mrb[0].mxu0
      %984 = vdwg.mxu0
      %v985 = vadd.f32 %v895, %v955
      %v986 = vadd.f32 %v896, %v958
      %v987 = vadd.f32 %v897, %v963
      %v988 = vadd.f32 %v898, %v966
      %v989 = vadd.f32 %v899, %v971
      %v990 = vadd.f32 %v900, %v974
      %v991 = vadd.f32 %v901, %v979
      %v992 = vadd.f32 %v902, %v982
      %993 = vst [vmem:[#allocation2] sm:$0xff] %v985
      %994 = vst [vmem:[#allocation2 + $0x8] sm:$0xff] %v986
      %995 = vst [vmem:[#allocation2 + $0x10] sm:$0xff] %v987
      %996 = vst [vmem:[#allocation2 + $0x18] sm:$0xff] %v988
      %997 = vst [vmem:[#allocation2 + $0x20] sm:$0xff] %v989
      %998 = vst [vmem:[#allocation2 + $0x28] sm:$0xff] %v990
      %999 = vst [vmem:[#allocation2 + $0x30] sm:$0xff] %v991
      %1000 = vst [vmem:[#allocation2 + $0x38] sm:$0xff] %v992
      %v1001 = vld [vmem:[%s2] sm:$0xf]
      %v1003 = vsel %vm427, %v1001, 0
      %1005 = vmatprep.subr.bf16.mxu0 0
      %1006 = vmatpush1.bf16.msra.mxu0 %v1003
      %1007 = vmatprep.subr.bf16.mxu0 0
      %1008 = vmatpush1.bf16.msra.mxu0 0
      %1009 = vmatprep.subr.bf16.mxu0 0
      %1010 = vmatpush1.bf16.msra.mxu0 0
      %1011 = vmatprep.subr.bf16.mxu0 0
      %1012 = vmatpush1.bf16.msra.mxu0 0
      %1013 = vmatprep.subr.bf16.mxu0 0
      %1014 = vmatpush1.bf16.msra.mxu0 0
      %1015 = vmatprep.subr.bf16.mxu0 0
      %1016 = vmatpush1.bf16.msra.mxu0 0
      %1017 = vmatprep.subr.bf16.mxu0 0
      %1018 = vmatpush1.bf16.msra.mxu0 0
      %1019 = vmatprep.subr.bf16.mxu0 0
      %1020 = vmatpush1.bf16.msra.mxu0 0
      %1021 = vmatprep.subr.bf16.mxu0 0
      %1022 = vmatpush1.bf16.msra.mxu0 0
      %1023 = vmatprep.subr.bf16.mxu0 0
      %1024 = vmatpush1.bf16.msra.mxu0 0
      %1025 = vmatprep.subr.bf16.mxu0 0
      %1026 = vmatpush1.bf16.msra.mxu0 0
      %1027 = vmatprep.subr.bf16.mxu0 0
      %1028 = vmatpush1.bf16.msra.mxu0 0
      %1029 = vmatprep.subr.bf16.mxu0 0
      %1030 = vmatpush1.bf16.msra.mxu0 0
      %1031 = vmatprep.subr.bf16.mxu0 0
      %1032 = vmatpush1.bf16.msra.mxu0 0
      %1033 = vmatprep.subr.bf16.mxu0 0
      %1034 = vmatpush1.bf16.msra.mxu0 0
      %1035 = vmatprep.subr.bf16.mxu0 0
      %1036 = vmatpush1.bf16.msra.mxu0 0
      %1037 = vmatprep.mubr.bf16.mxu0 0
      %1038 = vmatmul.mubr.bf16.gmra.mrb[0].mxu0 %v906
      %v1039 = vpop.f32.mrb[0].mxu0
      %v1040 = vadd.f32 0.0, %v1039
      %v1041 = vpop.f32.mrb[0].mxu0
      %v1042 = vpop.f32.mrb[0].mxu0
      %v1043 = vadd.f32 0.0, %v1042
      %v1044 = vpop.f32.mrb[0].mxu0
      %1045 = vmatprep.mubr.bf16.mxu0 0
      %1046 = vmatmul.mubr.bf16.gmra.mrb[0].mxu0 %v909
      %v1047 = vpop.f32.mrb[0].mxu0
      %v1048 = vadd.f32 0.0, %v1047
      %v1049 = vpop.f32.mrb[0].mxu0
      %v1050 = vpop.f32.mrb[0].mxu0
      %v1051 = vadd.f32 0.0, %v1050
      %v1052 = vpop.f32.mrb[0].mxu0
      %1053 = vmatprep.mubr.bf16.mxu0 0
      %1054 = vmatmul.mubr.bf16.gmra.mrb[0].mxu0 %v912
      %v1055 = vpop.f32.mrb[0].mxu0
      %v1056 = vadd.f32 0.0, %v1055
      %v1057 = vpop.f32.mrb[0].mxu0
      %v1058 = vpop.f32.mrb[0].mxu0
      %v1059 = vadd.f32 0.0, %v1058
      %v1060 = vpop.f32.mrb[0].mxu0
      %1061 = vmatprep.mubr.bf16.mxu0 0
      %1062 = vmatmul.mubr.bf16.gmra.mrb[0].mxu0 %v915
      %v1063 = vpop.f32.mrb[0].mxu0
      %v1064 = vadd.f32 0.0, %v1063
      %v1065 = vpop.f32.mrb[0].mxu0
      %v1066 = vpop.f32.mrb[0].mxu0
      %v1067 = vadd.f32 0.0, %v1066
      %v1068 = vpop.f32.mrb[0].mxu0
      %1069 = vdwg.mxu0
      %v1070 = vpack.c.bf16 %v1040, %v1040
      %v1071 = vpack.c.bf16 %v1043, %v1043
      %v1072 = vpack.c.bf16 %v1048, %v1048
      %v1073 = vpack.c.bf16 %v1051, %v1051
      %v1074 = vpack.c.bf16 %v1056, %v1056
      %v1075 = vpack.c.bf16 %v1059, %v1059
      %v1076 = vpack.c.bf16 %v1064, %v1064
      %v1077 = vpack.c.bf16 %v1067, %v1067
      %1078 = vst [vmem:[%s285] sm:$0xf] %v1070
      %1079 = vst [vmem:[%s285 + $0x4] sm:$0xf] %v1071
      %1080 = vst [vmem:[%s285 + $0x8] sm:$0xf] %v1072
      %1081 = vst [vmem:[%s285 + $0xc] sm:$0xf] %v1073
      %1082 = vst [vmem:[%s285 + $0x10] sm:$0xf] %v1074
      %1083 = vst [vmem:[%s285 + $0x14] sm:$0xf] %v1075
      %1084 = vst [vmem:[%s285 + $0x18] sm:$0xf] %v1076
      %1085 = vst [vmem:[%s285 + $0x1c] sm:$0xf] %v1077
      %v1086 = vadd.f32 %v1040, %v1043
      %v1087 = vadd.f32 %v1086, %v1048
      %v1088 = vadd.f32 %v1087, %v1051
      %v1089 = vadd.f32 %v1088, %v1056
      %v1090 = vadd.f32 %v1089, %v1059
      %v1091 = vadd.f32 %v1090, %v1064
      %v1092 = vadd.f32 %v1091, %v1067
      %v1093 = vrot.slane %v1092, 4
      %v1094 = vadd.f32 %v1092, %v1093
      %v1095 = vrot.slane %v1094, 2
      %v1096 = vadd.f32 %v1094, %v1095
      %v1097 = vrot.slane %v1096, 1
      %v1098 = vadd.f32 %v1096, %v1097
      %v1099 = vmul.f32 %v1040, %v1040
      %v1100 = vmul.f32 %v1043, %v1043
      %v1101 = vmul.f32 %v1048, %v1048
      %v1102 = vmul.f32 %v1051, %v1051
      %v1103 = vmul.f32 %v1056, %v1056
      %v1104 = vmul.f32 %v1059, %v1059
      %v1105 = vmul.f32 %v1064, %v1064
      %v1106 = vmul.f32 %v1067, %v1067
      %v1107 = vadd.f32 %v1099, %v1100
      %v1108 = vadd.f32 %v1107, %v1101
      %v1109 = vadd.f32 %v1108, %v1102
      %v1110 = vadd.f32 %v1109, %v1103
      %v1111 = vadd.f32 %v1110, %v1104
      %v1112 = vadd.f32 %v1111, %v1105
      %v1113 = vadd.f32 %v1112, %v1106
      %v1114 = vrot.slane %v1113, 4
      %v1115 = vadd.f32 %v1113, %v1114
      %v1116 = vrot.slane %v1115, 2
      %v1117 = vadd.f32 %v1115, %v1116
      %v1118 = vrot.slane %v1117, 1
      %v1119 = vadd.f32 %v1117, %v1118
      %vm1120 = vcmask 1040384
      %v1121 = vsel %vm1120, %v1098, %v1119
      %1122 = vst [vmem:[%s289] sm:$0x3] %v1121
      %v1139 = vrot.slane %v369, 1
      %v1140 = vrot.slane %v370, 1
      %v1141 = vsel %vm638, %v1139, %v1140
      %v1142 = vrot.slane %v371, 1
      %v1143 = vrot.slane %v372, 1
      %v1144 = vsel %vm638, %v1142, %v1143
      %v1145 = vrot.slane %v373, 1
      %v1146 = vrot.slane %v374, 1
      %v1147 = vsel %vm638, %v1145, %v1146
      %v1148 = vrot.slane %v375, 1
      %v1149 = vrot.slane %v376, 1
      %v1150 = vsel %vm638, %v1148, %v1149
      %v1151 = vrot.slane %v377, 1
      %v1152 = vrot.slane %v378, 1
      %v1153 = vsel %vm638, %v1151, %v1152
      %v1154 = vrot.slane %v379, 1
      %v1155 = vrot.slane %v380, 1
      %v1156 = vsel %vm638, %v1154, %v1155
      %v1157 = vrot.slane %v381, 1
      %v1158 = vrot.slane %v382, 1
      %v1159 = vsel %vm638, %v1157, %v1158
      %v1160 = vrot.slane %v383, 1
      %v1161 = vrot.slane %v384, 1
      %v1162 = vsel %vm638, %v1160, %v1161
      %v1171 = vpack.c.bf16 %v1144, %v1141
      %v1172 = vpack.c.bf16 %v1150, %v1147
      %v1173 = vpack.c.bf16 %v1156, %v1153
      %v1174 = vpack.c.bf16 %v1162, %v1159
      %v1175 = vld [vmem:[#allocation2] sm:$0xff]
      %v1176 = vld [vmem:[#allocation2 + $0x8] sm:$0xff]
      %v1177 = vld [vmem:[#allocation2 + $0x10] sm:$0xff]
      %v1178 = vld [vmem:[#allocation2 + $0x18] sm:$0xff]
      %v1179 = vld [vmem:[#allocation2 + $0x20] sm:$0xff]
      %v1180 = vld [vmem:[#allocation2 + $0x28] sm:$0xff]
      %v1181 = vld [vmem:[#allocation2 + $0x30] sm:$0xff]
      %v1182 = vld [vmem:[#allocation2 + $0x38] sm:$0xff]
      %s1183 = scalar_lea.vmem %s1, 20
      %v1184 = vld [vmem:[%s1183] sm:$0xf]
      %v1186 = vsel %vm414, %v1171, 0
      %v1189 = vsel %vm414, %v1172, 0
      %v1192 = vsel %vm414, %v1173, 0
      %v1195 = vsel %vm414, %v1174, 0
      %v1198 = vsel %vm427, %v1184, 0
      %1200 = vmatprep.subr.bf16.mxu0 0
      %1201 = vmatpush1.bf16.msra.mxu0 %v1198
      %1202 = vmatprep.subr.bf16.mxu0 0
      %1203 = vmatpush1.bf16.msra.mxu0 0
      %1204 = vmatprep.subr.bf16.mxu0 0
      %1205 = vmatpush1.bf16.msra.mxu0 0
      %1206 = vmatprep.subr.bf16.mxu0 0
      %1207 = vmatpush1.bf16.msra.mxu0 0
      %1208 = vmatprep.subr.bf16.mxu0 0
      %1209 = vmatpush1.bf16.msra.mxu0 0
      %1210 = vmatprep.subr.bf16.mxu0 0
      %1211 = vmatpush1.bf16.msra.mxu0 0
      %1212 = vmatprep.subr.bf16.mxu0 0
      %1213 = vmatpush1.bf16.msra.mxu0 0
      %1214 = vmatprep.subr.bf16.mxu0 0
      %1215 = vmatpush1.bf16.msra.mxu0 0
      %1216 = vmatprep.subr.bf16.mxu0 0
      %1217 = vmatpush1.bf16.msra.mxu0 0
      %1218 = vmatprep.subr.bf16.mxu0 0
      %1219 = vmatpush1.bf16.msra.mxu0 0
      %1220 = vmatprep.subr.bf16.mxu0 0
      %1221 = vmatpush1.bf16.msra.mxu0 0
      %1222 = vmatprep.subr.bf16.mxu0 0
      %1223 = vmatpush1.bf16.msra.mxu0 0
      %1224 = vmatprep.subr.bf16.mxu0 0
      %1225 = vmatpush1.bf16.msra.mxu0 0
      %1226 = vmatprep.subr.bf16.mxu0 0
      %1227 = vmatpush1.bf16.msra.mxu0 0
      %1228 = vmatprep.subr.bf16.mxu0 0
      %1229 = vmatpush1.bf16.msra.mxu0 0
      %1230 = vmatprep.subr.bf16.mxu0 0
      %1231 = vmatpush1.bf16.msra.mxu0 0
      %1232 = vmatprep.mubr.bf16.mxu0 0
      %1233 = vmatmul.mubr.bf16.gmra.mrb[0].mxu0 %v1186
      %v1234 = vpop.f32.mrb[0].mxu0
      %v1235 = vadd.f32 0.0, %v1234
      %v1236 = vpop.f32.mrb[0].mxu0
      %v1237 = vpop.f32.mrb[0].mxu0
      %v1238 = vadd.f32 0.0, %v1237
      %v1239 = vpop.f32.mrb[0].mxu0
      %1240 = vmatprep.mubr.bf16.mxu0 0
      %1241 = vmatmul.mubr.bf16.gmra.mrb[0].mxu0 %v1189
      %v1242 = vpop.f32.mrb[0].mxu0
      %v1243 = vadd.f32 0.0, %v1242
      %v1244 = vpop.f32.mrb[0].mxu0
      %v1245 = vpop.f32.mrb[0].mxu0
      %v1246 = vadd.f32 0.0, %v1245
      %v1247 = vpop.f32.mrb[0].mxu0
      %1248 = vmatprep.mubr.bf16.mxu0 0
      %1249 = vmatmul.mubr.bf16.gmra.mrb[0].mxu0 %v1192
      %v1250 = vpop.f32.mrb[0].mxu0
      %v1251 = vadd.f32 0.0, %v1250
      %v1252 = vpop.f32.mrb[0].mxu0
      %v1253 = vpop.f32.mrb[0].mxu0
      %v1254 = vadd.f32 0.0, %v1253
      %v1255 = vpop.f32.mrb[0].mxu0
      %1256 = vmatprep.mubr.bf16.mxu0 0
      %1257 = vmatmul.mubr.bf16.gmra.mrb[0].mxu0 %v1195
      %v1258 = vpop.f32.mrb[0].mxu0
      %v1259 = vadd.f32 0.0, %v1258
      %v1260 = vpop.f32.mrb[0].mxu0
      %v1261 = vpop.f32.mrb[0].mxu0
      %v1262 = vadd.f32 0.0, %v1261
      %v1263 = vpop.f32.mrb[0].mxu0
      %1264 = vdwg.mxu0
      %v1265 = vadd.f32 %v1175, %v1235
      %v1266 = vadd.f32 %v1176, %v1238
      %v1267 = vadd.f32 %v1177, %v1243
      %v1268 = vadd.f32 %v1178, %v1246
      %v1269 = vadd.f32 %v1179, %v1251
      %v1270 = vadd.f32 %v1180, %v1254
      %v1271 = vadd.f32 %v1181, %v1259
      %v1272 = vadd.f32 %v1182, %v1262
      %1273 = vst [vmem:[#allocation2] sm:$0xff] %v1265
      %1274 = vst [vmem:[#allocation2 + $0x8] sm:$0xff] %v1266
      %1275 = vst [vmem:[#allocation2 + $0x10] sm:$0xff] %v1267
      %1276 = vst [vmem:[#allocation2 + $0x18] sm:$0xff] %v1268
      %1277 = vst [vmem:[#allocation2 + $0x20] sm:$0xff] %v1269
      %1278 = vst [vmem:[#allocation2 + $0x28] sm:$0xff] %v1270
      %1279 = vst [vmem:[#allocation2 + $0x30] sm:$0xff] %v1271
      %1280 = vst [vmem:[#allocation2 + $0x38] sm:$0xff] %v1272
      %v1281 = vpack.c.bf16 %v346, %v344
      %v1282 = vpack.c.bf16 %v350, %v348
      %v1283 = vpack.c.bf16 %v354, %v352
      %v1284 = vpack.c.bf16 %v358, %v356
      %v1285 = vld [vmem:[#allocation2] sm:$0xff]
      %v1286 = vld [vmem:[#allocation2 + $0x8] sm:$0xff]
      %v1287 = vld [vmem:[#allocation2 + $0x10] sm:$0xff]
      %v1288 = vld [vmem:[#allocation2 + $0x18] sm:$0xff]
      %v1289 = vld [vmem:[#allocation2 + $0x20] sm:$0xff]
      %v1290 = vld [vmem:[#allocation2 + $0x28] sm:$0xff]
      %v1291 = vld [vmem:[#allocation2 + $0x30] sm:$0xff]
      %v1292 = vld [vmem:[#allocation2 + $0x38] sm:$0xff]
      %s1293 = scalar_lea.vmem %s1, 24
      %v1294 = vld [vmem:[%s1293] sm:$0xf]
      %v1296 = vsel %vm414, %v1281, 0
      %v1299 = vsel %vm414, %v1282, 0
      %v1302 = vsel %vm414, %v1283, 0
      %v1305 = vsel %vm414, %v1284, 0
      %v1308 = vsel %vm427, %v1294, 0
      %1310 = vmatprep.subr.bf16.mxu0 0
      %1311 = vmatpush1.bf16.msra.mxu0 %v1308
      %1312 = vmatprep.subr.bf16.mxu0 0
      %1313 = vmatpush1.bf16.msra.mxu0 0
      %1314 = vmatprep.subr.bf16.mxu0 0
      %1315 = vmatpush1.bf16.msra.mxu0 0
      %1316 = vmatprep.subr.bf16.mxu0 0
      %1317 = vmatpush1.bf16.msra.mxu0 0
      %1318 = vmatprep.subr.bf16.mxu0 0
      %1319 = vmatpush1.bf16.msra.mxu0 0
      %1320 = vmatprep.subr.bf16.mxu0 0
      %1321 = vmatpush1.bf16.msra.mxu0 0
      %1322 = vmatprep.subr.bf16.mxu0 0
      %1323 = vmatpush1.bf16.msra.mxu0 0
      %1324 = vmatprep.subr.bf16.mxu0 0
      %1325 = vmatpush1.bf16.msra.mxu0 0
      %1326 = vmatprep.subr.bf16.mxu0 0
      %1327 = vmatpush1.bf16.msra.mxu0 0
      %1328 = vmatprep.subr.bf16.mxu0 0
      %1329 = vmatpush1.bf16.msra.mxu0 0
      %1330 = vmatprep.subr.bf16.mxu0 0
      %1331 = vmatpush1.bf16.msra.mxu0 0
      %1332 = vmatprep.subr.bf16.mxu0 0
      %1333 = vmatpush1.bf16.msra.mxu0 0
      %1334 = vmatprep.subr.bf16.mxu0 0
      %1335 = vmatpush1.bf16.msra.mxu0 0
      %1336 = vmatprep.subr.bf16.mxu0 0
      %1337 = vmatpush1.bf16.msra.mxu0 0
      %1338 = vmatprep.subr.bf16.mxu0 0
      %1339 = vmatpush1.bf16.msra.mxu0 0
      %1340 = vmatprep.subr.bf16.mxu0 0
      %1341 = vmatpush1.bf16.msra.mxu0 0
      %1342 = vmatprep.mubr.bf16.mxu0 0
      %1343 = vmatmul.mubr.bf16.gmra.mrb[0].mxu0 %v1296
      %v1344 = vpop.f32.mrb[0].mxu0
      %v1345 = vadd.f32 0.0, %v1344
      %v1346 = vpop.f32.mrb[0].mxu0
      %v1347 = vpop.f32.mrb[0].mxu0
      %v1348 = vadd.f32 0.0, %v1347
      %v1349 = vpop.f32.mrb[0].mxu0
      %1350 = vmatprep.mubr.bf16.mxu0 0
      %1351 = vmatmul.mubr.bf16.gmra.mrb[0].mxu0 %v1299
      %v1352 = vpop.f32.mrb[0].mxu0
      %v1353 = vadd.f32 0.0, %v1352
      %v1354 = vpop.f32.mrb[0].mxu0
      %v1355 = vpop.f32.mrb[0].mxu0
      %v1356 = vadd.f32 0.0, %v1355
      %v1357 = vpop.f32.mrb[0].mxu0
      %1358 = vmatprep.mubr.bf16.mxu0 0
      %1359 = vmatmul.mubr.bf16.gmra.mrb[0].mxu0 %v1302
      %v1360 = vpop.f32.mrb[0].mxu0
      %v1361 = vadd.f32 0.0, %v1360
      %v1362 = vpop.f32.mrb[0].mxu0
      %v1363 = vpop.f32.mrb[0].mxu0
      %v1364 = vadd.f32 0.0, %v1363
      %v1365 = vpop.f32.mrb[0].mxu0
      %1366 = vmatprep.mubr.bf16.mxu0 0
      %1367 = vmatmul.mubr.bf16.gmra.mrb[0].mxu0 %v1305
      %v1368 = vpop.f32.mrb[0].mxu0
      %v1369 = vadd.f32 0.0, %v1368
      %v1370 = vpop.f32.mrb[0].mxu0
      %v1371 = vpop.f32.mrb[0].mxu0
      %v1372 = vadd.f32 0.0, %v1371
      %v1373 = vpop.f32.mrb[0].mxu0
      %1374 = vdwg.mxu0
      %v1375 = vadd.f32 %v1285, %v1345
      %v1376 = vadd.f32 %v1286, %v1348
      %v1377 = vadd.f32 %v1287, %v1353
      %v1378 = vadd.f32 %v1288, %v1356
      %v1379 = vadd.f32 %v1289, %v1361
      %v1380 = vadd.f32 %v1290, %v1364
      %v1381 = vadd.f32 %v1291, %v1369
      %v1382 = vadd.f32 %v1292, %v1372
      %1383 = vst [vmem:[#allocation2] sm:$0xff] %v1375
      %1384 = vst [vmem:[#allocation2 + $0x8] sm:$0xff] %v1376
      %1385 = vst [vmem:[#allocation2 + $0x10] sm:$0xff] %v1377
      %1386 = vst [vmem:[#allocation2 + $0x18] sm:$0xff] %v1378
      %1387 = vst [vmem:[#allocation2 + $0x20] sm:$0xff] %v1379
      %1388 = vst [vmem:[#allocation2 + $0x28] sm:$0xff] %v1380
      %1389 = vst [vmem:[#allocation2 + $0x30] sm:$0xff] %v1381
      %1390 = vst [vmem:[#allocation2 + $0x38] sm:$0xff] %v1382
      %v1391 = vpack.c.bf16 %v362, %v361
      %v1392 = vpack.c.bf16 %v364, %v363
      %v1393 = vpack.c.bf16 %v366, %v365
      %v1394 = vpack.c.bf16 %v368, %v367
      %v1395 = vld [vmem:[#allocation2] sm:$0xff]
      %v1396 = vld [vmem:[#allocation2 + $0x8] sm:$0xff]
      %v1397 = vld [vmem:[#allocation2 + $0x10] sm:$0xff]
      %v1398 = vld [vmem:[#allocation2 + $0x18] sm:$0xff]
      %v1399 = vld [vmem:[#allocation2 + $0x20] sm:$0xff]
      %v1400 = vld [vmem:[#allocation2 + $0x28] sm:$0xff]
      %v1401 = vld [vmem:[#allocation2 + $0x30] sm:$0xff]
      %v1402 = vld [vmem:[#allocation2 + $0x38] sm:$0xff]
      %s1403 = scalar_lea.vmem %s1, 28
      %v1404 = vld [vmem:[%s1403] sm:$0xf]
      %v1406 = vsel %vm414, %v1391, 0
      %v1409 = vsel %vm414, %v1392, 0
      %v1412 = vsel %vm414, %v1393, 0
      %v1415 = vsel %vm414, %v1394, 0
      %v1418 = vsel %vm427, %v1404, 0
      %1420 = vmatprep.subr.bf16.mxu0 0
      %1421 = vmatpush1.bf16.msra.mxu0 %v1418
      %1422 = vmatprep.subr.bf16.mxu0 0
      %1423 = vmatpush1.bf16.msra.mxu0 0
      %1424 = vmatprep.subr.bf16.mxu0 0
      %1425 = vmatpush1.bf16.msra.mxu0 0
      %1426 = vmatprep.subr.bf16.mxu0 0
      %1427 = vmatpush1.bf16.msra.mxu0 0
      %1428 = vmatprep.subr.bf16.mxu0 0
      %1429 = vmatpush1.bf16.msra.mxu0 0
      %1430 = vmatprep.subr.bf16.mxu0 0
      %1431 = vmatpush1.bf16.msra.mxu0 0
      %1432 = vmatprep.subr.bf16.mxu0 0
      %1433 = vmatpush1.bf16.msra.mxu0 0
      %1434 = vmatprep.subr.bf16.mxu0 0
      %1435 = vmatpush1.bf16.msra.mxu0 0
      %1436 = vmatprep.subr.bf16.mxu0 0
      %1437 = vmatpush1.bf16.msra.mxu0 0
      %1438 = vmatprep.subr.bf16.mxu0 0
      %1439 = vmatpush1.bf16.msra.mxu0 0
      %1440 = vmatprep.subr.bf16.mxu0 0
      %1441 = vmatpush1.bf16.msra.mxu0 0
      %1442 = vmatprep.subr.bf16.mxu0 0
      %1443 = vmatpush1.bf16.msra.mxu0 0
      %1444 = vmatprep.subr.bf16.mxu0 0
      %1445 = vmatpush1.bf16.msra.mxu0 0
      %1446 = vmatprep.subr.bf16.mxu0 0
      %1447 = vmatpush1.bf16.msra.mxu0 0
      %1448 = vmatprep.subr.bf16.mxu0 0
      %1449 = vmatpush1.bf16.msra.mxu0 0
      %1450 = vmatprep.subr.bf16.mxu0 0
      %1451 = vmatpush1.bf16.msra.mxu0 0
      %1452 = vmatprep.mubr.bf16.mxu0 0
      %1453 = vmatmul.mubr.bf16.gmra.mrb[0].mxu0 %v1406
      %v1454 = vpop.f32.mrb[0].mxu0
      %v1455 = vadd.f32 0.0, %v1454
      %v1456 = vpop.f32.mrb[0].mxu0
      %v1457 = vpop.f32.mrb[0].mxu0
      %v1458 = vadd.f32 0.0, %v1457
      %v1459 = vpop.f32.mrb[0].mxu0
      %1460 = vmatprep.mubr.bf16.mxu0 0
      %1461 = vmatmul.mubr.bf16.gmra.mrb[0].mxu0 %v1409
      %v1462 = vpop.f32.mrb[0].mxu0
      %v1463 = vadd.f32 0.0, %v1462
      %v1464 = vpop.f32.mrb[0].mxu0
      %v1465 = vpop.f32.mrb[0].mxu0
      %v1466 = vadd.f32 0.0, %v1465
      %v1467 = vpop.f32.mrb[0].mxu0
      %1468 = vmatprep.mubr.bf16.mxu0 0
      %1469 = vmatmul.mubr.bf16.gmra.mrb[0].mxu0 %v1412
      %v1470 = vpop.f32.mrb[0].mxu0
      %v1471 = vadd.f32 0.0, %v1470
      %v1472 = vpop.f32.mrb[0].mxu0
      %v1473 = vpop.f32.mrb[0].mxu0
      %v1474 = vadd.f32 0.0, %v1473
      %v1475 = vpop.f32.mrb[0].mxu0
      %1476 = vmatprep.mubr.bf16.mxu0 0
      %1477 = vmatmul.mubr.bf16.gmra.mrb[0].mxu0 %v1415
      %v1478 = vpop.f32.mrb[0].mxu0
      %v1479 = vadd.f32 0.0, %v1478
      %v1480 = vpop.f32.mrb[0].mxu0
      %v1481 = vpop.f32.mrb[0].mxu0
      %v1482 = vadd.f32 0.0, %v1481
      %v1483 = vpop.f32.mrb[0].mxu0
      %1484 = vdwg.mxu0
      %v1485 = vadd.f32 %v1395, %v1455
      %v1486 = vadd.f32 %v1396, %v1458
      %v1487 = vadd.f32 %v1397, %v1463
      %v1488 = vadd.f32 %v1398, %v1466
      %v1489 = vadd.f32 %v1399, %v1471
      %v1490 = vadd.f32 %v1400, %v1474
      %v1491 = vadd.f32 %v1401, %v1479
      %v1492 = vadd.f32 %v1402, %v1482
      %1493 = vst [vmem:[#allocation2] sm:$0xff] %v1485
      %1494 = vst [vmem:[#allocation2 + $0x8] sm:$0xff] %v1486
      %1495 = vst [vmem:[#allocation2 + $0x10] sm:$0xff] %v1487
      %1496 = vst [vmem:[#allocation2 + $0x18] sm:$0xff] %v1488
      %1497 = vst [vmem:[#allocation2 + $0x20] sm:$0xff] %v1489
      %1498 = vst [vmem:[#allocation2 + $0x28] sm:$0xff] %v1490
      %1499 = vst [vmem:[#allocation2 + $0x30] sm:$0xff] %v1491
      %1500 = vst [vmem:[#allocation2 + $0x38] sm:$0xff] %v1492
      %v1503 = vrot.slane %v358, 1
      %v1504 = vrot.slane %v359, 1
      %v1505 = vsel %vm638, %v1503, %v1504
      %v1507 = vpack.c.bf16 %v647, %v644
      %v1508 = vpack.c.bf16 %v653, %v650
      %v1509 = vpack.c.bf16 %v659, %v656
      %v1510 = vpack.c.bf16 %v1505, %v662
      %v1511 = vld [vmem:[#allocation2] sm:$0xff]
      %v1512 = vld [vmem:[#allocation2 + $0x8] sm:$0xff]
      %v1513 = vld [vmem:[#allocation2 + $0x10] sm:$0xff]
      %v1514 = vld [vmem:[#allocation2 + $0x18] sm:$0xff]
      %v1515 = vld [vmem:[#allocation2 + $0x20] sm:$0xff]
      %v1516 = vld [vmem:[#allocation2 + $0x28] sm:$0xff]
      %v1517 = vld [vmem:[#allocation2 + $0x30] sm:$0xff]
      %v1518 = vld [vmem:[#allocation2 + $0x38] sm:$0xff]
      %s1519 = scalar_lea.vmem %s1, 32
      %v1520 = vld [vmem:[%s1519] sm:$0xf]
      %v1522 = vsel %vm414, %v1507, 0
      %v1525 = vsel %vm414, %v1508, 0
      %v1528 = vsel %vm414, %v1509, 0
      %v1531 = vsel %vm414, %v1510, 0
      %v1534 = vsel %vm427, %v1520, 0
      %1536 = vmatprep.subr.bf16.mxu0 0
      %1537 = vmatpush1.bf16.msra.mxu0 %v1534
      %1538 = vmatprep.subr.bf16.mxu0 0
      %1539 = vmatpush1.bf16.msra.mxu0 0
      %1540 = vmatprep.subr.bf16.mxu0 0
      %1541 = vmatpush1.bf16.msra.mxu0 0
      %1542 = vmatprep.subr.bf16.mxu0 0
      %1543 = vmatpush1.bf16.msra.mxu0 0
      %1544 = vmatprep.subr.bf16.mxu0 0
      %1545 = vmatpush1.bf16.msra.mxu0 0
      %1546 = vmatprep.subr.bf16.mxu0 0
      %1547 = vmatpush1.bf16.msra.mxu0 0
      %1548 = vmatprep.subr.bf16.mxu0 0
      %1549 = vmatpush1.bf16.msra.mxu0 0
      %1550 = vmatprep.subr.bf16.mxu0 0
      %1551 = vmatpush1.bf16.msra.mxu0 0
      %1552 = vmatprep.subr.bf16.mxu0 0
      %1553 = vmatpush1.bf16.msra.mxu0 0
      %1554 = vmatprep.subr.bf16.mxu0 0
      %1555 = vmatpush1.bf16.msra.mxu0 0
      %1556 = vmatprep.subr.bf16.mxu0 0
      %1557 = vmatpush1.bf16.msra.mxu0 0
      %1558 = vmatprep.subr.bf16.mxu0 0
      %1559 = vmatpush1.bf16.msra.mxu0 0
      %1560 = vmatprep.subr.bf16.mxu0 0
      %1561 = vmatpush1.bf16.msra.mxu0 0
      %1562 = vmatprep.subr.bf16.mxu0 0
      %1563 = vmatpush1.bf16.msra.mxu0 0
      %1564 = vmatprep.subr.bf16.mxu0 0
      %1565 = vmatpush1.bf16.msra.mxu0 0
      %1566 = vmatprep.subr.bf16.mxu0 0
      %1567 = vmatpush1.bf16.msra.mxu0 0
      %1568 = vmatprep.mubr.bf16.mxu0 0
      %1569 = vmatmul.mubr.bf16.gmra.mrb[0].mxu0 %v1522
      %v1570 = vpop.f32.mrb[0].mxu0
      %v1571 = vadd.f32 0.0, %v1570
      %v1572 = vpop.f32.mrb[0].mxu0
      %v1573 = vpop.f32.mrb[0].mxu0
      %v1574 = vadd.f32 0.0, %v1573
      %v1575 = vpop.f32.mrb[0].mxu0
      %1576 = vmatprep.mubr.bf16.mxu0 0
      %1577 = vmatmul.mubr.bf16.gmra.mrb[0].mxu0 %v1525
      %v1578 = vpop.f32.mrb[0].mxu0
      %v1579 = vadd.f32 0.0, %v1578
      %v1580 = vpop.f32.mrb[0].mxu0
      %v1581 = vpop.f32.mrb[0].mxu0
      %v1582 = vadd.f32 0.0, %v1581
      %v1583 = vpop.f32.mrb[0].mxu0
      %1584 = vmatprep.mubr.bf16.mxu0 0
      %1585 = vmatmul.mubr.bf16.gmra.mrb[0].mxu0 %v1528
      %v1586 = vpop.f32.mrb[0].mxu0
      %v1587 = vadd.f32 0.0, %v1586
      %v1588 = vpop.f32.mrb[0].mxu0
      %v1589 = vpop.f32.mrb[0].mxu0
      %v1590 = vadd.f32 0.0, %v1589
      %v1591 = vpop.f32.mrb[0].mxu0
      %1592 = vmatprep.mubr.bf16.mxu0 0
      %1593 = vmatmul.mubr.bf16.gmra.mrb[0].mxu0 %v1531
      %v1594 = vpop.f32.mrb[0].mxu0
      %v1595 = vadd.f32 0.0, %v1594
      %v1596 = vpop.f32.mrb[0].mxu0
      %v1597 = vpop.f32.mrb[0].mxu0
      %v1598 = vadd.f32 0.0, %v1597
      %v1599 = vpop.f32.mrb[0].mxu0
      %1600 = vdwg.mxu0
      %v1601 = vadd.f32 %v1511, %v1571
      %v1602 = vadd.f32 %v1512, %v1574
      %v1603 = vadd.f32 %v1513, %v1579
      %v1604 = vadd.f32 %v1514, %v1582
      %v1605 = vadd.f32 %v1515, %v1587
      %v1606 = vadd.f32 %v1516, %v1590
      %v1607 = vadd.f32 %v1517, %v1595
      %v1608 = vadd.f32 %v1518, %v1598
      %1609 = vst [vmem:[#allocation2] sm:$0xff] %v1601
      %1610 = vst [vmem:[#allocation2 + $0x8] sm:$0xff] %v1602
      %1611 = vst [vmem:[#allocation2 + $0x10] sm:$0xff] %v1603
      %1612 = vst [vmem:[#allocation2 + $0x18] sm:$0xff] %v1604
      %1613 = vst [vmem:[#allocation2 + $0x20] sm:$0xff] %v1605
      %1614 = vst [vmem:[#allocation2 + $0x28] sm:$0xff] %v1606
      %1615 = vst [vmem:[#allocation2 + $0x30] sm:$0xff] %v1607
      %1616 = vst [vmem:[#allocation2 + $0x38] sm:$0xff] %v1608
      %v1617 = vld [vmem:[#allocation2] sm:$0xff]
      %v1618 = vld [vmem:[#allocation2 + $0x8] sm:$0xff]
      %v1619 = vld [vmem:[#allocation2 + $0x10] sm:$0xff]
      %v1620 = vld [vmem:[#allocation2 + $0x18] sm:$0xff]
      %v1621 = vld [vmem:[#allocation2 + $0x20] sm:$0xff]
      %v1622 = vld [vmem:[#allocation2 + $0x28] sm:$0xff]
      %v1623 = vld [vmem:[#allocation2 + $0x30] sm:$0xff]
      %v1624 = vld [vmem:[#allocation2 + $0x38] sm:$0xff]
      %v1625 = vpack.c.bf16 %v1617, %v1617
      %v1626 = vpack.c.bf16 %v1618, %v1618
      %v1627 = vpack.c.bf16 %v1619, %v1619
      %v1628 = vpack.c.bf16 %v1620, %v1620
      %v1629 = vpack.c.bf16 %v1621, %v1621
      %v1630 = vpack.c.bf16 %v1622, %v1622
      %v1631 = vpack.c.bf16 %v1623, %v1623
      %v1632 = vpack.c.bf16 %v1624, %v1624
      %1633 = vst [vmem:[%s276] sm:$0xf] %v1625
      %1634 = vst [vmem:[%s276 + $0x4] sm:$0xf] %v1626
      %1635 = vst [vmem:[%s276 + $0x8] sm:$0xf] %v1627
      %1636 = vst [vmem:[%s276 + $0xc] sm:$0xf] %v1628
      %1637 = vst [vmem:[%s276 + $0x10] sm:$0xf] %v1629
      %1638 = vst [vmem:[%s276 + $0x14] sm:$0xf] %v1630
      %1639 = vst [vmem:[%s276 + $0x18] sm:$0xf] %v1631
      %1640 = vst [vmem:[%s276 + $0x1c] sm:$0xf] %v1632
      %v1641 = vadd.f32 %v1617, %v1618
      %v1642 = vadd.f32 %v1641, %v1619
      %v1643 = vadd.f32 %v1642, %v1620
      %v1644 = vadd.f32 %v1643, %v1621
      %v1645 = vadd.f32 %v1644, %v1622
      %v1646 = vadd.f32 %v1645, %v1623
      %v1647 = vadd.f32 %v1646, %v1624
      %v1648 = vrot.slane %v1647, 4
      %v1649 = vadd.f32 %v1647, %v1648
      %v1650 = vrot.slane %v1649, 2
      %v1651 = vadd.f32 %v1649, %v1650
      %v1652 = vrot.slane %v1651, 1
      %v1653 = vadd.f32 %v1651, %v1652
      %v1654 = vmul.f32 %v1617, %v1617
      %v1655 = vmul.f32 %v1618, %v1618
      %v1656 = vmul.f32 %v1619, %v1619
      %v1657 = vmul.f32 %v1620, %v1620
      %v1658 = vmul.f32 %v1621, %v1621
      %v1659 = vmul.f32 %v1622, %v1622
      %v1660 = vmul.f32 %v1623, %v1623
      %v1661 = vmul.f32 %v1624, %v1624
      %v1662 = vadd.f32 %v1654, %v1655
      %v1663 = vadd.f32 %v1662, %v1656
      %v1664 = vadd.f32 %v1663, %v1657
      %v1665 = vadd.f32 %v1664, %v1658
      %v1666 = vadd.f32 %v1665, %v1659
      %v1667 = vadd.f32 %v1666, %v1660
      %v1668 = vadd.f32 %v1667, %v1661
      %v1669 = vrot.slane %v1668, 4
      %v1670 = vadd.f32 %v1668, %v1669
      %v1671 = vrot.slane %v1670, 2
      %v1672 = vadd.f32 %v1670, %v1671
      %v1673 = vrot.slane %v1672, 1
      %v1674 = vadd.f32 %v1672, %v1673
      %v1675 = vsel %vm1120, %v1653, %v1674
      %1676 = vst [vmem:[%s280] sm:$0x3] %v1675
      %p1677 = scmp.lt.s32.totalorder %s18, 1
      %s1678 = scalar_select %p1677, %s18, 1
      %s1679 = smul.addr %s1678, 8
      %s1680 = smul.addr %s1679, 4
      %s1681 = scalar_lea.vmem %s3, %s1680
      %p1682 = scmp.lt.s32.totalorder %s18, 1
      %s1683 = scalar_select %p1682, %s18, 1
      %s1684 = smul.addr %s1683, 2
      %s1685 = scalar_lea.vmem %s4, %s1684
      %p1686 = scmp.lt.s32.totalorder %s18, 1
      %s1687 = scalar_select %p1686, %s18, 1
      %s1688 = smul.addr %s1687, 8
      %s1689 = smul.addr %s1688, 4
      %s1690 = scalar_lea.vmem %s5, %s1689
      %p1691 = scmp.lt.s32.totalorder %s18, 1
      %s1692 = scalar_select %p1691, %s18, 1
      %s1693 = smul.addr %s1692, 2
      %s1694 = scalar_lea.vmem %s6, %s1693
      // Predicated region
      $region33: #{basic_block_forward.3} parent=31 // pred_check
        %p1695 = pneg %p104
      $region34: #{basic_block_forward.3} parent=31 // pred_check_branch
        %1697 = sbr.rel (%p1695) target = $region36
      $region35: #{basic_block_forward.3} parent=31 // pred_region
        _
      $region36: #{basic_block_forward.3} parent=31 // pred_fallthru
        _
      // Predicated region
      $region37: #{basic_block_forward.3} parent=31 // pred_check
        %p1698 = pneg %p130
      $region38: #{basic_block_forward.3} parent=31 // pred_check_branch
        %1700 = sbr.rel (%p1698) target = $region40
      $region39: #{basic_block_forward.3} parent=31 // pred_region
        _
      $region40: #{basic_block_forward.3} parent=31 // pred_fallthru
        _
      // Predicated region
      $region41: #{basic_block_forward.3} parent=31 // pred_check
        %p1701 = pneg %p156
      $region42: #{basic_block_forward.3} parent=31 // pred_check_branch
        %1703 = sbr.rel (%p1701) target = $region44
      $region43: #{basic_block_forward.3} parent=31 // pred_region
        _
      $region44: #{basic_block_forward.3} parent=31 // pred_fallthru
        _
      // Predicated region
      $region45: #{basic_block_forward.3} parent=31 // pred_check
        %p1704 = pneg %p182
      $region46: #{basic_block_forward.3} parent=31 // pred_check_branch
        %1706 = sbr.rel (%p1704) target = $region48
      $region47: #{basic_block_forward.3} parent=31 // pred_region
        _
      $region48: #{basic_block_forward.3} parent=31 // pred_fallthru
        _
    $region32: #{basic_block_forward.3} parent=5 // pred_fallthru
      _
    %p1707 = scmp.le.s32.totalorder 2, %s13
    // Predicated region
    $region49: #{basic_block_forward.3} parent=5 // pred_check
      %p1708 = pneg %p1707
    $region50: #{basic_block_forward.3} parent=5 // pred_check_branch
      %1710 = sbr.rel (%p1708) target = $region52
    $region51: #{basic_block_forward.3} parent=5 // pred_region
      %s1711 = ssub.s32 %s13, 2
      // Predicated region
      $region53: #{basic_block_forward.3} parent=51 // pred_check
        %p1712 = pneg %p110
      $region54: #{basic_block_forward.3} parent=51 // pred_check_branch
        %1714 = sbr.rel (%p1712) target = $region56
      $region55: #{basic_block_forward.3} parent=51 // pred_region
        %p1715 = scmp.lt.s32.totalorder %s19, 1
        %s1716 = scalar_select %p1715, %s19, 1
        %s1717 = smul.addr %s1716, 8
        %s1718 = smul.addr %s1717, 4
        %s1719 = scalar_lea.vmem %s3, %s1718
      $region56: #{basic_block_forward.3} parent=51 // pred_fallthru
        _
      // Predicated region
      $region57: #{basic_block_forward.3} parent=51 // pred_check
        %p1720 = pneg %p136
      $region58: #{basic_block_forward.3} parent=51 // pred_check_branch
        %1722 = sbr.rel (%p1720) target = $region60
      $region59: #{basic_block_forward.3} parent=51 // pred_region
        %p1723 = scmp.lt.s32.totalorder %s19, 1
        %s1724 = scalar_select %p1723, %s19, 1
        %s1725 = smul.addr %s1724, 2
        %s1726 = scalar_lea.vmem %s4, %s1725
      $region60: #{basic_block_forward.3} parent=51 // pred_fallthru
        _
      // Predicated region
      $region61: #{basic_block_forward.3} parent=51 // pred_check
        %p1727 = pneg %p162
      $region62: #{basic_block_forward.3} parent=51 // pred_check_branch
        %1729 = sbr.rel (%p1727) target = $region64
      $region63: #{basic_block_forward.3} parent=51 // pred_region
        %p1730 = scmp.lt.s32.totalorder %s19, 1
        %s1731 = scalar_select %p1730, %s19, 1
        %s1732 = smul.addr %s1731, 8
        %s1733 = smul.addr %s1732, 4
        %s1734 = scalar_lea.vmem %s5, %s1733
      $region64: #{basic_block_forward.3} parent=51 // pred_fallthru
        _
      // Predicated region
      $region65: #{basic_block_forward.3} parent=51 // pred_check
        %p1735 = pneg %p188
      $region66: #{basic_block_forward.3} parent=51 // pred_check_branch
        %1737 = sbr.rel (%p1735) target = $region68
      $region67: #{basic_block_forward.3} parent=51 // pred_region
        %p1738 = scmp.lt.s32.totalorder %s19, 1
        %s1739 = scalar_select %p1738, %s19, 1
        %s1740 = smul.addr %s1739, 2
        %s1741 = scalar_lea.vmem %s6, %s1740
      $region68: #{basic_block_forward.3} parent=51 // pred_fallthru
        _
    $region52: #{basic_block_forward.3} parent=5 // pred_fallthru
      _
  $region6: #{basic_block_forward.3} parent=0 // loop_footer
    %s17 = sadd.s32 1, %s13
  $region7: #{basic_block_forward.3} parent=0 // loop_footer_branch
    %12 = sbr.rel target = $region3
  $region8: #{basic_block_forward.3} parent=0 // loop_exit
    _

// kernel: basic_block_forward.4
$region0: #{basic_block_forward.4}
  #allocation0 [shape = 'u32[]', space=smem, size = 0x4, offset = 0x4, fixed_abs, tag = 'smem constant byte address 0x4 - core index']
  #allocation1 [shape = 'u32[144,128]{1,0:T(1,128)}', space=vmem, size = 0x12000, scoped, tag = 'internal scratch']
  #allocation2 [shape = 'f32[10,10,128]{2,1,0:T(8,128)}', space=vmem, size = 0x14000, scoped, tag = 'scratch operand']
  #allocation3 [shape = 'f32[64,128]{1,0:T(8,128)}', space=vmem, size = 0x8000, scoped, tag = 'scratch operand']
  %s0 = inlined_call_operand.vmem [shape: bf16[2,8,8,128], index: 0, kind: input, shape index: {}]
  %s1 = inlined_call_operand.vmem [shape: f32[2,128], index: 1, kind: input, shape index: {}]
  %s2 = inlined_call_operand.vmem [shape: bf16[9,128,128], index: 2, kind: input, shape index: {}]
  %s3 = inlined_call_operand.vmem [shape: bf16[2,8,8,128], index: 3, kind: output, shape index: {0}]
  %s4 = inlined_call_operand.vmem [shape: f32[2,2,128], index: 4, kind: output, shape index: {1}]
  %5 = xla_tuple %s3, %s4
  %s6 = sld [smem:[#allocation0]]
  $region53: #{basic_block_forward.4} parent=0
    _
  %s8 = ssub.s32 1, %s6
  %s9 = scalar_select 0, %s8, %s6
  loop: start=0, step=1, limit=4
  $region2: #{basic_block_forward.4} parent=0 // loop_pre_header
    _
  $region3: #{basic_block_forward.4} parent=0 // loop_header
    %s11 = sphi 0, %s15
    %p12 = scmp.ge.s32.totalorder %s11, 4
    %s21 = sphi 0, %s23
    %s24 = sphi 0, %s21
    %s25 = sphi 0, %s24
    %s41 = sphi 0, %s25
    %s45 = sphi 0, %s45
    %s47 = sphi 0, %s45
    %s48 = sphi 0, %s47
    %s62 = sphi 0, %s48
    %s66 = sphi 0, %s66
    %s68 = sphi 0, %s66
    %s69 = sphi 0, %s68
    %s83 = sphi 0, %s69
    %s89 = sphi 0, %s91
    %s92 = sphi 0, %s89
    %s93 = sphi 0, %s92
    %s109 = sphi 0, %s93
    %s115 = sphi 0, %s117
    %s118 = sphi 0, %s115
    %s119 = sphi 0, %s118
    %s135 = sphi 0, %s119
  $region4: #{basic_block_forward.4} parent=0 // loop_header_branch
    %14 = sbr.rel (%p12) target = $region8
  $region5: #{basic_block_forward.4} parent=0 // loop_body
    %s16 = ssub.s32 %s11, 1
    %s17 = ssub.s32 %s11, 2
    %s18 = sadd.s32 %s11, 1
    %s19 = ssub.s32 %s11, %s18
    %p20 = scmp.eq.s32.totalorder %s19, 0
    %s22 = sadd.s32 %s21, 1
    %s23 = scalar_select %p20, %s21, %s22
    %p26 = pneg %p20
    %p27 = scmp.eq.s32.totalorder %s11, 1
    %p28 = por %p26, %p27
    %p29 = scmp.ne.s32.totalorder %s21, %s24
    %p30 = scmp.eq.s32.totalorder %s11, 0
    %p31 = por %p29, %p30
    %p32 = scmp.ne.s32.totalorder %s21, %s24
    %p33 = scmp.eq.s32.totalorder %s16, 1
    %p34 = por %p32, %p33
    %p35 = scmp.ne.s32.totalorder %s24, %s25
    %p36 = scmp.eq.s32.totalorder %s16, 0
    %p37 = por %p35, %p36
    %p38 = scmp.ne.s32.totalorder %s24, %s25
    %p39 = scmp.eq.s32.totalorder %s17, 1
    %p40 = por %p38, %p39
    %p42 = scmp.ne.s32.totalorder %s25, %s41
    %p43 = scmp.eq.s32.totalorder %s17, 0
    %p44 = por %p42, %p43
    %s46 = sadd.s32 %s45, 1
    %p49 = scmp.eq.s32.totalorder %s11, 1
    %p50 = scmp.ne.s32.totalorder %s45, %s47
    %p51 = scmp.eq.s32.totalorder %s11, 0
    %p52 = por %p50, %p51
    %p53 = scmp.ne.s32.totalorder %s45, %s47
    %p54 = scmp.eq.s32.totalorder %s16, 1
    %p55 = por %p53, %p54
    %p56 = scmp.ne.s32.totalorder %s47, %s48
    %p57 = scmp.eq.s32.totalorder %s16, 0
    %p58 = por %p56, %p57
    %p59 = scmp.ne.s32.totalorder %s47, %s48
    %p60 = scmp.eq.s32.totalorder %s17, 1
    %p61 = por %p59, %p60
    %p63 = scmp.ne.s32.totalorder %s48, %s62
    %p64 = scmp.eq.s32.totalorder %s17, 0
    %p65 = por %p63, %p64
    %s67 = sadd.s32 %s66, 1
    %p70 = scmp.eq.s32.totalorder %s11, 1
    %p71 = scmp.ne.s32.totalorder %s66, %s68
    %p72 = scmp.eq.s32.totalorder %s11, 0
    %p73 = por %p71, %p72
    %p74 = scmp.ne.s32.totalorder %s66, %s68
    %p75 = scmp.eq.s32.totalorder %s16, 1
    %p76 = por %p74, %p75
    %p77 = scmp.ne.s32.totalorder %s68, %s69
    %p78 = scmp.eq.s32.totalorder %s16, 0
    %p79 = por %p77, %p78
    %p80 = scmp.ne.s32.totalorder %s68, %s69
    %p81 = scmp.eq.s32.totalorder %s17, 1
    %p82 = por %p80, %p81
    %p84 = scmp.ne.s32.totalorder %s69, %s83
    %p85 = scmp.eq.s32.totalorder %s17, 0
    %p86 = por %p84, %p85
    %s87 = ssub.s32 %s11, %s18
    %p88 = scmp.eq.s32.totalorder %s87, 0
    %s90 = sadd.s32 %s89, 1
    %s91 = scalar_select %p88, %s89, %s90
    %p94 = pneg %p88
    %p95 = scmp.eq.s32.totalorder %s11, 1
    %p96 = por %p94, %p95
    %p97 = scmp.ne.s32.totalorder %s89, %s92
    %p98 = scmp.eq.s32.totalorder %s11, 0
    %p99 = por %p97, %p98
    %p100 = scmp.ne.s32.totalorder %s89, %s92
    %p101 = scmp.eq.s32.totalorder %s16, 1
    %p102 = por %p100, %p101
    %p103 = scmp.ne.s32.totalorder %s92, %s93
    %p104 = scmp.eq.s32.totalorder %s16, 0
    %p105 = por %p103, %p104
    %p106 = scmp.ne.s32.totalorder %s92, %s93
    %p107 = scmp.eq.s32.totalorder %s17, 1
    %p108 = por %p106, %p107
    %p110 = scmp.ne.s32.totalorder %s93, %s109
    %p111 = scmp.eq.s32.totalorder %s17, 0
    %p112 = por %p110, %p111
    %s113 = ssub.s32 %s11, %s18
    %p114 = scmp.eq.s32.totalorder %s113, 0
    %s116 = sadd.s32 %s115, 1
    %s117 = scalar_select %p114, %s115, %s116
    %p120 = pneg %p114
    %p121 = scmp.eq.s32.totalorder %s11, 1
    %p122 = por %p120, %p121
    %p123 = scmp.ne.s32.totalorder %s115, %s118
    %p124 = scmp.eq.s32.totalorder %s11, 0
    %p125 = por %p123, %p124
    %p126 = scmp.ne.s32.totalorder %s115, %s118
    %p127 = scmp.eq.s32.totalorder %s16, 1
    %p128 = por %p126, %p127
    %p129 = scmp.ne.s32.totalorder %s118, %s119
    %p130 = scmp.eq.s32.totalorder %s16, 0
    %p131 = por %p129, %p130
    %p132 = scmp.ne.s32.totalorder %s118, %s119
    %p133 = scmp.eq.s32.totalorder %s17, 1
    %p134 = por %p132, %p133
    %p136 = scmp.ne.s32.totalorder %s119, %s135
    %p137 = scmp.eq.s32.totalorder %s17, 0
    %p138 = por %p136, %p137
    %p139 = scmp.le.s32.totalorder 1, %s11
    %p140 = scmp.lt.s32.totalorder %s11, 3
    %p141 = pnand %p139, %p140
    %p142 = pneg %p141
    // Predicated region
    $region9: #{basic_block_forward.4} parent=5 // pred_check
      _
    $region10: #{basic_block_forward.4} parent=5 // pred_check_branch
      %144 = sbr.rel (%p141) target = $region12
    $region11: #{basic_block_forward.4} parent=5 // pred_region
      %s145 = ssub.s32 %s11, 1
      // Predicated region
      $region13: #{basic_block_forward.4} parent=11 // pred_check
        %p146 = pneg %p58
      $region14: #{basic_block_forward.4} parent=11 // pred_check_branch
        %148 = sbr.rel (%p146) target = $region16
      $region15: #{basic_block_forward.4} parent=11 // pred_region
        _
      $region16: #{basic_block_forward.4} parent=11 // pred_fallthru
        _
      // Predicated region
      $region17: #{basic_block_forward.4} parent=11 // pred_check
        %p149 = pneg %p79
      $region18: #{basic_block_forward.4} parent=11 // pred_check_branch
        %151 = sbr.rel (%p149) target = $region20
      $region19: #{basic_block_forward.4} parent=11 // pred_region
        _
      $region20: #{basic_block_forward.4} parent=11 // pred_fallthru
        _
    $region12: #{basic_block_forward.4} parent=5 // pred_fallthru
      _
    %p152 = scmp.lt.s32.totalorder %s11, 2
    // Predicated region
    $region21: #{basic_block_forward.4} parent=5 // pred_check
      %p153 = pneg %p152
    $region22: #{basic_block_forward.4} parent=5 // pred_check_branch
      %155 = sbr.rel (%p153) target = $region24
    $region23: #{basic_block_forward.4} parent=5 // pred_region
      // Predicated region
      $region25: #{basic_block_forward.4} parent=23 // pred_check
        %p156 = pneg %p31
      $region26: #{basic_block_forward.4} parent=23 // pred_check_branch
        %158 = sbr.rel (%p156) target = $region28
      $region27: #{basic_block_forward.4} parent=23 // pred_region
        %p159 = scmp.lt.s32.totalorder %s11, 1
        %s160 = scalar_select %p159, %s11, 1
        %s161 = smul.addr %s160, 8
        %s162 = smul.addr %s161, 4
        %s163 = scalar_lea.vmem %s0, %s162
      $region28: #{basic_block_forward.4} parent=23 // pred_fallthru
        _
    $region24: #{basic_block_forward.4} parent=5 // pred_fallthru
      _
    %p164 = scmp.le.s32.totalorder 1, %s11
    %p165 = scmp.lt.s32.totalorder %s11, 3
    %p166 = pnand %p164, %p165
    %p167 = pneg %p166
    // Predicated region
    $region29: #{basic_block_forward.4} parent=5 // pred_check
      _
    $region30: #{basic_block_forward.4} parent=5 // pred_check_branch
      %169 = sbr.rel (%p166) target = $region32
    $region31: #{basic_block_forward.4} parent=5 // pred_region
      %s170 = ssub.s32 %s11, 1
      %p171 = scmp.lt.s32.totalorder %s16, 1
      %s172 = scalar_select %p171, %s16, 1
      %s173 = smul.addr %s172, 8
      %s174 = smul.addr %s173, 4
      %s175 = scalar_lea.vmem %s0, %s174
      %p176 = pneg %p37
      %p177 = pneg %p34
      %p178 = pneg %p58
      %p179 = pneg %p55
      %p180 = pneg %p79
      %p181 = pneg %p76
      %p182 = pneg %p105
      %p183 = pneg %p102
      %p184 = scmp.lt.s32.totalorder %s16, 1
      %s185 = scalar_select %p184, %s16, 1
      %s186 = smul.addr %s185, 8
      %s187 = smul.addr %s186, 4
      %s188 = scalar_lea.vmem %s3, %s187
      %p189 = pneg %p131
      %p190 = pneg %p128
      %p191 = scmp.lt.s32.totalorder %s16, 1
      %s192 = scalar_select %p191, %s16, 1
      %s193 = smul.addr %s192, 2
      %s194 = scalar_lea.vmem %s4, %s193
      %p195 = scmp.lt.s32.totalorder %s16, 1
      %s196 = scalar_select %p195, %s16, 1
      %s197 = smul.addr %s196, 8
      %s198 = smul.addr %s197, 4
      %s199 = scalar_lea.vmem %s0, %s198
      %p200 = scmp.lt.s32.totalorder %s16, 1
      %s201 = scalar_select %p200, %s16, 1
      %s202 = smul.addr %s201, 8
      %s203 = smul.addr %s202, 4
      %s204 = scalar_lea.vmem %s3, %s203
      %p205 = scmp.lt.s32.totalorder %s16, 1
      %s206 = scalar_select %p205, %s16, 1
      %s207 = smul.addr %s206, 2
      %s208 = scalar_lea.vmem %s4, %s207
      %v210 = vld [vmem:[%s1] sm:$0x1]
      %v211 = vld [vmem:[%s1 + $0x1] sm:$0x1]
      %v212 = vld [vmem:[%s199] sm:$0xf]
      %v213 = vld [vmem:[%s199 + $0x4] sm:$0xf]
      %v214 = vld [vmem:[%s199 + $0x8] sm:$0xf]
      %v215 = vld [vmem:[%s199 + $0xc] sm:$0xf]
      %v216 = vld [vmem:[%s199 + $0x10] sm:$0xf]
      %v217 = vld [vmem:[%s199 + $0x14] sm:$0xf]
      %v218 = vld [vmem:[%s199 + $0x18] sm:$0xf]
      %v219 = vld [vmem:[%s199 + $0x1c] sm:$0xf]
      %v220 = vunpack.c.l.bf16 %v212
      %v221 = vunpack.c.l.bf16 %v213
      %v222 = vunpack.c.l.bf16 %v214
      %v223 = vunpack.c.l.bf16 %v215
      %v224 = vunpack.c.l.bf16 %v216
      %v225 = vunpack.c.l.bf16 %v217
      %v226 = vunpack.c.l.bf16 %v218
      %v227 = vunpack.c.l.bf16 %v219
      %v228 = vlaneseq
      %v229 = vshrl.u32 %v228, 7
      %v230 = vsub.s32 0, %v229
      %v231 = vrot.slane %v210, %v230
      %v232 = vmul.f32 %v220, %v231
      %v233 = vmul.f32 %v221, %v231
      %v234 = vmul.f32 %v222, %v231
      %v235 = vmul.f32 %v223, %v231
      %v236 = vmul.f32 %v224, %v231
      %v237 = vmul.f32 %v225, %v231
      %v238 = vmul.f32 %v226, %v231
      %v239 = vmul.f32 %v227, %v231
      %v240 = vlaneseq
      %v241 = vshrl.u32 %v240, 7
      %v242 = vsub.s32 0, %v241
      %v243 = vrot.slane %v211, %v242
      %v244 = vadd.f32 %v232, %v243
      %v245 = vadd.f32 %v233, %v243
      %v246 = vadd.f32 %v234, %v243
      %v247 = vadd.f32 %v235, %v243
      %v248 = vadd.f32 %v236, %v243
      %v249 = vadd.f32 %v237, %v243
      %v250 = vadd.f32 %v238, %v243
      %v251 = vadd.f32 %v239, %v243
      %v252 = vmax.f32 %v244, 0.0
      %v253 = vmax.f32 %v245, 0.0
      %v254 = vmax.f32 %v246, 0.0
      %v255 = vmax.f32 %v247, 0.0
      %v256 = vmax.f32 %v248, 0.0
      %v257 = vmax.f32 %v249, 0.0
      %v258 = vmax.f32 %v250, 0.0
      %v259 = vmax.f32 %v251, 0.0
      %260 = vst [vmem:[#allocation2] sm:$0xff] 0.0
      %261 = vst [vmem:[#allocation2 + $0x8] sm:$0x3] 0.0
      %262 = vst [vmem:[#allocation2 + $0x10] sm:$0xff] 0.0
      %263 = vst [vmem:[#allocation2 + $0x18] sm:$0x3] 0.0
      %264 = vst [vmem:[#allocation2 + $0x20] sm:$0xff] 0.0
      %265 = vst [vmem:[#allocation2 + $0x28] sm:$0x3] 0.0
      %266 = vst [vmem:[#allocation2 + $0x30] sm:$0xff] 0.0
      %267 = vst [vmem:[#allocation2 + $0x38] sm:$0x3] 0.0
      %268 = vst [vmem:[#allocation2 + $0x40] sm:$0xff] 0.0
      %269 = vst [vmem:[#allocation2 + $0x48] sm:$0x3] 0.0
      %270 = vst [vmem:[#allocation2 + $0x50] sm:$0xff] 0.0
      %271 = vst [vmem:[#allocation2 + $0x58] sm:$0x3] 0.0
      %272 = vst [vmem:[#allocation2 + $0x60] sm:$0xff] 0.0
      %273 = vst [vmem:[#allocation2 + $0x68] sm:$0x3] 0.0
      %274 = vst [vmem:[#allocation2 + $0x70] sm:$0xff] 0.0
      %275 = vst [vmem:[#allocation2 + $0x78] sm:$0x3] 0.0
      %276 = vst [vmem:[#allocation2 + $0x80] sm:$0xff] 0.0
      %277 = vst [vmem:[#allocation2 + $0x88] sm:$0x3] 0.0
      %278 = vst [vmem:[#allocation2 + $0x90] sm:$0xff] 0.0
      %279 = vst [vmem:[#allocation2 + $0x98] sm:$0x3] 0.0
      %s280 = scalar_lea.vmem [#allocation2], 16
      %281 = vst [vmem:[%s280 + $0x1] sm:$0xff] %v252
      %282 = vst [vmem:[%s280 + $0x11] sm:$0xff] %v253
      %283 = vst [vmem:[%s280 + $0x21] sm:$0xff] %v254
      %284 = vst [vmem:[%s280 + $0x31] sm:$0xff] %v255
      %285 = vst [vmem:[%s280 + $0x41] sm:$0xff] %v256
      %286 = vst [vmem:[%s280 + $0x51] sm:$0xff] %v257
      %287 = vst [vmem:[%s280 + $0x61] sm:$0xff] %v258
      %288 = vst [vmem:[%s280 + $0x71] sm:$0xff] %v259
      %289 = vst [vmem:[#allocation3] sm:$0xff] 0.0
      %290 = vst [vmem:[#allocation3 + $0x8] sm:$0xff] 0.0
      %291 = vst [vmem:[#allocation3 + $0x10] sm:$0xff] 0.0
      %292 = vst [vmem:[#allocation3 + $0x18] sm:$0xff] 0.0
      %293 = vst [vmem:[#allocation3 + $0x20] sm:$0xff] 0.0
      %294 = vst [vmem:[#allocation3 + $0x28] sm:$0xff] 0.0
      %295 = vst [vmem:[#allocation3 + $0x30] sm:$0xff] 0.0
      %296 = vst [vmem:[#allocation3 + $0x38] sm:$0xff] 0.0
      %v297 = vld [vmem:[#allocation2] sm:$0xff]
      %v298 = vld [vmem:[#allocation2 + $0x10] sm:$0xff]
      %v299 = vld [vmem:[#allocation2 + $0x20] sm:$0xff]
      %v300 = vld [vmem:[#allocation2 + $0x30] sm:$0xff]
      %v301 = vld [vmem:[#allocation2 + $0x40] sm:$0xff]
      %v302 = vld [vmem:[#allocation2 + $0x50] sm:$0xff]
      %v303 = vld [vmem:[#allocation2 + $0x60] sm:$0xff]
      %v304 = vld [vmem:[#allocation2 + $0x70] sm:$0xff]
      %v305 = vpack.c.bf16 %v298, %v297
      %v306 = vpack.c.bf16 %v300, %v299
      %v307 = vpack.c.bf16 %v302, %v301
      %v308 = vpack.c.bf16 %v304, %v303
      %v309 = vld [vmem:[#allocation3] sm:$0xff]
      %v310 = vld [vmem:[#allocation3 + $0x8] sm:$0xff]
      %v311 = vld [vmem:[#allocation3 + $0x10] sm:$0xff]
      %v312 = vld [vmem:[#allocation3 + $0x18] sm:$0xff]
      %v313 = vld [vmem:[#allocation3 + $0x20] sm:$0xff]
      %v314 = vld [vmem:[#allocation3 + $0x28] sm:$0xff]
      %v315 = vld [vmem:[#allocation3 + $0x30] sm:$0xff]
      %v316 = vld [vmem:[#allocation3 + $0x38] sm:$0xff]
      %v317 = vld [vmem:[%s2] sm:$0xf]
      %v318 = vld [vmem:[%s2 + $0x4] sm:$0xf]
      %v319 = vld [vmem:[%s2 + $0x8] sm:$0xf]
      %v320 = vld [vmem:[%s2 + $0xc] sm:$0xf]
      %v321 = vld [vmem:[%s2 + $0x10] sm:$0xf]
      %v322 = vld [vmem:[%s2 + $0x14] sm:$0xf]
      %v323 = vld [vmem:[%s2 + $0x18] sm:$0xf]
      %v324 = vld [vmem:[%s2 + $0x1c] sm:$0xf]
      %v325 = vld [vmem:[%s2 + $0x20] sm:$0xf]
      %v326 = vld [vmem:[%s2 + $0x24] sm:$0xf]
      %v327 = vld [vmem:[%s2 + $0x28] sm:$0xf]
      %v328 = vld [vmem:[%s2 + $0x2c] sm:$0xf]
      %v329 = vld [vmem:[%s2 + $0x30] sm:$0xf]
      %v330 = vld [vmem:[%s2 + $0x34] sm:$0xf]
      %v331 = vld [vmem:[%s2 + $0x38] sm:$0xf]
      %v332 = vld [vmem:[%s2 + $0x3c] sm:$0xf]
      %v349 = vunpack.c.l.b16 %v317
      %v350 = vunpack.c.l.b16 %v318
      %v351 = vunpack.c.l.b16 %v319
      %v352 = vunpack.c.l.b16 %v320
      %v353 = vunpack.c.l.b16 %v321
      %v354 = vunpack.c.l.b16 %v322
      %v355 = vunpack.c.l.b16 %v323
      %v356 = vunpack.c.l.b16 %v324
      %v357 = vunpack.c.l.b16 %v325
      %v358 = vunpack.c.l.b16 %v326
      %v359 = vunpack.c.l.b16 %v327
      %v360 = vunpack.c.l.b16 %v328
      %v361 = vunpack.c.l.b16 %v329
      %v362 = vunpack.c.l.b16 %v330
      %v363 = vunpack.c.l.b16 %v331
      %v364 = vunpack.c.l.b16 %v332
      %v365 = vpack.c.b16 %v350, %v349
      %v366 = vpack.c.b16 %v352, %v351
      %v367 = vpack.c.b16 %v354, %v353
      %v368 = vpack.c.b16 %v356, %v355
      %v369 = vpack.c.b16 %v358, %v357
      %v370 = vpack.c.b16 %v360, %v359
      %v371 = vpack.c.b16 %v362, %v361
      %v372 = vpack.c.b16 %v364, %v363
      %381 = vmatprep.subr.bf16.mxu0 0
      %382 = vmatpush1.bf16.msra.mxu0 %v365
      %383 = vmatprep.subr.bf16.mxu0 0
      %384 = vmatpush1.bf16.msra.mxu0 %v366
      %385 = vmatprep.subr.bf16.mxu0 0
      %386 = vmatpush1.bf16.msra.mxu0 %v367
      %387 = vmatprep.subr.bf16.mxu0 0
      %388 = vmatpush1.bf16.msra.mxu0 %v368
      %389 = vmatprep.subr.bf16.mxu0 0
      %390 = vmatpush1.bf16.msra.mxu0 %v369
      %391 = vmatprep.subr.bf16.mxu0 0
      %392 = vmatpush1.bf16.msra.mxu0 %v370
      %393 = vmatprep.subr.bf16.mxu0 0
      %394 = vmatpush1.bf16.msra.mxu0 %v371
      %395 = vmatprep.subr.bf16.mxu0 0
      %396 = vmatpush1.bf16.msra.mxu0 %v372
      %397 = vmatprep.subr.bf16.mxu0 0
      %398 = vmatpush1.bf16.msra.mxu0 0
      %399 = vmatprep.subr.bf16.mxu0 0
      %400 = vmatpush1.bf16.msra.mxu0 0
      %401 = vmatprep.subr.bf16.mxu0 0
      %402 = vmatpush1.bf16.msra.mxu0 0
      %403 = vmatprep.subr.bf16.mxu0 0
      %404 = vmatpush1.bf16.msra.mxu0 0
      %405 = vmatprep.subr.bf16.mxu0 0
      %406 = vmatpush1.bf16.msra.mxu0 0
      %407 = vmatprep.subr.bf16.mxu0 0
      %408 = vmatpush1.bf16.msra.mxu0 0
      %409 = vmatprep.subr.bf16.mxu0 0
      %410 = vmatpush1.bf16.msra.mxu0 0
      %411 = vmatprep.subr.bf16.mxu0 0
      %412 = vmatpush1.bf16.msra.mxu0 0
      %413 = vmatprep.mubr.bf16.mxu0 0
      %414 = vmatmul.mubr.bf16.gmra.mrb[0].mxu0 %v305
      %v415 = vpop.f32.mrb[0].mxu0
      %v416 = vadd.f32 0.0, %v415
      %v417 = vpop.f32.mrb[0].mxu0
      %v418 = vpop.f32.mrb[0].mxu0
      %v419 = vadd.f32 0.0, %v418
      %v420 = vpop.f32.mrb[0].mxu0
      %421 = vmatprep.mubr.bf16.mxu0 0
      %422 = vmatmul.mubr.bf16.gmra.mrb[0].mxu0 %v306
      %v423 = vpop.f32.mrb[0].mxu0
      %v424 = vadd.f32 0.0, %v423
      %v425 = vpop.f32.mrb[0].mxu0
      %v426 = vpop.f32.mrb[0].mxu0
      %v427 = vadd.f32 0.0, %v426
      %v428 = vpop.f32.mrb[0].mxu0
      %429 = vmatprep.mubr.bf16.mxu0 0
      %430 = vmatmul.mubr.bf16.gmra.mrb[0].mxu0 %v307
      %v431 = vpop.f32.mrb[0].mxu0
      %v432 = vadd.f32 0.0, %v431
      %v433 = vpop.f32.mrb[0].mxu0
      %v434 = vpop.f32.mrb[0].mxu0
      %v435 = vadd.f32 0.0, %v434
      %v436 = vpop.f32.mrb[0].mxu0
      %437 = vmatprep.mubr.bf16.mxu0 0
      %438 = vmatmul.mubr.bf16.gmra.mrb[0].mxu0 %v308
      %v439 = vpop.f32.mrb[0].mxu0
      %v440 = vadd.f32 0.0, %v439
      %v441 = vpop.f32.mrb[0].mxu0
      %v442 = vpop.f32.mrb[0].mxu0
      %v443 = vadd.f32 0.0, %v442
      %v444 = vpop.f32.mrb[0].mxu0
      %445 = vdwg.mxu0
      %v446 = vadd.f32 %v309, %v416
      %v447 = vadd.f32 %v310, %v419
      %v448 = vadd.f32 %v311, %v424
      %v449 = vadd.f32 %v312, %v427
      %v450 = vadd.f32 %v313, %v432
      %v451 = vadd.f32 %v314, %v435
      %v452 = vadd.f32 %v315, %v440
      %v453 = vadd.f32 %v316, %v443
      %454 = vst [vmem:[#allocation3] sm:$0xff] %v446
      %455 = vst [vmem:[#allocation3 + $0x8] sm:$0xff] %v447
      %456 = vst [vmem:[#allocation3 + $0x10] sm:$0xff] %v448
      %457 = vst [vmem:[#allocation3 + $0x18] sm:$0xff] %v449
      %458 = vst [vmem:[#allocation3 + $0x20] sm:$0xff] %v450
      %459 = vst [vmem:[#allocation3 + $0x28] sm:$0xff] %v451
      %460 = vst [vmem:[#allocation3 + $0x30] sm:$0xff] %v452
      %461 = vst [vmem:[#allocation3 + $0x38] sm:$0xff] %v453
      %v462 = vld [vmem:[#allocation2 + $0x1] sm:$0xff]
      %v463 = vld [vmem:[#allocation2 + $0x11] sm:$0xff]
      %v464 = vld [vmem:[#allocation2 + $0x21] sm:$0xff]
      %v465 = vld [vmem:[#allocation2 + $0x31] sm:$0xff]
      %v466 = vld [vmem:[#allocation2 + $0x41] sm:$0xff]
      %v467 = vld [vmem:[#allocation2 + $0x51] sm:$0xff]
      %v468 = vld [vmem:[#allocation2 + $0x61] sm:$0xff]
      %v469 = vld [vmem:[#allocation2 + $0x71] sm:$0xff]
      %v470 = vpack.c.bf16 %v463, %v462
      %v471 = vpack.c.bf16 %v465, %v464
      %v472 = vpack.c.bf16 %v467, %v466
      %v473 = vpack.c.bf16 %v469, %v468
      %v474 = vld [vmem:[#allocation3] sm:$0xff]
      %v475 = vld [vmem:[#allocation3 + $0x8] sm:$0xff]
      %v476 = vld [vmem:[#allocation3 + $0x10] sm:$0xff]
      %v477 = vld [vmem:[#allocation3 + $0x18] sm:$0xff]
      %v478 = vld [vmem:[#allocation3 + $0x20] sm:$0xff]
      %v479 = vld [vmem:[#allocation3 + $0x28] sm:$0xff]
      %v480 = vld [vmem:[#allocation3 + $0x30] sm:$0xff]
      %v481 = vld [vmem:[#allocation3 + $0x38] sm:$0xff]
      %s482 = scalar_lea.vmem %s2, 64
      %v483 = vld [vmem:[%s482] sm:$0xf]
      %v484 = vld [vmem:[%s482 + $0x4] sm:$0xf]
      %v485 = vld [vmem:[%s482 + $0x8] sm:$0xf]
      %v486 = vld [vmem:[%s482 + $0xc] sm:$0xf]
      %v487 = vld [vmem:[%s482 + $0x10] sm:$0xf]
      %v488 = vld [vmem:[%s482 + $0x14] sm:$0xf]
      %v489 = vld [vmem:[%s482 + $0x18] sm:$0xf]
      %v490 = vld [vmem:[%s482 + $0x1c] sm:$0xf]
      %v491 = vld [vmem:[%s482 + $0x20] sm:$0xf]
      %v492 = vld [vmem:[%s482 + $0x24] sm:$0xf]
      %v493 = vld [vmem:[%s482 + $0x28] sm:$0xf]
      %v494 = vld [vmem:[%s482 + $0x2c] sm:$0xf]
      %v495 = vld [vmem:[%s482 + $0x30] sm:$0xf]
      %v496 = vld [vmem:[%s482 + $0x34] sm:$0xf]
      %v497 = vld [vmem:[%s482 + $0x38] sm:$0xf]
      %v498 = vld [vmem:[%s482 + $0x3c] sm:$0xf]
      %v515 = vunpack.c.l.b16 %v483
      %v516 = vunpack.c.l.b16 %v484
      %v517 = vunpack.c.l.b16 %v485
      %v518 = vunpack.c.l.b16 %v486
      %v519 = vunpack.c.l.b16 %v487
      %v520 = vunpack.c.l.b16 %v488
      %v521 = vunpack.c.l.b16 %v489
      %v522 = vunpack.c.l.b16 %v490
      %v523 = vunpack.c.l.b16 %v491
      %v524 = vunpack.c.l.b16 %v492
      %v525 = vunpack.c.l.b16 %v493
      %v526 = vunpack.c.l.b16 %v494
      %v527 = vunpack.c.l.b16 %v495
      %v528 = vunpack.c.l.b16 %v496
      %v529 = vunpack.c.l.b16 %v497
      %v530 = vunpack.c.l.b16 %v498
      %v531 = vpack.c.b16 %v516, %v515
      %v532 = vpack.c.b16 %v518, %v517
      %v533 = vpack.c.b16 %v520, %v519
      %v534 = vpack.c.b16 %v522, %v521
      %v535 = vpack.c.b16 %v524, %v523
      %v536 = vpack.c.b16 %v526, %v525
      %v537 = vpack.c.b16 %v528, %v527
      %v538 = vpack.c.b16 %v530, %v529
      %547 = vmatprep.subr.bf16.mxu0 0
      %548 = vmatpush1.bf16.msra.mxu0 %v531
      %549 = vmatprep.subr.bf16.mxu0 0
      %550 = vmatpush1.bf16.msra.mxu0 %v532
      %551 = vmatprep.subr.bf16.mxu0 0
      %552 = vmatpush1.bf16.msra.mxu0 %v533
      %553 = vmatprep.subr.bf16.mxu0 0
      %554 = vmatpush1.bf16.msra.mxu0 %v534
      %555 = vmatprep.subr.bf16.mxu0 0
      %556 = vmatpush1.bf16.msra.mxu0 %v535
      %557 = vmatprep.subr.bf16.mxu0 0
      %558 = vmatpush1.bf16.msra.mxu0 %v536
      %559 = vmatprep.subr.bf16.mxu0 0
      %560 = vmatpush1.bf16.msra.mxu0 %v537
      %561 = vmatprep.subr.bf16.mxu0 0
      %562 = vmatpush1.bf16.msra.mxu0 %v538
      %563 = vmatprep.subr.bf16.mxu0 0
      %564 = vmatpush1.bf16.msra.mxu0 0
      %565 = vmatprep.subr.bf16.mxu0 0
      %566 = vmatpush1.bf16.msra.mxu0 0
      %567 = vmatprep.subr.bf16.mxu0 0
      %568 = vmatpush1.bf16.msra.mxu0 0
      %569 = vmatprep.subr.bf16.mxu0 0
      %570 = vmatpush1.bf16.msra.mxu0 0
      %571 = vmatprep.subr.bf16.mxu0 0
      %572 = vmatpush1.bf16.msra.mxu0 0
      %573 = vmatprep.subr.bf16.mxu0 0
      %574 = vmatpush1.bf16.msra.mxu0 0
      %575 = vmatprep.subr.bf16.mxu0 0
      %576 = vmatpush1.bf16.msra.mxu0 0
      %577 = vmatprep.subr.bf16.mxu0 0
      %578 = vmatpush1.bf16.msra.mxu0 0
      %579 = vmatprep.mubr.bf16.mxu0 0
      %580 = vmatmul.mubr.bf16.gmra.mrb[0].mxu0 %v470
      %v581 = vpop.f32.mrb[0].mxu0
      %v582 = vadd.f32 0.0, %v581
      %v583 = vpop.f32.mrb[0].mxu0
      %v584 = vpop.f32.mrb[0].mxu0
      %v585 = vadd.f32 0.0, %v584
      %v586 = vpop.f32.mrb[0].mxu0
      %587 = vmatprep.mubr.bf16.mxu0 0
      %588 = vmatmul.mubr.bf16.gmra.mrb[0].mxu0 %v471
      %v589 = vpop.f32.mrb[0].mxu0
      %v590 = vadd.f32 0.0, %v589
      %v591 = vpop.f32.mrb[0].mxu0
      %v592 = vpop.f32.mrb[0].mxu0
      %v593 = vadd.f32 0.0, %v592
      %v594 = vpop.f32.mrb[0].mxu0
      %595 = vmatprep.mubr.bf16.mxu0 0
      %596 = vmatmul.mubr.bf16.gmra.mrb[0].mxu0 %v472
      %v597 = vpop.f32.mrb[0].mxu0
      %v598 = vadd.f32 0.0, %v597
      %v599 = vpop.f32.mrb[0].mxu0
      %v600 = vpop.f32.mrb[0].mxu0
      %v601 = vadd.f32 0.0, %v600
      %v602 = vpop.f32.mrb[0].mxu0
      %603 = vmatprep.mubr.bf16.mxu0 0
      %604 = vmatmul.mubr.bf16.gmra.mrb[0].mxu0 %v473
      %v605 = vpop.f32.mrb[0].mxu0
      %v606 = vadd.f32 0.0, %v605
      %v607 = vpop.f32.mrb[0].mxu0
      %v608 = vpop.f32.mrb[0].mxu0
      %v609 = vadd.f32 0.0, %v608
      %v610 = vpop.f32.mrb[0].mxu0
      %611 = vdwg.mxu0
      %v612 = vadd.f32 %v474, %v582
      %v613 = vadd.f32 %v475, %v585
      %v614 = vadd.f32 %v476, %v590
      %v615 = vadd.f32 %v477, %v593
      %v616 = vadd.f32 %v478, %v598
      %v617 = vadd.f32 %v479, %v601
      %v618 = vadd.f32 %v480, %v606
      %v619 = vadd.f32 %v481, %v609
      %620 = vst [vmem:[#allocation3] sm:$0xff] %v612
      %621 = vst [vmem:[#allocation3 + $0x8] sm:$0xff] %v613
      %622 = vst [vmem:[#allocation3 + $0x10] sm:$0xff] %v614
      %623 = vst [vmem:[#allocation3 + $0x18] sm:$0xff] %v615
      %624 = vst [vmem:[#allocation3 + $0x20] sm:$0xff] %v616
      %625 = vst [vmem:[#allocation3 + $0x28] sm:$0xff] %v617
      %626 = vst [vmem:[#allocation3 + $0x30] sm:$0xff] %v618
      %627 = vst [vmem:[#allocation3 + $0x38] sm:$0xff] %v619
      %v628 = vld [vmem:[#allocation2 + $0x2] sm:$0xff]
      %v629 = vld [vmem:[#allocation2 + $0x12] sm:$0xff]
      %v630 = vld [vmem:[#allocation2 + $0x22] sm:$0xff]
      %v631 = vld [vmem:[#allocation2 + $0x32] sm:$0xff]
      %v632 = vld [vmem:[#allocation2 + $0x42] sm:$0xff]
      %v633 = vld [vmem:[#allocation2 + $0x52] sm:$0xff]
      %v634 = vld [vmem:[#allocation2 + $0x62] sm:$0xff]
      %v635 = vld [vmem:[#allocation2 + $0x72] sm:$0xff]
      %v636 = vpack.c.bf16 %v629, %v628
      %v637 = vpack.c.bf16 %v631, %v630
      %v638 = vpack.c.bf16 %v633, %v632
      %v639 = vpack.c.bf16 %v635, %v634
      %v640 = vld [vmem:[#allocation3] sm:$0xff]
      %v641 = vld [vmem:[#allocation3 + $0x8] sm:$0xff]
      %v642 = vld [vmem:[#allocation3 + $0x10] sm:$0xff]
      %v643 = vld [vmem:[#allocation3 + $0x18] sm:$0xff]
      %v644 = vld [vmem:[#allocation3 + $0x20] sm:$0xff]
      %v645 = vld [vmem:[#allocation3 + $0x28] sm:$0xff]
      %v646 = vld [vmem:[#allocation3 + $0x30] sm:$0xff]
      %v647 = vld [vmem:[#allocation3 + $0x38] sm:$0xff]
      %s648 = scalar_lea.vmem %s2, 128
      %v649 = vld [vmem:[%s648] sm:$0xf]
      %v650 = vld [vmem:[%s648 + $0x4] sm:$0xf]
      %v651 = vld [vmem:[%s648 + $0x8] sm:$0xf]
      %v652 = vld [vmem:[%s648 + $0xc] sm:$0xf]
      %v653 = vld [vmem:[%s648 + $0x10] sm:$0xf]
      %v654 = vld [vmem:[%s648 + $0x14] sm:$0xf]
      %v655 = vld [vmem:[%s648 + $0x18] sm:$0xf]
      %v656 = vld [vmem:[%s648 + $0x1c] sm:$0xf]
      %v657 = vld [vmem:[%s648 + $0x20] sm:$0xf]
      %v658 = vld [vmem:[%s648 + $0x24] sm:$0xf]
      %v659 = vld [vmem:[%s648 + $0x28] sm:$0xf]
      %v660 = vld [vmem:[%s648 + $0x2c] sm:$0xf]
      %v661 = vld [vmem:[%s648 + $0x30] sm:$0xf]
      %v662 = vld [vmem:[%s648 + $0x34] sm:$0xf]
      %v663 = vld [vmem:[%s648 + $0x38] sm:$0xf]
      %v664 = vld [vmem:[%s648 + $0x3c] sm:$0xf]
      %v681 = vunpack.c.l.b16 %v649
      %v682 = vunpack.c.l.b16 %v650
      %v683 = vunpack.c.l.b16 %v651
      %v684 = vunpack.c.l.b16 %v652
      %v685 = vunpack.c.l.b16 %v653
      %v686 = vunpack.c.l.b16 %v654
      %v687 = vunpack.c.l.b16 %v655
      %v688 = vunpack.c.l.b16 %v656
      %v689 = vunpack.c.l.b16 %v657
      %v690 = vunpack.c.l.b16 %v658
      %v691 = vunpack.c.l.b16 %v659
      %v692 = vunpack.c.l.b16 %v660
      %v693 = vunpack.c.l.b16 %v661
      %v694 = vunpack.c.l.b16 %v662
      %v695 = vunpack.c.l.b16 %v663
      %v696 = vunpack.c.l.b16 %v664
      %v697 = vpack.c.b16 %v682, %v681
      %v698 = vpack.c.b16 %v684, %v683
      %v699 = vpack.c.b16 %v686, %v685
      %v700 = vpack.c.b16 %v688, %v687
      %v701 = vpack.c.b16 %v690, %v689
      %v702 = vpack.c.b16 %v692, %v691
      %v703 = vpack.c.b16 %v694, %v693
      %v704 = vpack.c.b16 %v696, %v695
      %713 = vmatprep.subr.bf16.mxu0 0
      %714 = vmatpush1.bf16.msra.mxu0 %v697
      %715 = vmatprep.subr.bf16.mxu0 0
      %716 = vmatpush1.bf16.msra.mxu0 %v698
      %717 = vmatprep.subr.bf16.mxu0 0
      %718 = vmatpush1.bf16.msra.mxu0 %v699
      %719 = vmatprep.subr.bf16.mxu0 0
      %720 = vmatpush1.bf16.msra.mxu0 %v700
      %721 = vmatprep.subr.bf16.mxu0 0
      %722 = vmatpush1.bf16.msra.mxu0 %v701
      %723 = vmatprep.subr.bf16.mxu0 0
      %724 = vmatpush1.bf16.msra.mxu0 %v702
      %725 = vmatprep.subr.bf16.mxu0 0
      %726 = vmatpush1.bf16.msra.mxu0 %v703
      %727 = vmatprep.subr.bf16.mxu0 0
      %728 = vmatpush1.bf16.msra.mxu0 %v704
      %729 = vmatprep.subr.bf16.mxu0 0
      %730 = vmatpush1.bf16.msra.mxu0 0
      %731 = vmatprep.subr.bf16.mxu0 0
      %732 = vmatpush1.bf16.msra.mxu0 0
      %733 = vmatprep.subr.bf16.mxu0 0
      %734 = vmatpush1.bf16.msra.mxu0 0
      %735 = vmatprep.subr.bf16.mxu0 0
      %736 = vmatpush1.bf16.msra.mxu0 0
      %737 = vmatprep.subr.bf16.mxu0 0
      %738 = vmatpush1.bf16.msra.mxu0 0
      %739 = vmatprep.subr.bf16.mxu0 0
      %740 = vmatpush1.bf16.msra.mxu0 0
      %741 = vmatprep.subr.bf16.mxu0 0
      %742 = vmatpush1.bf16.msra.mxu0 0
      %743 = vmatprep.subr.bf16.mxu0 0
      %744 = vmatpush1.bf16.msra.mxu0 0
      %745 = vmatprep.mubr.bf16.mxu0 0
      %746 = vmatmul.mubr.bf16.gmra.mrb[0].mxu0 %v636
      %v747 = vpop.f32.mrb[0].mxu0
      %v748 = vadd.f32 0.0, %v747
      %v749 = vpop.f32.mrb[0].mxu0
      %v750 = vpop.f32.mrb[0].mxu0
      %v751 = vadd.f32 0.0, %v750
      %v752 = vpop.f32.mrb[0].mxu0
      %753 = vmatprep.mubr.bf16.mxu0 0
      %754 = vmatmul.mubr.bf16.gmra.mrb[0].mxu0 %v637
      %v755 = vpop.f32.mrb[0].mxu0
      %v756 = vadd.f32 0.0, %v755
      %v757 = vpop.f32.mrb[0].mxu0
      %v758 = vpop.f32.mrb[0].mxu0
      %v759 = vadd.f32 0.0, %v758
      %v760 = vpop.f32.mrb[0].mxu0
      %761 = vmatprep.mubr.bf16.mxu0 0
      %762 = vmatmul.mubr.bf16.gmra.mrb[0].mxu0 %v638
      %v763 = vpop.f32.mrb[0].mxu0
      %v764 = vadd.f32 0.0, %v763
      %v765 = vpop.f32.mrb[0].mxu0
      %v766 = vpop.f32.mrb[0].mxu0
      %v767 = vadd.f32 0.0, %v766
      %v768 = vpop.f32.mrb[0].mxu0
      %769 = vmatprep.mubr.bf16.mxu0 0
      %770 = vmatmul.mubr.bf16.gmra.mrb[0].mxu0 %v639
      %v771 = vpop.f32.mrb[0].mxu0
      %v772 = vadd.f32 0.0, %v771
      %v773 = vpop.f32.mrb[0].mxu0
      %v774 = vpop.f32.mrb[0].mxu0
      %v775 = vadd.f32 0.0, %v774
      %v776 = vpop.f32.mrb[0].mxu0
      %777 = vdwg.mxu0
      %v778 = vadd.f32 %v640, %v748
      %v779 = vadd.f32 %v641, %v751
      %v780 = vadd.f32 %v642, %v756
      %v781 = vadd.f32 %v643, %v759
      %v782 = vadd.f32 %v644, %v764
      %v783 = vadd.f32 %v645, %v767
      %v784 = vadd.f32 %v646, %v772
      %v785 = vadd.f32 %v647, %v775
      %786 = vst [vmem:[#allocation3] sm:$0xff] %v778
      %787 = vst [vmem:[#allocation3 + $0x8] sm:$0xff] %v779
      %788 = vst [vmem:[#allocation3 + $0x10] sm:$0xff] %v780
      %789 = vst [vmem:[#allocation3 + $0x18] sm:$0xff] %v781
      %790 = vst [vmem:[#allocation3 + $0x20] sm:$0xff] %v782
      %791 = vst [vmem:[#allocation3 + $0x28] sm:$0xff] %v783
      %792 = vst [vmem:[#allocation3 + $0x30] sm:$0xff] %v784
      %793 = vst [vmem:[#allocation3 + $0x38] sm:$0xff] %v785
      %v794 = vld [vmem:[%s280] sm:$0xff]
      %v795 = vld [vmem:[%s280 + $0x10] sm:$0xff]
      %v796 = vld [vmem:[%s280 + $0x20] sm:$0xff]
      %v797 = vld [vmem:[%s280 + $0x30] sm:$0xff]
      %v798 = vld [vmem:[%s280 + $0x40] sm:$0xff]
      %v799 = vld [vmem:[%s280 + $0x50] sm:$0xff]
      %v800 = vld [vmem:[%s280 + $0x60] sm:$0xff]
      %v801 = vld [vmem:[%s280 + $0x70] sm:$0xff]
      %v802 = vpack.c.bf16 %v795, %v794
      %v803 = vpack.c.bf16 %v797, %v796
      %v804 = vpack.c.bf16 %v799, %v798
      %v805 = vpack.c.bf16 %v801, %v800
      %v806 = vld [vmem:[#allocation3] sm:$0xff]
      %v807 = vld [vmem:[#allocation3 + $0x8] sm:$0xff]
      %v808 = vld [vmem:[#allocation3 + $0x10] sm:$0xff]
      %v809 = vld [vmem:[#allocation3 + $0x18] sm:$0xff]
      %v810 = vld [vmem:[#allocation3 + $0x20] sm:$0xff]
      %v811 = vld [vmem:[#allocation3 + $0x28] sm:$0xff]
      %v812 = vld [vmem:[#allocation3 + $0x30] sm:$0xff]
      %v813 = vld [vmem:[#allocation3 + $0x38] sm:$0xff]
      %s814 = scalar_lea.vmem %s2, 192
      %v815 = vld [vmem:[%s814] sm:$0xf]
      %v816 = vld [vmem:[%s814 + $0x4] sm:$0xf]
      %v817 = vld [vmem:[%s814 + $0x8] sm:$0xf]
      %v818 = vld [vmem:[%s814 + $0xc] sm:$0xf]
      %v819 = vld [vmem:[%s814 + $0x10] sm:$0xf]
      %v820 = vld [vmem:[%s814 + $0x14] sm:$0xf]
      %v821 = vld [vmem:[%s814 + $0x18] sm:$0xf]
      %v822 = vld [vmem:[%s814 + $0x1c] sm:$0xf]
      %v823 = vld [vmem:[%s814 + $0x20] sm:$0xf]
      %v824 = vld [vmem:[%s814 + $0x24] sm:$0xf]
      %v825 = vld [vmem:[%s814 + $0x28] sm:$0xf]
      %v826 = vld [vmem:[%s814 + $0x2c] sm:$0xf]
      %v827 = vld [vmem:[%s814 + $0x30] sm:$0xf]
      %v828 = vld [vmem:[%s814 + $0x34] sm:$0xf]
      %v829 = vld [vmem:[%s814 + $0x38] sm:$0xf]
      %v830 = vld [vmem:[%s814 + $0x3c] sm:$0xf]
      %v847 = vunpack.c.l.b16 %v815
      %v848 = vunpack.c.l.b16 %v816
      %v849 = vunpack.c.l.b16 %v817
      %v850 = vunpack.c.l.b16 %v818
      %v851 = vunpack.c.l.b16 %v819
      %v852 = vunpack.c.l.b16 %v820
      %v853 = vunpack.c.l.b16 %v821
      %v854 = vunpack.c.l.b16 %v822
      %v855 = vunpack.c.l.b16 %v823
      %v856 = vunpack.c.l.b16 %v824
      %v857 = vunpack.c.l.b16 %v825
      %v858 = vunpack.c.l.b16 %v826
      %v859 = vunpack.c.l.b16 %v827
      %v860 = vunpack.c.l.b16 %v828
      %v861 = vunpack.c.l.b16 %v829
      %v862 = vunpack.c.l.b16 %v830
      %v863 = vpack.c.b16 %v848, %v847
      %v864 = vpack.c.b16 %v850, %v849
      %v865 = vpack.c.b16 %v852, %v851
      %v866 = vpack.c.b16 %v854, %v853
      %v867 = vpack.c.b16 %v856, %v855
      %v868 = vpack.c.b16 %v858, %v857
      %v869 = vpack.c.b16 %v860, %v859
      %v870 = vpack.c.b16 %v862, %v861
      %879 = vmatprep.subr.bf16.mxu0 0
      %880 = vmatpush1.bf16.msra.mxu0 %v863
      %881 = vmatprep.subr.bf16.mxu0 0
      %882 = vmatpush1.bf16.msra.mxu0 %v864
      %883 = vmatprep.subr.bf16.mxu0 0
      %884 = vmatpush1.bf16.msra.mxu0 %v865
      %885 = vmatprep.subr.bf16.mxu0 0
      %886 = vmatpush1.bf16.msra.mxu0 %v866
      %887 = vmatprep.subr.bf16.mxu0 0
      %888 = vmatpush1.bf16.msra.mxu0 %v867
      %889 = vmatprep.subr.bf16.mxu0 0
      %890 = vmatpush1.bf16.msra.mxu0 %v868
      %891 = vmatprep.subr.bf16.mxu0 0
      %892 = vmatpush1.bf16.msra.mxu0 %v869
      %893 = vmatprep.subr.bf16.mxu0 0
      %894 = vmatpush1.bf16.msra.mxu0 %v870
      %895 = vmatprep.subr.bf16.mxu0 0
      %896 = vmatpush1.bf16.msra.mxu0 0
      %897 = vmatprep.subr.bf16.mxu0 0
      %898 = vmatpush1.bf16.msra.mxu0 0
      %899 = vmatprep.subr.bf16.mxu0 0
      %900 = vmatpush1.bf16.msra.mxu0 0
      %901 = vmatprep.subr.bf16.mxu0 0
      %902 = vmatpush1.bf16.msra.mxu0 0
      %903 = vmatprep.subr.bf16.mxu0 0
      %904 = vmatpush1.bf16.msra.mxu0 0
      %905 = vmatprep.subr.bf16.mxu0 0
      %906 = vmatpush1.bf16.msra.mxu0 0
      %907 = vmatprep.subr.bf16.mxu0 0
      %908 = vmatpush1.bf16.msra.mxu0 0
      %909 = vmatprep.subr.bf16.mxu0 0
      %910 = vmatpush1.bf16.msra.mxu0 0
      %911 = vmatprep.mubr.bf16.mxu0 0
      %912 = vmatmul.mubr.bf16.gmra.mrb[0].mxu0 %v802
      %v913 = vpop.f32.mrb[0].mxu0
      %v914 = vadd.f32 0.0, %v913
      %v915 = vpop.f32.mrb[0].mxu0
      %v916 = vpop.f32.mrb[0].mxu0
      %v917 = vadd.f32 0.0, %v916
      %v918 = vpop.f32.mrb[0].mxu0
      %919 = vmatprep.mubr.bf16.mxu0 0
      %920 = vmatmul.mubr.bf16.gmra.mrb[0].mxu0 %v803
      %v921 = vpop.f32.mrb[0].mxu0
      %v922 = vadd.f32 0.0, %v921
      %v923 = vpop.f32.mrb[0].mxu0
      %v924 = vpop.f32.mrb[0].mxu0
      %v925 = vadd.f32 0.0, %v924
      %v926 = vpop.f32.mrb[0].mxu0
      %927 = vmatprep.mubr.bf16.mxu0 0
      %928 = vmatmul.mubr.bf16.gmra.mrb[0].mxu0 %v804
      %v929 = vpop.f32.mrb[0].mxu0
      %v930 = vadd.f32 0.0, %v929
      %v931 = vpop.f32.mrb[0].mxu0
      %v932 = vpop.f32.mrb[0].mxu0
      %v933 = vadd.f32 0.0, %v932
      %v934 = vpop.f32.mrb[0].mxu0
      %935 = vmatprep.mubr.bf16.mxu0 0
      %936 = vmatmul.mubr.bf16.gmra.mrb[0].mxu0 %v805
      %v937 = vpop.f32.mrb[0].mxu0
      %v938 = vadd.f32 0.0, %v937
      %v939 = vpop.f32.mrb[0].mxu0
      %v940 = vpop.f32.mrb[0].mxu0
      %v941 = vadd.f32 0.0, %v940
      %v942 = vpop.f32.mrb[0].mxu0
      %943 = vdwg.mxu0
      %v944 = vadd.f32 %v806, %v914
      %v945 = vadd.f32 %v807, %v917
      %v946 = vadd.f32 %v808, %v922
      %v947 = vadd.f32 %v809, %v925
      %v948 = vadd.f32 %v810, %v930
      %v949 = vadd.f32 %v811, %v933
      %v950 = vadd.f32 %v812, %v938
      %v951 = vadd.f32 %v813, %v941
      %952 = vst [vmem:[#allocation3] sm:$0xff] %v944
      %953 = vst [vmem:[#allocation3 + $0x8] sm:$0xff] %v945
      %954 = vst [vmem:[#allocation3 + $0x10] sm:$0xff] %v946
      %955 = vst [vmem:[#allocation3 + $0x18] sm:$0xff] %v947
      %956 = vst [vmem:[#allocation3 + $0x20] sm:$0xff] %v948
      %957 = vst [vmem:[#allocation3 + $0x28] sm:$0xff] %v949
      %958 = vst [vmem:[#allocation3 + $0x30] sm:$0xff] %v950
      %959 = vst [vmem:[#allocation3 + $0x38] sm:$0xff] %v951
      %v960 = vld [vmem:[%s280 + $0x1] sm:$0xff]
      %v961 = vld [vmem:[%s280 + $0x11] sm:$0xff]
      %v962 = vld [vmem:[%s280 + $0x21] sm:$0xff]
      %v963 = vld [vmem:[%s280 + $0x31] sm:$0xff]
      %v964 = vld [vmem:[%s280 + $0x41] sm:$0xff]
      %v965 = vld [vmem:[%s280 + $0x51] sm:$0xff]
      %v966 = vld [vmem:[%s280 + $0x61] sm:$0xff]
      %v967 = vld [vmem:[%s280 + $0x71] sm:$0xff]
      %v968 = vpack.c.bf16 %v961, %v960
      %v969 = vpack.c.bf16 %v963, %v962
      %v970 = vpack.c.bf16 %v965, %v964
      %v971 = vpack.c.bf16 %v967, %v966
      %v972 = vld [vmem:[#allocation3] sm:$0xff]
      %v973 = vld [vmem:[#allocation3 + $0x8] sm:$0xff]
      %v974 = vld [vmem:[#allocation3 + $0x10] sm:$0xff]
      %v975 = vld [vmem:[#allocation3 + $0x18] sm:$0xff]
      %v976 = vld [vmem:[#allocation3 + $0x20] sm:$0xff]
      %v977 = vld [vmem:[#allocation3 + $0x28] sm:$0xff]
      %v978 = vld [vmem:[#allocation3 + $0x30] sm:$0xff]
      %v979 = vld [vmem:[#allocation3 + $0x38] sm:$0xff]
      %s980 = scalar_lea.vmem %s2, 256
      %v981 = vld [vmem:[%s980] sm:$0xf]
      %v982 = vld [vmem:[%s980 + $0x4] sm:$0xf]
      %v983 = vld [vmem:[%s980 + $0x8] sm:$0xf]
      %v984 = vld [vmem:[%s980 + $0xc] sm:$0xf]
      %v985 = vld [vmem:[%s980 + $0x10] sm:$0xf]
      %v986 = vld [vmem:[%s980 + $0x14] sm:$0xf]
      %v987 = vld [vmem:[%s980 + $0x18] sm:$0xf]
      %v988 = vld [vmem:[%s980 + $0x1c] sm:$0xf]
      %v989 = vld [vmem:[%s980 + $0x20] sm:$0xf]
      %v990 = vld [vmem:[%s980 + $0x24] sm:$0xf]
      %v991 = vld [vmem:[%s980 + $0x28] sm:$0xf]
      %v992 = vld [vmem:[%s980 + $0x2c] sm:$0xf]
      %v993 = vld [vmem:[%s980 + $0x30] sm:$0xf]
      %v994 = vld [vmem:[%s980 + $0x34] sm:$0xf]
      %v995 = vld [vmem:[%s980 + $0x38] sm:$0xf]
      %v996 = vld [vmem:[%s980 + $0x3c] sm:$0xf]
      %v1013 = vunpack.c.l.b16 %v981
      %v1014 = vunpack.c.l.b16 %v982
      %v1015 = vunpack.c.l.b16 %v983
      %v1016 = vunpack.c.l.b16 %v984
      %v1017 = vunpack.c.l.b16 %v985
      %v1018 = vunpack.c.l.b16 %v986
      %v1019 = vunpack.c.l.b16 %v987
      %v1020 = vunpack.c.l.b16 %v988
      %v1021 = vunpack.c.l.b16 %v989
      %v1022 = vunpack.c.l.b16 %v990
      %v1023 = vunpack.c.l.b16 %v991
      %v1024 = vunpack.c.l.b16 %v992
      %v1025 = vunpack.c.l.b16 %v993
      %v1026 = vunpack.c.l.b16 %v994
      %v1027 = vunpack.c.l.b16 %v995
      %v1028 = vunpack.c.l.b16 %v996
      %v1029 = vpack.c.b16 %v1014, %v1013
      %v1030 = vpack.c.b16 %v1016, %v1015
      %v1031 = vpack.c.b16 %v1018, %v1017
      %v1032 = vpack.c.b16 %v1020, %v1019
      %v1033 = vpack.c.b16 %v1022, %v1021
      %v1034 = vpack.c.b16 %v1024, %v1023
      %v1035 = vpack.c.b16 %v1026, %v1025
      %v1036 = vpack.c.b16 %v1028, %v1027
      %1045 = vmatprep.subr.bf16.mxu0 0
      %1046 = vmatpush1.bf16.msra.mxu0 %v1029
      %1047 = vmatprep.subr.bf16.mxu0 0
      %1048 = vmatpush1.bf16.msra.mxu0 %v1030
      %1049 = vmatprep.subr.bf16.mxu0 0
      %1050 = vmatpush1.bf16.msra.mxu0 %v1031
      %1051 = vmatprep.subr.bf16.mxu0 0
      %1052 = vmatpush1.bf16.msra.mxu0 %v1032
      %1053 = vmatprep.subr.bf16.mxu0 0
      %1054 = vmatpush1.bf16.msra.mxu0 %v1033
      %1055 = vmatprep.subr.bf16.mxu0 0
      %1056 = vmatpush1.bf16.msra.mxu0 %v1034
      %1057 = vmatprep.subr.bf16.mxu0 0
      %1058 = vmatpush1.bf16.msra.mxu0 %v1035
      %1059 = vmatprep.subr.bf16.mxu0 0
      %1060 = vmatpush1.bf16.msra.mxu0 %v1036
      %1061 = vmatprep.subr.bf16.mxu0 0
      %1062 = vmatpush1.bf16.msra.mxu0 0
      %1063 = vmatprep.subr.bf16.mxu0 0
      %1064 = vmatpush1.bf16.msra.mxu0 0
      %1065 = vmatprep.subr.bf16.mxu0 0
      %1066 = vmatpush1.bf16.msra.mxu0 0
      %1067 = vmatprep.subr.bf16.mxu0 0
      %1068 = vmatpush1.bf16.msra.mxu0 0
      %1069 = vmatprep.subr.bf16.mxu0 0
      %1070 = vmatpush1.bf16.msra.mxu0 0
      %1071 = vmatprep.subr.bf16.mxu0 0
      %1072 = vmatpush1.bf16.msra.mxu0 0
      %1073 = vmatprep.subr.bf16.mxu0 0
      %1074 = vmatpush1.bf16.msra.mxu0 0
      %1075 = vmatprep.subr.bf16.mxu0 0
      %1076 = vmatpush1.bf16.msra.mxu0 0
      %1077 = vmatprep.mubr.bf16.mxu0 0
      %1078 = vmatmul.mubr.bf16.gmra.mrb[0].mxu0 %v968
      %v1079 = vpop.f32.mrb[0].mxu0
      %v1080 = vadd.f32 0.0, %v1079
      %v1081 = vpop.f32.mrb[0].mxu0
      %v1082 = vpop.f32.mrb[0].mxu0
      %v1083 = vadd.f32 0.0, %v1082
      %v1084 = vpop.f32.mrb[0].mxu0
      %1085 = vmatprep.mubr.bf16.mxu0 0
      %1086 = vmatmul.mubr.bf16.gmra.mrb[0].mxu0 %v969
      %v1087 = vpop.f32.mrb[0].mxu0
      %v1088 = vadd.f32 0.0, %v1087
      %v1089 = vpop.f32.mrb[0].mxu0
      %v1090 = vpop.f32.mrb[0].mxu0
      %v1091 = vadd.f32 0.0, %v1090
      %v1092 = vpop.f32.mrb[0].mxu0
      %1093 = vmatprep.mubr.bf16.mxu0 0
      %1094 = vmatmul.mubr.bf16.gmra.mrb[0].mxu0 %v970
      %v1095 = vpop.f32.mrb[0].mxu0
      %v1096 = vadd.f32 0.0, %v1095
      %v1097 = vpop.f32.mrb[0].mxu0
      %v1098 = vpop.f32.mrb[0].mxu0
      %v1099 = vadd.f32 0.0, %v1098
      %v1100 = vpop.f32.mrb[0].mxu0
      %1101 = vmatprep.mubr.bf16.mxu0 0
      %1102 = vmatmul.mubr.bf16.gmra.mrb[0].mxu0 %v971
      %v1103 = vpop.f32.mrb[0].mxu0
      %v1104 = vadd.f32 0.0, %v1103
      %v1105 = vpop.f32.mrb[0].mxu0
      %v1106 = vpop.f32.mrb[0].mxu0
      %v1107 = vadd.f32 0.0, %v1106
      %v1108 = vpop.f32.mrb[0].mxu0
      %1109 = vdwg.mxu0
      %v1110 = vadd.f32 %v972, %v1080
      %v1111 = vadd.f32 %v973, %v1083
      %v1112 = vadd.f32 %v974, %v1088
      %v1113 = vadd.f32 %v975, %v1091
      %v1114 = vadd.f32 %v976, %v1096
      %v1115 = vadd.f32 %v977, %v1099
      %v1116 = vadd.f32 %v978, %v1104
      %v1117 = vadd.f32 %v979, %v1107
      %1118 = vst [vmem:[#allocation3] sm:$0xff] %v1110
      %1119 = vst [vmem:[#allocation3 + $0x8] sm:$0xff] %v1111
      %1120 = vst [vmem:[#allocation3 + $0x10] sm:$0xff] %v1112
      %1121 = vst [vmem:[#allocation3 + $0x18] sm:$0xff] %v1113
      %1122 = vst [vmem:[#allocation3 + $0x20] sm:$0xff] %v1114
      %1123 = vst [vmem:[#allocation3 + $0x28] sm:$0xff] %v1115
      %1124 = vst [vmem:[#allocation3 + $0x30] sm:$0xff] %v1116
      %1125 = vst [vmem:[#allocation3 + $0x38] sm:$0xff] %v1117
      %v1126 = vld [vmem:[%s280 + $0x2] sm:$0xff]
      %v1127 = vld [vmem:[%s280 + $0x12] sm:$0xff]
      %v1128 = vld [vmem:[%s280 + $0x22] sm:$0xff]
      %v1129 = vld [vmem:[%s280 + $0x32] sm:$0xff]
      %v1130 = vld [vmem:[%s280 + $0x42] sm:$0xff]
      %v1131 = vld [vmem:[%s280 + $0x52] sm:$0xff]
      %v1132 = vld [vmem:[%s280 + $0x62] sm:$0xff]
      %v1133 = vld [vmem:[%s280 + $0x72] sm:$0xff]
      %v1134 = vpack.c.bf16 %v1127, %v1126
      %v1135 = vpack.c.bf16 %v1129, %v1128
      %v1136 = vpack.c.bf16 %v1131, %v1130
      %v1137 = vpack.c.bf16 %v1133, %v1132
      %v1138 = vld [vmem:[#allocation3] sm:$0xff]
      %v1139 = vld [vmem:[#allocation3 + $0x8] sm:$0xff]
      %v1140 = vld [vmem:[#allocation3 + $0x10] sm:$0xff]
      %v1141 = vld [vmem:[#allocation3 + $0x18] sm:$0xff]
      %v1142 = vld [vmem:[#allocation3 + $0x20] sm:$0xff]
      %v1143 = vld [vmem:[#allocation3 + $0x28] sm:$0xff]
      %v1144 = vld [vmem:[#allocation3 + $0x30] sm:$0xff]
      %v1145 = vld [vmem:[#allocation3 + $0x38] sm:$0xff]
      %s1146 = scalar_lea.vmem %s2, 320
      %v1147 = vld [vmem:[%s1146] sm:$0xf]
      %v1148 = vld [vmem:[%s1146 + $0x4] sm:$0xf]
      %v1149 = vld [vmem:[%s1146 + $0x8] sm:$0xf]
      %v1150 = vld [vmem:[%s1146 + $0xc] sm:$0xf]
      %v1151 = vld [vmem:[%s1146 + $0x10] sm:$0xf]
      %v1152 = vld [vmem:[%s1146 + $0x14] sm:$0xf]
      %v1153 = vld [vmem:[%s1146 + $0x18] sm:$0xf]
      %v1154 = vld [vmem:[%s1146 + $0x1c] sm:$0xf]
      %v1155 = vld [vmem:[%s1146 + $0x20] sm:$0xf]
      %v1156 = vld [vmem:[%s1146 + $0x24] sm:$0xf]
      %v1157 = vld [vmem:[%s1146 + $0x28] sm:$0xf]
      %v1158 = vld [vmem:[%s1146 + $0x2c] sm:$0xf]
      %v1159 = vld [vmem:[%s1146 + $0x30] sm:$0xf]
      %v1160 = vld [vmem:[%s1146 + $0x34] sm:$0xf]
      %v1161 = vld [vmem:[%s1146 + $0x38] sm:$0xf]
      %v1162 = vld [vmem:[%s1146 + $0x3c] sm:$0xf]
      %v1179 = vunpack.c.l.b16 %v1147
      %v1180 = vunpack.c.l.b16 %v1148
      %v1181 = vunpack.c.l.b16 %v1149
      %v1182 = vunpack.c.l.b16 %v1150
      %v1183 = vunpack.c.l.b16 %v1151
      %v1184 = vunpack.c.l.b16 %v1152
      %v1185 = vunpack.c.l.b16 %v1153
      %v1186 = vunpack.c.l.b16 %v1154
      %v1187 = vunpack.c.l.b16 %v1155
      %v1188 = vunpack.c.l.b16 %v1156
      %v1189 = vunpack.c.l.b16 %v1157
      %v1190 = vunpack.c.l.b16 %v1158
      %v1191 = vunpack.c.l.b16 %v1159
      %v1192 = vunpack.c.l.b16 %v1160
      %v1193 = vunpack.c.l.b16 %v1161
      %v1194 = vunpack.c.l.b16 %v1162
      %v1195 = vpack.c.b16 %v1180, %v1179
      %v1196 = vpack.c.b16 %v1182, %v1181
      %v1197 = vpack.c.b16 %v1184, %v1183
      %v1198 = vpack.c.b16 %v1186, %v1185
      %v1199 = vpack.c.b16 %v1188, %v1187
      %v1200 = vpack.c.b16 %v1190, %v1189
      %v1201 = vpack.c.b16 %v1192, %v1191
      %v1202 = vpack.c.b16 %v1194, %v1193
      %1211 = vmatprep.subr.bf16.mxu0 0
      %1212 = vmatpush1.bf16.msra.mxu0 %v1195
      %1213 = vmatprep.subr.bf16.mxu0 0
      %1214 = vmatpush1.bf16.msra.mxu0 %v1196
      %1215 = vmatprep.subr.bf16.mxu0 0
      %1216 = vmatpush1.bf16.msra.mxu0 %v1197
      %1217 = vmatprep.subr.bf16.mxu0 0
      %1218 = vmatpush1.bf16.msra.mxu0 %v1198
      %1219 = vmatprep.subr.bf16.mxu0 0
      %1220 = vmatpush1.bf16.msra.mxu0 %v1199
      %1221 = vmatprep.subr.bf16.mxu0 0
      %1222 = vmatpush1.bf16.msra.mxu0 %v1200
      %1223 = vmatprep.subr.bf16.mxu0 0
      %1224 = vmatpush1.bf16.msra.mxu0 %v1201
      %1225 = vmatprep.subr.bf16.mxu0 0
      %1226 = vmatpush1.bf16.msra.mxu0 %v1202
      %1227 = vmatprep.subr.bf16.mxu0 0
      %1228 = vmatpush1.bf16.msra.mxu0 0
      %1229 = vmatprep.subr.bf16.mxu0 0
      %1230 = vmatpush1.bf16.msra.mxu0 0
      %1231 = vmatprep.subr.bf16.mxu0 0
      %1232 = vmatpush1.bf16.msra.mxu0 0
      %1233 = vmatprep.subr.bf16.mxu0 0
      %1234 = vmatpush1.bf16.msra.mxu0 0
      %1235 = vmatprep.subr.bf16.mxu0 0
      %1236 = vmatpush1.bf16.msra.mxu0 0
      %1237 = vmatprep.subr.bf16.mxu0 0
      %1238 = vmatpush1.bf16.msra.mxu0 0
      %1239 = vmatprep.subr.bf16.mxu0 0
      %1240 = vmatpush1.bf16.msra.mxu0 0
      %1241 = vmatprep.subr.bf16.mxu0 0
      %1242 = vmatpush1.bf16.msra.mxu0 0
      %1243 = vmatprep.mubr.bf16.mxu0 0
      %1244 = vmatmul.mubr.bf16.gmra.mrb[0].mxu0 %v1134
      %v1245 = vpop.f32.mrb[0].mxu0
      %v1246 = vadd.f32 0.0, %v1245
      %v1247 = vpop.f32.mrb[0].mxu0
      %v1248 = vpop.f32.mrb[0].mxu0
      %v1249 = vadd.f32 0.0, %v1248
      %v1250 = vpop.f32.mrb[0].mxu0
      %1251 = vmatprep.mubr.bf16.mxu0 0
      %1252 = vmatmul.mubr.bf16.gmra.mrb[0].mxu0 %v1135
      %v1253 = vpop.f32.mrb[0].mxu0
      %v1254 = vadd.f32 0.0, %v1253
      %v1255 = vpop.f32.mrb[0].mxu0
      %v1256 = vpop.f32.mrb[0].mxu0
      %v1257 = vadd.f32 0.0, %v1256
      %v1258 = vpop.f32.mrb[0].mxu0
      %1259 = vmatprep.mubr.bf16.mxu0 0
      %1260 = vmatmul.mubr.bf16.gmra.mrb[0].mxu0 %v1136
      %v1261 = vpop.f32.mrb[0].mxu0
      %v1262 = vadd.f32 0.0, %v1261
      %v1263 = vpop.f32.mrb[0].mxu0
      %v1264 = vpop.f32.mrb[0].mxu0
      %v1265 = vadd.f32 0.0, %v1264
      %v1266 = vpop.f32.mrb[0].mxu0
      %1267 = vmatprep.mubr.bf16.mxu0 0
      %1268 = vmatmul.mubr.bf16.gmra.mrb[0].mxu0 %v1137
      %v1269 = vpop.f32.mrb[0].mxu0
      %v1270 = vadd.f32 0.0, %v1269
      %v1271 = vpop.f32.mrb[0].mxu0
      %v1272 = vpop.f32.mrb[0].mxu0
      %v1273 = vadd.f32 0.0, %v1272
      %v1274 = vpop.f32.mrb[0].mxu0
      %1275 = vdwg.mxu0
      %v1276 = vadd.f32 %v1138, %v1246
      %v1277 = vadd.f32 %v1139, %v1249
      %v1278 = vadd.f32 %v1140, %v1254
      %v1279 = vadd.f32 %v1141, %v1257
      %v1280 = vadd.f32 %v1142, %v1262
      %v1281 = vadd.f32 %v1143, %v1265
      %v1282 = vadd.f32 %v1144, %v1270
      %v1283 = vadd.f32 %v1145, %v1273
      %1284 = vst [vmem:[#allocation3] sm:$0xff] %v1276
      %1285 = vst [vmem:[#allocation3 + $0x8] sm:$0xff] %v1277
      %1286 = vst [vmem:[#allocation3 + $0x10] sm:$0xff] %v1278
      %1287 = vst [vmem:[#allocation3 + $0x18] sm:$0xff] %v1279
      %1288 = vst [vmem:[#allocation3 + $0x20] sm:$0xff] %v1280
      %1289 = vst [vmem:[#allocation3 + $0x28] sm:$0xff] %v1281
      %1290 = vst [vmem:[#allocation3 + $0x30] sm:$0xff] %v1282
      %1291 = vst [vmem:[#allocation3 + $0x38] sm:$0xff] %v1283
      %s1292 = scalar_lea.vmem [#allocation2], 32
      %v1293 = vld [vmem:[%s1292] sm:$0xff]
      %v1294 = vld [vmem:[%s1292 + $0x10] sm:$0xff]
      %v1295 = vld [vmem:[%s1292 + $0x20] sm:$0xff]
      %v1296 = vld [vmem:[%s1292 + $0x30] sm:$0xff]
      %v1297 = vld [vmem:[%s1292 + $0x40] sm:$0xff]
      %v1298 = vld [vmem:[%s1292 + $0x50] sm:$0xff]
      %v1299 = vld [vmem:[%s1292 + $0x60] sm:$0xff]
      %v1300 = vld [vmem:[%s1292 + $0x70] sm:$0xff]
      %v1301 = vpack.c.bf16 %v1294, %v1293
      %v1302 = vpack.c.bf16 %v1296, %v1295
      %v1303 = vpack.c.bf16 %v1298, %v1297
      %v1304 = vpack.c.bf16 %v1300, %v1299
      %v1305 = vld [vmem:[#allocation3] sm:$0xff]
      %v1306 = vld [vmem:[#allocation3 + $0x8] sm:$0xff]
      %v1307 = vld [vmem:[#allocation3 + $0x10] sm:$0xff]
      %v1308 = vld [vmem:[#allocation3 + $0x18] sm:$0xff]
      %v1309 = vld [vmem:[#allocation3 + $0x20] sm:$0xff]
      %v1310 = vld [vmem:[#allocation3 + $0x28] sm:$0xff]
      %v1311 = vld [vmem:[#allocation3 + $0x30] sm:$0xff]
      %v1312 = vld [vmem:[#allocation3 + $0x38] sm:$0xff]
      %s1313 = scalar_lea.vmem %s2, 384
      %v1314 = vld [vmem:[%s1313] sm:$0xf]
      %v1315 = vld [vmem:[%s1313 + $0x4] sm:$0xf]
      %v1316 = vld [vmem:[%s1313 + $0x8] sm:$0xf]
      %v1317 = vld [vmem:[%s1313 + $0xc] sm:$0xf]
      %v1318 = vld [vmem:[%s1313 + $0x10] sm:$0xf]
      %v1319 = vld [vmem:[%s1313 + $0x14] sm:$0xf]
      %v1320 = vld [vmem:[%s1313 + $0x18] sm:$0xf]
      %v1321 = vld [vmem:[%s1313 + $0x1c] sm:$0xf]
      %v1322 = vld [vmem:[%s1313 + $0x20] sm:$0xf]
      %v1323 = vld [vmem:[%s1313 + $0x24] sm:$0xf]
      %v1324 = vld [vmem:[%s1313 + $0x28] sm:$0xf]
      %v1325 = vld [vmem:[%s1313 + $0x2c] sm:$0xf]
      %v1326 = vld [vmem:[%s1313 + $0x30] sm:$0xf]
      %v1327 = vld [vmem:[%s1313 + $0x34] sm:$0xf]
      %v1328 = vld [vmem:[%s1313 + $0x38] sm:$0xf]
      %v1329 = vld [vmem:[%s1313 + $0x3c] sm:$0xf]
      %v1346 = vunpack.c.l.b16 %v1314
      %v1347 = vunpack.c.l.b16 %v1315
      %v1348 = vunpack.c.l.b16 %v1316
      %v1349 = vunpack.c.l.b16 %v1317
      %v1350 = vunpack.c.l.b16 %v1318
      %v1351 = vunpack.c.l.b16 %v1319
      %v1352 = vunpack.c.l.b16 %v1320
      %v1353 = vunpack.c.l.b16 %v1321
      %v1354 = vunpack.c.l.b16 %v1322
      %v1355 = vunpack.c.l.b16 %v1323
      %v1356 = vunpack.c.l.b16 %v1324
      %v1357 = vunpack.c.l.b16 %v1325
      %v1358 = vunpack.c.l.b16 %v1326
      %v1359 = vunpack.c.l.b16 %v1327
      %v1360 = vunpack.c.l.b16 %v1328
      %v1361 = vunpack.c.l.b16 %v1329
      %v1362 = vpack.c.b16 %v1347, %v1346
      %v1363 = vpack.c.b16 %v1349, %v1348
      %v1364 = vpack.c.b16 %v1351, %v1350
      %v1365 = vpack.c.b16 %v1353, %v1352
      %v1366 = vpack.c.b16 %v1355, %v1354
      %v1367 = vpack.c.b16 %v1357, %v1356
      %v1368 = vpack.c.b16 %v1359, %v1358
      %v1369 = vpack.c.b16 %v1361, %v1360
      %1378 = vmatprep.subr.bf16.mxu0 0
      %1379 = vmatpush1.bf16.msra.mxu0 %v1362
      %1380 = vmatprep.subr.bf16.mxu0 0
      %1381 = vmatpush1.bf16.msra.mxu0 %v1363
      %1382 = vmatprep.subr.bf16.mxu0 0
      %1383 = vmatpush1.bf16.msra.mxu0 %v1364
      %1384 = vmatprep.subr.bf16.mxu0 0
      %1385 = vmatpush1.bf16.msra.mxu0 %v1365
      %1386 = vmatprep.subr.bf16.mxu0 0
      %1387 = vmatpush1.bf16.msra.mxu0 %v1366
      %1388 = vmatprep.subr.bf16.mxu0 0
      %1389 = vmatpush1.bf16.msra.mxu0 %v1367
      %1390 = vmatprep.subr.bf16.mxu0 0
      %1391 = vmatpush1.bf16.msra.mxu0 %v1368
      %1392 = vmatprep.subr.bf16.mxu0 0
      %1393 = vmatpush1.bf16.msra.mxu0 %v1369
      %1394 = vmatprep.subr.bf16.mxu0 0
      %1395 = vmatpush1.bf16.msra.mxu0 0
      %1396 = vmatprep.subr.bf16.mxu0 0
      %1397 = vmatpush1.bf16.msra.mxu0 0
      %1398 = vmatprep.subr.bf16.mxu0 0
      %1399 = vmatpush1.bf16.msra.mxu0 0
      %1400 = vmatprep.subr.bf16.mxu0 0
      %1401 = vmatpush1.bf16.msra.mxu0 0
      %1402 = vmatprep.subr.bf16.mxu0 0
      %1403 = vmatpush1.bf16.msra.mxu0 0
      %1404 = vmatprep.subr.bf16.mxu0 0
      %1405 = vmatpush1.bf16.msra.mxu0 0
      %1406 = vmatprep.subr.bf16.mxu0 0
      %1407 = vmatpush1.bf16.msra.mxu0 0
      %1408 = vmatprep.subr.bf16.mxu0 0
      %1409 = vmatpush1.bf16.msra.mxu0 0
      %1410 = vmatprep.mubr.bf16.mxu0 0
      %1411 = vmatmul.mubr.bf16.gmra.mrb[0].mxu0 %v1301
      %v1412 = vpop.f32.mrb[0].mxu0
      %v1413 = vadd.f32 0.0, %v1412
      %v1414 = vpop.f32.mrb[0].mxu0
      %v1415 = vpop.f32.mrb[0].mxu0
      %v1416 = vadd.f32 0.0, %v1415
      %v1417 = vpop.f32.mrb[0].mxu0
      %1418 = vmatprep.mubr.bf16.mxu0 0
      %1419 = vmatmul.mubr.bf16.gmra.mrb[0].mxu0 %v1302
      %v1420 = vpop.f32.mrb[0].mxu0
      %v1421 = vadd.f32 0.0, %v1420
      %v1422 = vpop.f32.mrb[0].mxu0
      %v1423 = vpop.f32.mrb[0].mxu0
      %v1424 = vadd.f32 0.0, %v1423
      %v1425 = vpop.f32.mrb[0].mxu0
      %1426 = vmatprep.mubr.bf16.mxu0 0
      %1427 = vmatmul.mubr.bf16.gmra.mrb[0].mxu0 %v1303
      %v1428 = vpop.f32.mrb[0].mxu0
      %v1429 = vadd.f32 0.0, %v1428
      %v1430 = vpop.f32.mrb[0].mxu0
      %v1431 = vpop.f32.mrb[0].mxu0
      %v1432 = vadd.f32 0.0, %v1431
      %v1433 = vpop.f32.mrb[0].mxu0
      %1434 = vmatprep.mubr.bf16.mxu0 0
      %1435 = vmatmul.mubr.bf16.gmra.mrb[0].mxu0 %v1304
      %v1436 = vpop.f32.mrb[0].mxu0
      %v1437 = vadd.f32 0.0, %v1436
      %v1438 = vpop.f32.mrb[0].mxu0
      %v1439 = vpop.f32.mrb[0].mxu0
      %v1440 = vadd.f32 0.0, %v1439
      %v1441 = vpop.f32.mrb[0].mxu0
      %1442 = vdwg.mxu0
      %v1443 = vadd.f32 %v1305, %v1413
      %v1444 = vadd.f32 %v1306, %v1416
      %v1445 = vadd.f32 %v1307, %v1421
      %v1446 = vadd.f32 %v1308, %v1424
      %v1447 = vadd.f32 %v1309, %v1429
      %v1448 = vadd.f32 %v1310, %v1432
      %v1449 = vadd.f32 %v1311, %v1437
      %v1450 = vadd.f32 %v1312, %v1440
      %1451 = vst [vmem:[#allocation3] sm:$0xff] %v1443
      %1452 = vst [vmem:[#allocation3 + $0x8] sm:$0xff] %v1444
      %1453 = vst [vmem:[#allocation3 + $0x10] sm:$0xff] %v1445
      %1454 = vst [vmem:[#allocation3 + $0x18] sm:$0xff] %v1446
      %1455 = vst [vmem:[#allocation3 + $0x20] sm:$0xff] %v1447
      %1456 = vst [vmem:[#allocation3 + $0x28] sm:$0xff] %v1448
      %1457 = vst [vmem:[#allocation3 + $0x30] sm:$0xff] %v1449
      %1458 = vst [vmem:[#allocation3 + $0x38] sm:$0xff] %v1450
      %v1459 = vld [vmem:[%s1292 + $0x1] sm:$0xff]
      %v1460 = vld [vmem:[%s1292 + $0x11] sm:$0xff]
      %v1461 = vld [vmem:[%s1292 + $0x21] sm:$0xff]
      %v1462 = vld [vmem:[%s1292 + $0x31] sm:$0xff]
      %v1463 = vld [vmem:[%s1292 + $0x41] sm:$0xff]
      %v1464 = vld [vmem:[%s1292 + $0x51] sm:$0xff]
      %v1465 = vld [vmem:[%s1292 + $0x61] sm:$0xff]
      %v1466 = vld [vmem:[%s1292 + $0x71] sm:$0xff]
      %v1467 = vpack.c.bf16 %v1460, %v1459
      %v1468 = vpack.c.bf16 %v1462, %v1461
      %v1469 = vpack.c.bf16 %v1464, %v1463
      %v1470 = vpack.c.bf16 %v1466, %v1465
      %v1471 = vld [vmem:[#allocation3] sm:$0xff]
      %v1472 = vld [vmem:[#allocation3 + $0x8] sm:$0xff]
      %v1473 = vld [vmem:[#allocation3 + $0x10] sm:$0xff]
      %v1474 = vld [vmem:[#allocation3 + $0x18] sm:$0xff]
      %v1475 = vld [vmem:[#allocation3 + $0x20] sm:$0xff]
      %v1476 = vld [vmem:[#allocation3 + $0x28] sm:$0xff]
      %v1477 = vld [vmem:[#allocation3 + $0x30] sm:$0xff]
      %v1478 = vld [vmem:[#allocation3 + $0x38] sm:$0xff]
      %s1479 = scalar_lea.vmem %s2, 448
      %v1480 = vld [vmem:[%s1479] sm:$0xf]
      %v1481 = vld [vmem:[%s1479 + $0x4] sm:$0xf]
      %v1482 = vld [vmem:[%s1479 + $0x8] sm:$0xf]
      %v1483 = vld [vmem:[%s1479 + $0xc] sm:$0xf]
      %v1484 = vld [vmem:[%s1479 + $0x10] sm:$0xf]
      %v1485 = vld [vmem:[%s1479 + $0x14] sm:$0xf]
      %v1486 = vld [vmem:[%s1479 + $0x18] sm:$0xf]
      %v1487 = vld [vmem:[%s1479 + $0x1c] sm:$0xf]
      %v1488 = vld [vmem:[%s1479 + $0x20] sm:$0xf]
      %v1489 = vld [vmem:[%s1479 + $0x24] sm:$0xf]
      %v1490 = vld [vmem:[%s1479 + $0x28] sm:$0xf]
      %v1491 = vld [vmem:[%s1479 + $0x2c] sm:$0xf]
      %v1492 = vld [vmem:[%s1479 + $0x30] sm:$0xf]
      %v1493 = vld [vmem:[%s1479 + $0x34] sm:$0xf]
      %v1494 = vld [vmem:[%s1479 + $0x38] sm:$0xf]
      %v1495 = vld [vmem:[%s1479 + $0x3c] sm:$0xf]
      %v1512 = vunpack.c.l.b16 %v1480
      %v1513 = vunpack.c.l.b16 %v1481
      %v1514 = vunpack.c.l.b16 %v1482
      %v1515 = vunpack.c.l.b16 %v1483
      %v1516 = vunpack.c.l.b16 %v1484
      %v1517 = vunpack.c.l.b16 %v1485
      %v1518 = vunpack.c.l.b16 %v1486
      %v1519 = vunpack.c.l.b16 %v1487
      %v1520 = vunpack.c.l.b16 %v1488
      %v1521 = vunpack.c.l.b16 %v1489
      %v1522 = vunpack.c.l.b16 %v1490
      %v1523 = vunpack.c.l.b16 %v1491
      %v1524 = vunpack.c.l.b16 %v1492
      %v1525 = vunpack.c.l.b16 %v1493
      %v1526 = vunpack.c.l.b16 %v1494
      %v1527 = vunpack.c.l.b16 %v1495
      %v1528 = vpack.c.b16 %v1513, %v1512
      %v1529 = vpack.c.b16 %v1515, %v1514
      %v1530 = vpack.c.b16 %v1517, %v1516
      %v1531 = vpack.c.b16 %v1519, %v1518
      %v1532 = vpack.c.b16 %v1521, %v1520
      %v1533 = vpack.c.b16 %v1523, %v1522
      %v1534 = vpack.c.b16 %v1525, %v1524
      %v1535 = vpack.c.b16 %v1527, %v1526
      %1544 = vmatprep.subr.bf16.mxu0 0
      %1545 = vmatpush1.bf16.msra.mxu0 %v1528
      %1546 = vmatprep.subr.bf16.mxu0 0
      %1547 = vmatpush1.bf16.msra.mxu0 %v1529
      %1548 = vmatprep.subr.bf16.mxu0 0
      %1549 = vmatpush1.bf16.msra.mxu0 %v1530
      %1550 = vmatprep.subr.bf16.mxu0 0
      %1551 = vmatpush1.bf16.msra.mxu0 %v1531
      %1552 = vmatprep.subr.bf16.mxu0 0
      %1553 = vmatpush1.bf16.msra.mxu0 %v1532
      %1554 = vmatprep.subr.bf16.mxu0 0
      %1555 = vmatpush1.bf16.msra.mxu0 %v1533
      %1556 = vmatprep.subr.bf16.mxu0 0
      %1557 = vmatpush1.bf16.msra.mxu0 %v1534
      %1558 = vmatprep.subr.bf16.mxu0 0
      %1559 = vmatpush1.bf16.msra.mxu0 %v1535
      %1560 = vmatprep.subr.bf16.mxu0 0
      %1561 = vmatpush1.bf16.msra.mxu0 0
      %1562 = vmatprep.subr.bf16.mxu0 0
      %1563 = vmatpush1.bf16.msra.mxu0 0
      %1564 = vmatprep.subr.bf16.mxu0 0
      %1565 = vmatpush1.bf16.msra.mxu0 0
      %1566 = vmatprep.subr.bf16.mxu0 0
      %1567 = vmatpush1.bf16.msra.mxu0 0
      %1568 = vmatprep.subr.bf16.mxu0 0
      %1569 = vmatpush1.bf16.msra.mxu0 0
      %1570 = vmatprep.subr.bf16.mxu0 0
      %1571 = vmatpush1.bf16.msra.mxu0 0
      %1572 = vmatprep.subr.bf16.mxu0 0
      %1573 = vmatpush1.bf16.msra.mxu0 0
      %1574 = vmatprep.subr.bf16.mxu0 0
      %1575 = vmatpush1.bf16.msra.mxu0 0
      %1576 = vmatprep.mubr.bf16.mxu0 0
      %1577 = vmatmul.mubr.bf16.gmra.mrb[0].mxu0 %v1467
      %v1578 = vpop.f32.mrb[0].mxu0
      %v1579 = vadd.f32 0.0, %v1578
      %v1580 = vpop.f32.mrb[0].mxu0
      %v1581 = vpop.f32.mrb[0].mxu0
      %v1582 = vadd.f32 0.0, %v1581
      %v1583 = vpop.f32.mrb[0].mxu0
      %1584 = vmatprep.mubr.bf16.mxu0 0
      %1585 = vmatmul.mubr.bf16.gmra.mrb[0].mxu0 %v1468
      %v1586 = vpop.f32.mrb[0].mxu0
      %v1587 = vadd.f32 0.0, %v1586
      %v1588 = vpop.f32.mrb[0].mxu0
      %v1589 = vpop.f32.mrb[0].mxu0
      %v1590 = vadd.f32 0.0, %v1589
      %v1591 = vpop.f32.mrb[0].mxu0
      %1592 = vmatprep.mubr.bf16.mxu0 0
      %1593 = vmatmul.mubr.bf16.gmra.mrb[0].mxu0 %v1469
      %v1594 = vpop.f32.mrb[0].mxu0
      %v1595 = vadd.f32 0.0, %v1594
      %v1596 = vpop.f32.mrb[0].mxu0
      %v1597 = vpop.f32.mrb[0].mxu0
      %v1598 = vadd.f32 0.0, %v1597
      %v1599 = vpop.f32.mrb[0].mxu0
      %1600 = vmatprep.mubr.bf16.mxu0 0
      %1601 = vmatmul.mubr.bf16.gmra.mrb[0].mxu0 %v1470
      %v1602 = vpop.f32.mrb[0].mxu0
      %v1603 = vadd.f32 0.0, %v1602
      %v1604 = vpop.f32.mrb[0].mxu0
      %v1605 = vpop.f32.mrb[0].mxu0
      %v1606 = vadd.f32 0.0, %v1605
      %v1607 = vpop.f32.mrb[0].mxu0
      %1608 = vdwg.mxu0
      %v1609 = vadd.f32 %v1471, %v1579
      %v1610 = vadd.f32 %v1472, %v1582
      %v1611 = vadd.f32 %v1473, %v1587
      %v1612 = vadd.f32 %v1474, %v1590
      %v1613 = vadd.f32 %v1475, %v1595
      %v1614 = vadd.f32 %v1476, %v1598
      %v1615 = vadd.f32 %v1477, %v1603
      %v1616 = vadd.f32 %v1478, %v1606
      %1617 = vst [vmem:[#allocation3] sm:$0xff] %v1609
      %1618 = vst [vmem:[#allocation3 + $0x8] sm:$0xff] %v1610
      %1619 = vst [vmem:[#allocation3 + $0x10] sm:$0xff] %v1611
      %1620 = vst [vmem:[#allocation3 + $0x18] sm:$0xff] %v1612
      %1621 = vst [vmem:[#allocation3 + $0x20] sm:$0xff] %v1613
      %1622 = vst [vmem:[#allocation3 + $0x28] sm:$0xff] %v1614
      %1623 = vst [vmem:[#allocation3 + $0x30] sm:$0xff] %v1615
      %1624 = vst [vmem:[#allocation3 + $0x38] sm:$0xff] %v1616
      %v1625 = vld [vmem:[%s1292 + $0x2] sm:$0xff]
      %v1626 = vld [vmem:[%s1292 + $0x12] sm:$0xff]
      %v1627 = vld [vmem:[%s1292 + $0x22] sm:$0xff]
      %v1628 = vld [vmem:[%s1292 + $0x32] sm:$0xff]
      %v1629 = vld [vmem:[%s1292 + $0x42] sm:$0xff]
      %v1630 = vld [vmem:[%s1292 + $0x52] sm:$0xff]
      %v1631 = vld [vmem:[%s1292 + $0x62] sm:$0xff]
      %v1632 = vld [vmem:[%s1292 + $0x72] sm:$0xff]
      %v1633 = vpack.c.bf16 %v1626, %v1625
      %v1634 = vpack.c.bf16 %v1628, %v1627
      %v1635 = vpack.c.bf16 %v1630, %v1629
      %v1636 = vpack.c.bf16 %v1632, %v1631
      %v1637 = vld [vmem:[#allocation3] sm:$0xff]
      %v1638 = vld [vmem:[#allocation3 + $0x8] sm:$0xff]
      %v1639 = vld [vmem:[#allocation3 + $0x10] sm:$0xff]
      %v1640 = vld [vmem:[#allocation3 + $0x18] sm:$0xff]
      %v1641 = vld [vmem:[#allocation3 + $0x20] sm:$0xff]
      %v1642 = vld [vmem:[#allocation3 + $0x28] sm:$0xff]
      %v1643 = vld [vmem:[#allocation3 + $0x30] sm:$0xff]
      %v1644 = vld [vmem:[#allocation3 + $0x38] sm:$0xff]
      %s1645 = scalar_lea.vmem %s2, 512
      %v1646 = vld [vmem:[%s1645] sm:$0xf]
      %v1647 = vld [vmem:[%s1645 + $0x4] sm:$0xf]
      %v1648 = vld [vmem:[%s1645 + $0x8] sm:$0xf]
      %v1649 = vld [vmem:[%s1645 + $0xc] sm:$0xf]
      %v1650 = vld [vmem:[%s1645 + $0x10] sm:$0xf]
      %v1651 = vld [vmem:[%s1645 + $0x14] sm:$0xf]
      %v1652 = vld [vmem:[%s1645 + $0x18] sm:$0xf]
      %v1653 = vld [vmem:[%s1645 + $0x1c] sm:$0xf]
      %v1654 = vld [vmem:[%s1645 + $0x20] sm:$0xf]
      %v1655 = vld [vmem:[%s1645 + $0x24] sm:$0xf]
      %v1656 = vld [vmem:[%s1645 + $0x28] sm:$0xf]
      %v1657 = vld [vmem:[%s1645 + $0x2c] sm:$0xf]
      %v1658 = vld [vmem:[%s1645 + $0x30] sm:$0xf]
      %v1659 = vld [vmem:[%s1645 + $0x34] sm:$0xf]
      %v1660 = vld [vmem:[%s1645 + $0x38] sm:$0xf]
      %v1661 = vld [vmem:[%s1645 + $0x3c] sm:$0xf]
      %v1678 = vunpack.c.l.b16 %v1646
      %v1679 = vunpack.c.l.b16 %v1647
      %v1680 = vunpack.c.l.b16 %v1648
      %v1681 = vunpack.c.l.b16 %v1649
      %v1682 = vunpack.c.l.b16 %v1650
      %v1683 = vunpack.c.l.b16 %v1651
      %v1684 = vunpack.c.l.b16 %v1652
      %v1685 = vunpack.c.l.b16 %v1653
      %v1686 = vunpack.c.l.b16 %v1654
      %v1687 = vunpack.c.l.b16 %v1655
      %v1688 = vunpack.c.l.b16 %v1656
      %v1689 = vunpack.c.l.b16 %v1657
      %v1690 = vunpack.c.l.b16 %v1658
      %v1691 = vunpack.c.l.b16 %v1659
      %v1692 = vunpack.c.l.b16 %v1660
      %v1693 = vunpack.c.l.b16 %v1661
      %v1694 = vpack.c.b16 %v1679, %v1678
      %v1695 = vpack.c.b16 %v1681, %v1680
      %v1696 = vpack.c.b16 %v1683, %v1682
      %v1697 = vpack.c.b16 %v1685, %v1684
      %v1698 = vpack.c.b16 %v1687, %v1686
      %v1699 = vpack.c.b16 %v1689, %v1688
      %v1700 = vpack.c.b16 %v1691, %v1690
      %v1701 = vpack.c.b16 %v1693, %v1692
      %1710 = vmatprep.subr.bf16.mxu0 0
      %1711 = vmatpush1.bf16.msra.mxu0 %v1694
      %1712 = vmatprep.subr.bf16.mxu0 0
      %1713 = vmatpush1.bf16.msra.mxu0 %v1695
      %1714 = vmatprep.subr.bf16.mxu0 0
      %1715 = vmatpush1.bf16.msra.mxu0 %v1696
      %1716 = vmatprep.subr.bf16.mxu0 0
      %1717 = vmatpush1.bf16.msra.mxu0 %v1697
      %1718 = vmatprep.subr.bf16.mxu0 0
      %1719 = vmatpush1.bf16.msra.mxu0 %v1698
      %1720 = vmatprep.subr.bf16.mxu0 0
      %1721 = vmatpush1.bf16.msra.mxu0 %v1699
      %1722 = vmatprep.subr.bf16.mxu0 0
      %1723 = vmatpush1.bf16.msra.mxu0 %v1700
      %1724 = vmatprep.subr.bf16.mxu0 0
      %1725 = vmatpush1.bf16.msra.mxu0 %v1701
      %1726 = vmatprep.subr.bf16.mxu0 0
      %1727 = vmatpush1.bf16.msra.mxu0 0
      %1728 = vmatprep.subr.bf16.mxu0 0
      %1729 = vmatpush1.bf16.msra.mxu0 0
      %1730 = vmatprep.subr.bf16.mxu0 0
      %1731 = vmatpush1.bf16.msra.mxu0 0
      %1732 = vmatprep.subr.bf16.mxu0 0
      %1733 = vmatpush1.bf16.msra.mxu0 0
      %1734 = vmatprep.subr.bf16.mxu0 0
      %1735 = vmatpush1.bf16.msra.mxu0 0
      %1736 = vmatprep.subr.bf16.mxu0 0
      %1737 = vmatpush1.bf16.msra.mxu0 0
      %1738 = vmatprep.subr.bf16.mxu0 0
      %1739 = vmatpush1.bf16.msra.mxu0 0
      %1740 = vmatprep.subr.bf16.mxu0 0
      %1741 = vmatpush1.bf16.msra.mxu0 0
      %1742 = vmatprep.mubr.bf16.mxu0 0
      %1743 = vmatmul.mubr.bf16.gmra.mrb[0].mxu0 %v1633
      %v1744 = vpop.f32.mrb[0].mxu0
      %v1745 = vadd.f32 0.0, %v1744
      %v1746 = vpop.f32.mrb[0].mxu0
      %v1747 = vpop.f32.mrb[0].mxu0
      %v1748 = vadd.f32 0.0, %v1747
      %v1749 = vpop.f32.mrb[0].mxu0
      %1750 = vmatprep.mubr.bf16.mxu0 0
      %1751 = vmatmul.mubr.bf16.gmra.mrb[0].mxu0 %v1634
      %v1752 = vpop.f32.mrb[0].mxu0
      %v1753 = vadd.f32 0.0, %v1752
      %v1754 = vpop.f32.mrb[0].mxu0
      %v1755 = vpop.f32.mrb[0].mxu0
      %v1756 = vadd.f32 0.0, %v1755
      %v1757 = vpop.f32.mrb[0].mxu0
      %1758 = vmatprep.mubr.bf16.mxu0 0
      %1759 = vmatmul.mubr.bf16.gmra.mrb[0].mxu0 %v1635
      %v1760 = vpop.f32.mrb[0].mxu0
      %v1761 = vadd.f32 0.0, %v1760
      %v1762 = vpop.f32.mrb[0].mxu0
      %v1763 = vpop.f32.mrb[0].mxu0
      %v1764 = vadd.f32 0.0, %v1763
      %v1765 = vpop.f32.mrb[0].mxu0
      %1766 = vmatprep.mubr.bf16.mxu0 0
      %1767 = vmatmul.mubr.bf16.gmra.mrb[0].mxu0 %v1636
      %v1768 = vpop.f32.mrb[0].mxu0
      %v1769 = vadd.f32 0.0, %v1768
      %v1770 = vpop.f32.mrb[0].mxu0
      %v1771 = vpop.f32.mrb[0].mxu0
      %v1772 = vadd.f32 0.0, %v1771
      %v1773 = vpop.f32.mrb[0].mxu0
      %1774 = vdwg.mxu0
      %v1775 = vadd.f32 %v1637, %v1745
      %v1776 = vadd.f32 %v1638, %v1748
      %v1777 = vadd.f32 %v1639, %v1753
      %v1778 = vadd.f32 %v1640, %v1756
      %v1779 = vadd.f32 %v1641, %v1761
      %v1780 = vadd.f32 %v1642, %v1764
      %v1781 = vadd.f32 %v1643, %v1769
      %v1782 = vadd.f32 %v1644, %v1772
      %1783 = vst [vmem:[#allocation3] sm:$0xff] %v1775
      %1784 = vst [vmem:[#allocation3 + $0x8] sm:$0xff] %v1776
      %1785 = vst [vmem:[#allocation3 + $0x10] sm:$0xff] %v1777
      %1786 = vst [vmem:[#allocation3 + $0x18] sm:$0xff] %v1778
      %1787 = vst [vmem:[#allocation3 + $0x20] sm:$0xff] %v1779
      %1788 = vst [vmem:[#allocation3 + $0x28] sm:$0xff] %v1780
      %1789 = vst [vmem:[#allocation3 + $0x30] sm:$0xff] %v1781
      %1790 = vst [vmem:[#allocation3 + $0x38] sm:$0xff] %v1782
      %v1791 = vld [vmem:[#allocation3] sm:$0xff]
      %v1792 = vld [vmem:[#allocation3 + $0x8] sm:$0xff]
      %v1793 = vld [vmem:[#allocation3 + $0x10] sm:$0xff]
      %v1794 = vld [vmem:[#allocation3 + $0x18] sm:$0xff]
      %v1795 = vld [vmem:[#allocation3 + $0x20] sm:$0xff]
      %v1796 = vld [vmem:[#allocation3 + $0x28] sm:$0xff]
      %v1797 = vld [vmem:[#allocation3 + $0x30] sm:$0xff]
      %v1798 = vld [vmem:[#allocation3 + $0x38] sm:$0xff]
      %v1799 = vpack.c.bf16 %v1791, %v1791
      %v1800 = vpack.c.bf16 %v1792, %v1792
      %v1801 = vpack.c.bf16 %v1793, %v1793
      %v1802 = vpack.c.bf16 %v1794, %v1794
      %v1803 = vpack.c.bf16 %v1795, %v1795
      %v1804 = vpack.c.bf16 %v1796, %v1796
      %v1805 = vpack.c.bf16 %v1797, %v1797
      %v1806 = vpack.c.bf16 %v1798, %v1798
      %1807 = vst [vmem:[%s204] sm:$0xf] %v1799
      %1808 = vst [vmem:[%s204 + $0x4] sm:$0xf] %v1800
      %1809 = vst [vmem:[%s204 + $0x8] sm:$0xf] %v1801
      %1810 = vst [vmem:[%s204 + $0xc] sm:$0xf] %v1802
      %1811 = vst [vmem:[%s204 + $0x10] sm:$0xf] %v1803
      %1812 = vst [vmem:[%s204 + $0x14] sm:$0xf] %v1804
      %1813 = vst [vmem:[%s204 + $0x18] sm:$0xf] %v1805
      %1814 = vst [vmem:[%s204 + $0x1c] sm:$0xf] %v1806
      %v1815 = vadd.f32 %v1791, %v1792
      %v1816 = vadd.f32 %v1815, %v1793
      %v1817 = vadd.f32 %v1816, %v1794
      %v1818 = vadd.f32 %v1817, %v1795
      %v1819 = vadd.f32 %v1818, %v1796
      %v1820 = vadd.f32 %v1819, %v1797
      %v1821 = vadd.f32 %v1820, %v1798
      %v1822 = vrot.slane %v1821, 4
      %v1823 = vadd.f32 %v1821, %v1822
      %v1824 = vrot.slane %v1823, 2
      %v1825 = vadd.f32 %v1823, %v1824
      %v1826 = vrot.slane %v1825, 1
      %v1827 = vadd.f32 %v1825, %v1826
      %v1828 = vmul.f32 %v1791, %v1791
      %v1829 = vmul.f32 %v1792, %v1792
      %v1830 = vmul.f32 %v1793, %v1793
      %v1831 = vmul.f32 %v1794, %v1794
      %v1832 = vmul.f32 %v1795, %v1795
      %v1833 = vmul.f32 %v1796, %v1796
      %v1834 = vmul.f32 %v1797, %v1797
      %v1835 = vmul.f32 %v1798, %v1798
      %v1836 = vadd.f32 %v1828, %v1829
      %v1837 = vadd.f32 %v1836, %v1830
      %v1838 = vadd.f32 %v1837, %v1831
      %v1839 = vadd.f32 %v1838, %v1832
      %v1840 = vadd.f32 %v1839, %v1833
      %v1841 = vadd.f32 %v1840, %v1834
      %v1842 = vadd.f32 %v1841, %v1835
      %v1843 = vrot.slane %v1842, 4
      %v1844 = vadd.f32 %v1842, %v1843
      %v1845 = vrot.slane %v1844, 2
      %v1846 = vadd.f32 %v1844, %v1845
      %v1847 = vrot.slane %v1846, 1
      %v1848 = vadd.f32 %v1846, %v1847
      %vm1849 = vcmask 1040384
      %v1850 = vsel %vm1849, %v1827, %v1848
      %1851 = vst [vmem:[%s208] sm:$0x3] %v1850
      %p1852 = scmp.lt.s32.totalorder %s16, 1
      %s1853 = scalar_select %p1852, %s16, 1
      %s1854 = smul.addr %s1853, 8
      %s1855 = smul.addr %s1854, 4
      %s1856 = scalar_lea.vmem %s3, %s1855
      %p1857 = scmp.lt.s32.totalorder %s16, 1
      %s1858 = scalar_select %p1857, %s16, 1
      %s1859 = smul.addr %s1858, 2
      %s1860 = scalar_lea.vmem %s4, %s1859
      // Predicated region
      $region33: #{basic_block_forward.4} parent=31 // pred_check
        %p1861 = pneg %p102
      $region34: #{basic_block_forward.4} parent=31 // pred_check_branch
        %1863 = sbr.rel (%p1861) target = $region36
      $region35: #{basic_block_forward.4} parent=31 // pred_region
        _
      $region36: #{basic_block_forward.4} parent=31 // pred_fallthru
        _
      // Predicated region
      $region37: #{basic_block_forward.4} parent=31 // pred_check
        %p1864 = pneg %p128
      $region38: #{basic_block_forward.4} parent=31 // pred_check_branch
        %1866 = sbr.rel (%p1864) target = $region40
      $region39: #{basic_block_forward.4} parent=31 // pred_region
        _
      $region40: #{basic_block_forward.4} parent=31 // pred_fallthru
        _
    $region32: #{basic_block_forward.4} parent=5 // pred_fallthru
      _
    %p1867 = scmp.le.s32.totalorder 2, %s11
    // Predicated region
    $region41: #{basic_block_forward.4} parent=5 // pred_check
      %p1868 = pneg %p1867
    $region42: #{basic_block_forward.4} parent=5 // pred_check_branch
      %1870 = sbr.rel (%p1868) target = $region44
    $region43: #{basic_block_forward.4} parent=5 // pred_region
      %s1871 = ssub.s32 %s11, 2
      // Predicated region
      $region45: #{basic_block_forward.4} parent=43 // pred_check
        %p1872 = pneg %p108
      $region46: #{basic_block_forward.4} parent=43 // pred_check_branch
        %1874 = sbr.rel (%p1872) target = $region48
      $region47: #{basic_block_forward.4} parent=43 // pred_region
        %p1875 = scmp.lt.s32.totalorder %s17, 1
        %s1876 = scalar_select %p1875, %s17, 1
        %s1877 = smul.addr %s1876, 8
        %s1878 = smul.addr %s1877, 4
        %s1879 = scalar_lea.vmem %s3, %s1878
      $region48: #{basic_block_forward.4} parent=43 // pred_fallthru
        _
      // Predicated region
      $region49: #{basic_block_forward.4} parent=43 // pred_check
        %p1880 = pneg %p134
      $region50: #{basic_block_forward.4} parent=43 // pred_check_branch
        %1882 = sbr.rel (%p1880) target = $region52
      $region51: #{basic_block_forward.4} parent=43 // pred_region
        %p1883 = scmp.lt.s32.totalorder %s17, 1
        %s1884 = scalar_select %p1883, %s17, 1
        %s1885 = smul.addr %s1884, 2
        %s1886 = scalar_lea.vmem %s4, %s1885
      $region52: #{basic_block_forward.4} parent=43 // pred_fallthru
        _
    $region44: #{basic_block_forward.4} parent=5 // pred_fallthru
      _
  $region6: #{basic_block_forward.4} parent=0 // loop_footer
    %s15 = sadd.s32 1, %s11
  $region7: #{basic_block_forward.4} parent=0 // loop_footer_branch
    %10 = sbr.rel target = $region3
  $region8: #{basic_block_forward.4} parent=0 // loop_exit
    _

</llo_original>
